<compile_context>
chip_gen: v7x
topology: tpu7x:2x2x1
jax: 0.10.0
libtpu: 0.0.40
codegen_flags: <defaults>
</compile_context>

<pallas_src>
import functools

import jax
import jax.numpy as jnp
from jax.experimental import pallas as pl
from jax.experimental.pallas import tpu as pltpu

LN_EPS = 1e-5  # matches torch.nn.LayerNorm default


# ----------------------------- in-kernel helpers -----------------------------

def _layernorm(x, g, b):
    # biased variance, same as torch.nn.LayerNorm (f32 math)
    mu = jnp.mean(x, axis=-1, keepdims=True)
    var = jnp.mean((x - mu) ** 2, axis=-1, keepdims=True)
    return (x - mu) * jax.lax.rsqrt(var + LN_EPS) * g + b


def _erf_f32(x):
    # XLA's f32 erf rational approximation built from mul/add/clamp plus a
    # pl.reciprocal (EUP) instead of a VALU divide.
    alpha = (0.00022905065861350646, 0.0034082910107109506,
             0.050955695062380861, 0.18520832239976145, 1.128379143519084)
    beta = (-1.1791602954361697e-07, 2.3547966471313185e-05,
            0.0010179625278914885, 0.014070470171167667,
            0.11098505178285362, 0.49746925110067538, 1.0)
    x = jnp.clip(x, -4.0, 4.0)
    x2 = x * x
    p = jnp.full_like(x2, alpha[0])
    for c in alpha[1:]:
        p = p * x2 + c
    q = jnp.full_like(x2, beta[0])
    for c in beta[1:]:
        q = q * x2 + c
    return x * p * pl.reciprocal(q)


def _gelu_exact(x):
    # torch.nn.GELU() default = exact (erf-based) GELU
    return 0.5 * x * (1.0 + _erf_f32(x * 0.7071067811865475))


# --------------------------------- kernel ------------------------------------

def vit_kernel(xp_ref, pw_ref, add_ref,
               ln1g_ref, ln1b_ref, wq_ref, wk_ref, wv_ref, wo_ref, bo_ref,
               ln2g_ref, ln2b_ref, w1_ref, b1_ref, w2_ref, b2_ref,
               hg_ref, hb_ref, hw_ref, hbias_ref,
               o_ref, *, depth, heads, dim_head):
    # xp_ref:  (N, patch_dim)  zero-padded patch tensor for one batch element
    # pw_ref:  (patch_dim, D)  bf16 patch-embedding weight
    # add_ref: (N, D)          f32 additive table = [cls+pos0 ; patch_b+pos1:]
    N = xp_ref.shape[0]
    D = pw_ref.shape[1]
    scale = dim_head ** -0.5

    # ---- patch embedding + cls token + positional embedding (fused) ----
    x = jnp.dot(xp_ref[...].astype(jnp.bfloat16), pw_ref[...],
                preferred_element_type=jnp.float32) + add_ref[...]       # (N, D) f32

    # ---- transformer layers (weights depth-stacked, static unrolled loop) ----
    for d in range(depth):
        # -------- PreNorm + Attention + residual --------
        xn = _layernorm(x, ln1g_ref[d], ln1b_ref[d])
        xb = jnp.broadcast_to(xn.astype(jnp.bfloat16), (heads, N, D))     # (h, N, D)
        q = jnp.einsum('hnd,hde->hne', xb, wq_ref[d],
                       preferred_element_type=jnp.float32)                # (h, N, dh)
        k = jnp.einsum('hnd,hde->hne', xb, wk_ref[d],
                       preferred_element_type=jnp.float32)
        v = jnp.einsum('hnd,hde->hne', xb, wv_ref[d],
                       preferred_element_type=jnp.float32)

        dots = jnp.einsum('hnd,hmd->hnm', q.astype(jnp.bfloat16),
                          k.astype(jnp.bfloat16),
                          preferred_element_type=jnp.float32) * scale     # (h, N, N)
        dots = dots - jnp.max(dots, axis=-1, keepdims=True)
        p = jnp.exp(dots)
        p = p * pl.reciprocal(jnp.sum(p, axis=-1, keepdims=True), approx=True)

        oh = jnp.einsum('hnm,hmd->hnd', p.astype(jnp.bfloat16),
                        v.astype(jnp.bfloat16),
                        preferred_element_type=jnp.float32)               # (h, N, dh)
        # concat over heads then @ Wo  ==  sum_h oh[h] @ Wo[h]
        proj = jnp.einsum('hnd,hdD->hnD', oh.astype(jnp.bfloat16), wo_ref[d],
                          preferred_element_type=jnp.float32)             # (h, N, D)
        x = x + jnp.sum(proj, axis=0) + bo_ref[d]

        # -------- PreNorm + FeedForward + residual --------
        xn2 = _layernorm(x, ln2g_ref[d], ln2b_ref[d])
        h1 = jnp.dot(xn2.astype(jnp.bfloat16), w1_ref[d],
                     preferred_element_type=jnp.float32) + b1_ref[d]      # (N, mlp)
        h1 = _gelu_exact(h1)
        ff = jnp.dot(h1.astype(jnp.bfloat16), w2_ref[d],
                     preferred_element_type=jnp.float32) + b2_ref[d]      # (N, D)
        x = x + ff

    # ---- pool='cls' + mlp_head (LayerNorm + Linear) ----
    cls_tok = x[0:1, :]                                                   # (1, D)
    cn = _layernorm(cls_tok, hg_ref[...], hb_ref[...])
    logits = jnp.dot(cn.astype(jnp.bfloat16), hw_ref[...],
                     preferred_element_type=jnp.float32) + hbias_ref[...] # (1, C)
    o_ref[0] = logits


# --------------------------------- wrapper -----------------------------------

def vit_forward(img, params, *, patch_size, depth, heads, dim_head):
    # img: (B, C, H, W) float32 (NCHW, same as PyTorch)
    B, C, H, W = img.shape
    p = patch_size
    hh, ww = H // p, W // p
    Np = hh * ww
    Pd = C * p * p
    D = params["patch_w"].shape[1]
    mlp = params["w1"].shape[2]
    nclass = params["head_w"].shape[1]
    N = Np + 1

    # Rearrange('b c (h p1) (w p2) -> b (h w) (p1 p2 c)')  (pure layout glue)
    xp = img.reshape(B, C, hh, p, ww, p).transpose(0, 2, 4, 3, 5, 1)
    xp = xp.reshape(B, Np, Pd)
    # leading zero row -> cls slot; its embedding comes purely from add_tab
    xp = jnp.pad(xp, ((0, 0), (1, 0), (0, 0)))                      # (B, N, Pd)

    # additive row table: row0 = cls_token + pos[0]; rows i>=1 = patch_b + pos[i]
    add_tab = jnp.concatenate(
        [params["cls_token"] + params["pos_embedding"][0:1],
         params["pos_embedding"][1:] + params["patch_b"]], axis=0)  # (N, D) f32

    kernel = functools.partial(vit_kernel, depth=depth, heads=heads,
                               dim_head=dim_head)

    def full(shape):
        return pl.BlockSpec(shape, lambda b, _s=len(shape): (0,) * _s)

    out = pl.pallas_call(
        kernel,
        out_shape=jax.ShapeDtypeStruct((B, 1, nclass), jnp.float32),
        grid=(B,),
        in_specs=[
            pl.BlockSpec((pl.Squeezed(), N, Pd), lambda b: (b, 0, 0)),  # patches
            full((Pd, D)),                                              # patch_w (bf16)
            full((N, D)),                                               # add_tab
            full((depth, 1, D)), full((depth, 1, D)),                   # ln1 g/b
            full((depth, heads, D, dim_head)),                          # wq (bf16)
            full((depth, heads, D, dim_head)),                          # wk (bf16)
            full((depth, heads, D, dim_head)),                          # wv (bf16)
            full((depth, heads, dim_head, D)),                          # wo (bf16)
            full((depth, 1, D)),                                        # bo
            full((depth, 1, D)), full((depth, 1, D)),                   # ln2 g/b
            full((depth, D, mlp)), full((depth, 1, mlp)),               # w1 (bf16), b1
            full((depth, mlp, D)), full((depth, 1, D)),                 # w2 (bf16), b2
            full((1, D)), full((1, D)),                                 # head ln g/b
            full((D, nclass)), full((1, nclass)),                       # head w (bf16), b
        ],
        out_specs=pl.BlockSpec((1, 1, nclass), lambda b: (b, 0, 0)),
        compiler_params=pltpu.CompilerParams(
            dimension_semantics=("parallel",)),
    )(xp, params["patch_w"], add_tab,
      params["ln1_g"], params["ln1_b"],
      params["wq"], params["wk"], params["wv"], params["wo"], params["bo"],
      params["ln2_g"], params["ln2_b"],
      params["w1"], params["b1"], params["w2"], params["b2"],
      params["head_ln_g"], params["head_ln_b"],
      params["head_w"], params["head_b"])

    return out[:, 0, :]


# ------------------------------ parameter init -------------------------------

def init_params(key, *, image_size, patch_size, num_classes, dim, depth, heads,
                mlp_dim, channels, dim_head):
    num_patches = (image_size // patch_size) ** 2
    patch_dim = channels * patch_size * patch_size
    keys = jax.random.split(key, 10)

    def w(k, shape, scale=0.02):
        # matmul weights stored directly in bf16 (MXU-native dtype)
        return (scale * jax.random.normal(k, shape)).astype(jnp.bfloat16)

    return {
        "patch_w": w(keys[0], (patch_dim, dim)),
        "patch_b": jnp.zeros((1, dim), jnp.float32),
        "cls_token": jax.random.normal(keys[1], (1, dim), jnp.float32),
        "pos_embedding": jax.random.normal(keys[2], (num_patches + 1, dim),
                                           jnp.float32),
        # per-layer weights stacked along a leading depth axis; q/k/v split and
        # stored per-head as (depth, heads, dim, dim_head) so attention is
        # head-batched with no in-kernel lane slicing or transposes.
        "ln1_g": jnp.ones((depth, 1, dim), jnp.float32),
        "ln1_b": jnp.zeros((depth, 1, dim), jnp.float32),
        "wq": w(keys[3], (depth, heads, dim, dim_head)),
        "wk": w(keys[4], (depth, heads, dim, dim_head)),
        "wv": w(keys[5], (depth, heads, dim, dim_head)),
        "wo": w(keys[6], (depth, heads, dim_head, dim)),
        "bo": jnp.zeros((depth, 1, dim), jnp.float32),
        "ln2_g": jnp.ones((depth, 1, dim), jnp.float32),
        "ln2_b": jnp.zeros((depth, 1, dim), jnp.float32),
        "w1": w(keys[7], (depth, dim, mlp_dim)),
        "b1": jnp.zeros((depth, 1, mlp_dim), jnp.float32),
        "w2": w(keys[8], (depth, mlp_dim, dim)),
        "b2": jnp.zeros((depth, 1, dim), jnp.float32),
        "head_ln_g": jnp.ones((1, dim), jnp.float32),
        "head_ln_b": jnp.zeros((1, dim), jnp.float32),
        "head_w": w(keys[9], (dim, num_classes)),
        "head_b": jnp.zeros((1, num_classes), jnp.float32),
    }


# ----------------------------------- main ------------------------------------

if __name__ == "__main__":
    key = jax.random.PRNGKey(0)
    k_img, k_par = jax.random.split(key)

    # small ViT config: 16x16 image, 4x4 patches -> 16 patches (+cls => N=17)
    cfg = dict(image_size=16, patch_size=4, num_classes=7, dim=32, depth=2,
               heads=4, mlp_dim=64, channels=3, dim_head=8)

    B = 2
    img = jax.random.normal(k_img, (B, cfg["channels"], cfg["image_size"],
                                    cfg["image_size"]), jnp.float32)
    params = init_params(k_par, **cfg)

    fwd = jax.jit(functools.partial(vit_forward,
                                    patch_size=cfg["patch_size"],
                                    depth=cfg["depth"],
                                    heads=cfg["heads"],
                                    dim_head=cfg["dim_head"]))
    out = fwd(img, params)
    out = jax.block_until_ready(out)
    assert out.shape == (B, cfg["num_classes"]), out.shape
    assert jnp.all(jnp.isfinite(out))
    print("KERNEL_OK")
</pallas_src>

<mosaic_0001>
module attributes {stable_mosaic.version = 11 : i64} {
  func.func @vit_kernel(%arg0: i32, %arg1: memref<1x17x48xf32, #tpu.memory_space<vmem>>, %arg2: memref<48x32xbf16, #tpu.memory_space<vmem>>, %arg3: memref<17x32xf32, #tpu.memory_space<vmem>>, %arg4: memref<2x1x32xf32, #tpu.memory_space<vmem>>, %arg5: memref<2x1x32xf32, #tpu.memory_space<vmem>>, %arg6: memref<2x4x32x8xbf16, #tpu.memory_space<vmem>>, %arg7: memref<2x4x32x8xbf16, #tpu.memory_space<vmem>>, %arg8: memref<2x4x32x8xbf16, #tpu.memory_space<vmem>>, %arg9: memref<2x4x8x32xbf16, #tpu.memory_space<vmem>>, %arg10: memref<2x1x32xf32, #tpu.memory_space<vmem>>, %arg11: memref<2x1x32xf32, #tpu.memory_space<vmem>>, %arg12: memref<2x1x32xf32, #tpu.memory_space<vmem>>, %arg13: memref<2x32x64xbf16, #tpu.memory_space<vmem>>, %arg14: memref<2x1x64xf32, #tpu.memory_space<vmem>>, %arg15: memref<2x64x32xbf16, #tpu.memory_space<vmem>>, %arg16: memref<2x1x32xf32, #tpu.memory_space<vmem>>, %arg17: memref<1x32xf32, #tpu.memory_space<vmem>>, %arg18: memref<1x32xf32, #tpu.memory_space<vmem>>, %arg19: memref<32x7xbf16, #tpu.memory_space<vmem>>, %arg20: memref<1x7xf32, #tpu.memory_space<vmem>>, %arg21: memref<1x1x7xf32, #tpu.memory_space<vmem>>) attributes {dimension_semantics = [#tpu.dimension_semantics<parallel>], iteration_bounds = array<i64: 2>, scalar_prefetch = 0 : i64, scratch_operands = 0 : i64, tpu.core_type = #tpu.core_type<tc>, window_params = [{transform_indices = @transform_0, window_bounds = array<i64: 1, 17, 48>}, {pipeline_mode = #tpu.pipeline_mode<synchronous>, transform_indices = @transform_1, window_bounds = array<i64: 48, 32>}, {pipeline_mode = #tpu.pipeline_mode<synchronous>, transform_indices = @transform_2, window_bounds = array<i64: 17, 32>}, {pipeline_mode = #tpu.pipeline_mode<synchronous>, transform_indices = @transform_3, window_bounds = array<i64: 2, 1, 32>}, {pipeline_mode = #tpu.pipeline_mode<synchronous>, transform_indices = @transform_4, window_bounds = array<i64: 2, 1, 32>}, {pipeline_mode = #tpu.pipeline_mode<synchronous>, transform_indices = @transform_5, window_bounds = array<i64: 2, 4, 32, 8>}, {pipeline_mode = #tpu.pipeline_mode<synchronous>, transform_indices = @transform_6, window_bounds = array<i64: 2, 4, 32, 8>}, {pipeline_mode = #tpu.pipeline_mode<synchronous>, transform_indices = @transform_7, window_bounds = array<i64: 2, 4, 32, 8>}, {pipeline_mode = #tpu.pipeline_mode<synchronous>, transform_indices = @transform_8, window_bounds = array<i64: 2, 4, 8, 32>}, {pipeline_mode = #tpu.pipeline_mode<synchronous>, transform_indices = @transform_9, window_bounds = array<i64: 2, 1, 32>}, {pipeline_mode = #tpu.pipeline_mode<synchronous>, transform_indices = @transform_10, window_bounds = array<i64: 2, 1, 32>}, {pipeline_mode = #tpu.pipeline_mode<synchronous>, transform_indices = @transform_11, window_bounds = array<i64: 2, 1, 32>}, {pipeline_mode = #tpu.pipeline_mode<synchronous>, transform_indices = @transform_12, window_bounds = array<i64: 2, 32, 64>}, {pipeline_mode = #tpu.pipeline_mode<synchronous>, transform_indices = @transform_13, window_bounds = array<i64: 2, 1, 64>}, {pipeline_mode = #tpu.pipeline_mode<synchronous>, transform_indices = @transform_14, window_bounds = array<i64: 2, 64, 32>}, {pipeline_mode = #tpu.pipeline_mode<synchronous>, transform_indices = @transform_15, window_bounds = array<i64: 2, 1, 32>}, {pipeline_mode = #tpu.pipeline_mode<synchronous>, transform_indices = @transform_16, window_bounds = array<i64: 1, 32>}, {pipeline_mode = #tpu.pipeline_mode<synchronous>, transform_indices = @transform_17, window_bounds = array<i64: 1, 32>}, {pipeline_mode = #tpu.pipeline_mode<synchronous>, transform_indices = @transform_18, window_bounds = array<i64: 32, 7>}, {pipeline_mode = #tpu.pipeline_mode<synchronous>, transform_indices = @transform_19, window_bounds = array<i64: 1, 7>}, {transform_indices = @transform_20, window_bounds = array<i64: 1, 1, 7>}]} {
    %c0 = arith.constant 0 : index
    %c0_0 = arith.constant 0 : index
    %c0_1 = arith.constant 0 : index
    %0 = vector.load %arg1[%c0, %c0_0, %c0_1] : memref<1x17x48xf32, #tpu.memory_space<vmem>>, vector<1x17x48xf32>
    %1 = vector.shape_cast %0 : vector<1x17x48xf32> to vector<17x48xf32>
    %2 = arith.truncf %1 : vector<17x48xf32> to vector<17x48xbf16>
    %c0_2 = arith.constant 0 : index
    %c0_3 = arith.constant 0 : index
    %3 = vector.load %arg2[%c0_2, %c0_3] : memref<48x32xbf16, #tpu.memory_space<vmem>>, vector<48x32xbf16>
    %cst = arith.constant dense<0.000000e+00> : vector<17x32xf32>
    %4 = tpu.matmul %2, %3, %cst {dimension_numbers = #tpu.dot_dimension_numbers<[1], [0], [0], [1], [0, 0, 1, 1], [], []>} : vector<17x48xbf16>, vector<48x32xbf16>, vector<17x32xf32> -> vector<17x32xf32>
    %c0_4 = arith.constant 0 : index
    %c0_5 = arith.constant 0 : index
    %5 = vector.load %arg3[%c0_4, %c0_5] : memref<17x32xf32, #tpu.memory_space<vmem>>, vector<17x32xf32>
    %6 = arith.addf %4, %5 : vector<17x32xf32>
    %c0_6 = arith.constant 0 : index
    %c0_7 = arith.constant 0 : index
    %c0_8 = arith.constant 0 : index
    %7 = vector.load %arg4[%c0_6, %c0_7, %c0_8] : memref<2x1x32xf32, #tpu.memory_space<vmem>>, vector<1x1x32xf32>
    %8 = vector.shape_cast %7 : vector<1x1x32xf32> to vector<1x32xf32>
    %c0_9 = arith.constant 0 : index
    %c0_10 = arith.constant 0 : index
    %c0_11 = arith.constant 0 : index
    %9 = vector.load %arg5[%c0_9, %c0_10, %c0_11] : memref<2x1x32xf32, #tpu.memory_space<vmem>>, vector<1x1x32xf32>
    %10 = vector.shape_cast %9 : vector<1x1x32xf32> to vector<1x32xf32>
    %cst_12 = arith.constant dense<0.000000e+00> : vector<17xf32>
    %11 = vector.multi_reduction <add>, %6, %cst_12 [1] : vector<17x32xf32> to vector<17xf32>
    %12 = vector.shape_cast %11 : vector<17xf32> to vector<17x1xf32>
    %cst_13 = arith.constant 3.200000e+01 : f32
    %13 = vector.broadcast %cst_13 : f32 to vector<17x1xf32>
    %14 = arith.divf %12, %13 : vector<17x1xf32>
    %15 = vector.broadcast %14 : vector<17x1xf32> to vector<17x32xf32>
    %16 = arith.subf %6, %15 : vector<17x32xf32>
    %17 = arith.mulf %16, %16 : vector<17x32xf32>
    %cst_14 = arith.constant dense<0.000000e+00> : vector<17xf32>
    %18 = vector.multi_reduction <add>, %17, %cst_14 [1] : vector<17x32xf32> to vector<17xf32>
    %19 = vector.shape_cast %18 : vector<17xf32> to vector<17x1xf32>
    %cst_15 = arith.constant 3.200000e+01 : f32
    %20 = vector.broadcast %cst_15 : f32 to vector<17x1xf32>
    %21 = arith.divf %19, %20 : vector<17x1xf32>
    %22 = vector.broadcast %14 : vector<17x1xf32> to vector<17x32xf32>
    %23 = arith.subf %6, %22 : vector<17x32xf32>
    %cst_16 = arith.constant 9.99999974E-6 : f32
    %24 = vector.broadcast %cst_16 : f32 to vector<17x1xf32>
    %25 = arith.addf %21, %24 : vector<17x1xf32>
    %26 = math.rsqrt %25 : vector<17x1xf32>
    %27 = vector.broadcast %26 : vector<17x1xf32> to vector<17x32xf32>
    %28 = arith.mulf %23, %27 : vector<17x32xf32>
    %29 = vector.broadcast %8 : vector<1x32xf32> to vector<17x32xf32>
    %30 = arith.mulf %28, %29 : vector<17x32xf32>
    %31 = vector.broadcast %10 : vector<1x32xf32> to vector<17x32xf32>
    %32 = arith.addf %30, %31 : vector<17x32xf32>
    %33 = arith.truncf %32 : vector<17x32xf32> to vector<17x32xbf16>
    %34 = vector.shape_cast %33 : vector<17x32xbf16> to vector<1x17x32xbf16>
    %35 = vector.broadcast %34 : vector<1x17x32xbf16> to vector<4x17x32xbf16>
    %c0_17 = arith.constant 0 : index
    %c0_18 = arith.constant 0 : index
    %c0_19 = arith.constant 0 : index
    %c0_20 = arith.constant 0 : index
    %36 = vector.load %arg6[%c0_17, %c0_18, %c0_19, %c0_20] : memref<2x4x32x8xbf16, #tpu.memory_space<vmem>>, vector<1x4x32x8xbf16>
    %37 = vector.shape_cast %36 : vector<1x4x32x8xbf16> to vector<4x32x8xbf16>
    "tpu.trace_start"() <{level = 10 : i32, message = "hnd,hde->hne"}> : () -> ()
    %cst_21 = arith.constant dense<0.000000e+00> : vector<4x17x8xf32>
    %38 = tpu.matmul %35, %37, %cst_21 {dimension_numbers = #tpu.dot_dimension_numbers<[2], [1], [1], [2], [0, 0, 0, 1, 1, 2], [0], [0]>} : vector<4x17x32xbf16>, vector<4x32x8xbf16>, vector<4x17x8xf32> -> vector<4x17x8xf32>
    "tpu.trace_stop"() : () -> ()
    %c0_22 = arith.constant 0 : index
    %c0_23 = arith.constant 0 : index
    %c0_24 = arith.constant 0 : index
    %c0_25 = arith.constant 0 : index
    %39 = vector.load %arg7[%c0_22, %c0_23, %c0_24, %c0_25] : memref<2x4x32x8xbf16, #tpu.memory_space<vmem>>, vector<1x4x32x8xbf16>
    %40 = vector.shape_cast %39 : vector<1x4x32x8xbf16> to vector<4x32x8xbf16>
    "tpu.trace_start"() <{level = 10 : i32, message = "hnd,hde->hne"}> : () -> ()
    %cst_26 = arith.constant dense<0.000000e+00> : vector<4x17x8xf32>
    %41 = tpu.matmul %35, %40, %cst_26 {dimension_numbers = #tpu.dot_dimension_numbers<[2], [1], [1], [2], [0, 0, 0, 1, 1, 2], [0], [0]>} : vector<4x17x32xbf16>, vector<4x32x8xbf16>, vector<4x17x8xf32> -> vector<4x17x8xf32>
    "tpu.trace_stop"() : () -> ()
    %c0_27 = arith.constant 0 : index
    %c0_28 = arith.constant 0 : index
    %c0_29 = arith.constant 0 : index
    %c0_30 = arith.constant 0 : index
    %42 = vector.load %arg8[%c0_27, %c0_28, %c0_29, %c0_30] : memref<2x4x32x8xbf16, #tpu.memory_space<vmem>>, vector<1x4x32x8xbf16>
    %43 = vector.shape_cast %42 : vector<1x4x32x8xbf16> to vector<4x32x8xbf16>
    "tpu.trace_start"() <{level = 10 : i32, message = "hnd,hde->hne"}> : () -> ()
    %cst_31 = arith.constant dense<0.000000e+00> : vector<4x17x8xf32>
    %44 = tpu.matmul %35, %43, %cst_31 {dimension_numbers = #tpu.dot_dimension_numbers<[2], [1], [1], [2], [0, 0, 0, 1, 1, 2], [0], [0]>} : vector<4x17x32xbf16>, vector<4x32x8xbf16>, vector<4x17x8xf32> -> vector<4x17x8xf32>
    "tpu.trace_stop"() : () -> ()
    %45 = arith.truncf %38 : vector<4x17x8xf32> to vector<4x17x8xbf16>
    %46 = arith.truncf %41 : vector<4x17x8xf32> to vector<4x17x8xbf16>
    "tpu.trace_start"() <{level = 10 : i32, message = "hnd,hmd->hnm"}> : () -> ()
    %cst_32 = arith.constant dense<0.000000e+00> : vector<4x17x17xf32>
    %47 = tpu.matmul %45, %46, %cst_32 {dimension_numbers = #tpu.dot_dimension_numbers<[2], [2], [1], [1], [0, 0, 0, 1, 1, 1], [0], [0]>} : vector<4x17x8xbf16>, vector<4x17x8xbf16>, vector<4x17x17xf32> -> vector<4x17x17xf32>
    "tpu.trace_stop"() : () -> ()
    %cst_33 = arith.constant 0.353553385 : f32
    %48 = vector.broadcast %cst_33 : f32 to vector<4x17x17xf32>
    %49 = arith.mulf %47, %48 : vector<4x17x17xf32>
    %cst_34 = arith.constant dense<0xFF800000> : vector<4x17xf32>
    %50 = vector.multi_reduction <maximumf>, %49, %cst_34 [2] : vector<4x17x17xf32> to vector<4x17xf32>
    %51 = vector.shape_cast %50 : vector<4x17xf32> to vector<4x17x1xf32>
    %52 = vector.broadcast %51 : vector<4x17x1xf32> to vector<4x17x17xf32>
    %53 = arith.subf %49, %52 : vector<4x17x17xf32>
    %54 = math.exp %53 : vector<4x17x17xf32>
    %cst_35 = arith.constant dense<0.000000e+00> : vector<4x17xf32>
    %55 = vector.multi_reduction <add>, %54, %cst_35 [2] : vector<4x17x17xf32> to vector<4x17xf32>
    %56 = vector.shape_cast %55 : vector<4x17xf32> to vector<4x17x1xf32>
    %57 = tpu.reciprocal %56 {approx = true} : vector<4x17x1xf32> -> vector<4x17x1xf32>
    %58 = vector.broadcast %57 : vector<4x17x1xf32> to vector<4x17x17xf32>
    %59 = arith.mulf %54, %58 : vector<4x17x17xf32>
    %60 = arith.truncf %59 : vector<4x17x17xf32> to vector<4x17x17xbf16>
    %61 = arith.truncf %44 : vector<4x17x8xf32> to vector<4x17x8xbf16>
    "tpu.trace_start"() <{level = 10 : i32, message = "hnm,hmd->hnd"}> : () -> ()
    %cst_36 = arith.constant dense<0.000000e+00> : vector<4x17x8xf32>
    %62 = tpu.matmul %60, %61, %cst_36 {dimension_numbers = #tpu.dot_dimension_numbers<[2], [1], [1], [2], [0, 0, 0, 1, 1, 2], [0], [0]>} : vector<4x17x17xbf16>, vector<4x17x8xbf16>, vector<4x17x8xf32> -> vector<4x17x8xf32>
    "tpu.trace_stop"() : () -> ()
    %63 = arith.truncf %62 : vector<4x17x8xf32> to vector<4x17x8xbf16>
    %c0_37 = arith.constant 0 : index
    %c0_38 = arith.constant 0 : index
    %c0_39 = arith.constant 0 : index
    %c0_40 = arith.constant 0 : index
    %64 = vector.load %arg9[%c0_37, %c0_38, %c0_39, %c0_40] : memref<2x4x8x32xbf16, #tpu.memory_space<vmem>>, vector<1x4x8x32xbf16>
    %65 = vector.shape_cast %64 : vector<1x4x8x32xbf16> to vector<4x8x32xbf16>
    "tpu.trace_start"() <{level = 10 : i32, message = "hnd,hdD->hnD"}> : () -> ()
    %cst_41 = arith.constant dense<0.000000e+00> : vector<4x17x32xf32>
    %66 = tpu.matmul %63, %65, %cst_41 {dimension_numbers = #tpu.dot_dimension_numbers<[2], [1], [1], [2], [0, 0, 0, 1, 1, 2], [0], [0]>} : vector<4x17x8xbf16>, vector<4x8x32xbf16>, vector<4x17x32xf32> -> vector<4x17x32xf32>
    "tpu.trace_stop"() : () -> ()
    %cst_42 = arith.constant dense<0.000000e+00> : vector<17x32xf32>
    %67 = vector.multi_reduction <add>, %66, %cst_42 [0] : vector<4x17x32xf32> to vector<17x32xf32>
    %68 = arith.addf %6, %67 : vector<17x32xf32>
    %c0_43 = arith.constant 0 : index
    %c0_44 = arith.constant 0 : index
    %c0_45 = arith.constant 0 : index
    %69 = vector.load %arg10[%c0_43, %c0_44, %c0_45] : memref<2x1x32xf32, #tpu.memory_space<vmem>>, vector<1x1x32xf32>
    %70 = vector.shape_cast %69 : vector<1x1x32xf32> to vector<1x32xf32>
    %71 = vector.broadcast %70 : vector<1x32xf32> to vector<17x32xf32>
    %72 = arith.addf %68, %71 : vector<17x32xf32>
    %c0_46 = arith.constant 0 : index
    %c0_47 = arith.constant 0 : index
    %c0_48 = arith.constant 0 : index
    %73 = vector.load %arg11[%c0_46, %c0_47, %c0_48] : memref<2x1x32xf32, #tpu.memory_space<vmem>>, vector<1x1x32xf32>
    %74 = vector.shape_cast %73 : vector<1x1x32xf32> to vector<1x32xf32>
    %c0_49 = arith.constant 0 : index
    %c0_50 = arith.constant 0 : index
    %c0_51 = arith.constant 0 : index
    %75 = vector.load %arg12[%c0_49, %c0_50, %c0_51] : memref<2x1x32xf32, #tpu.memory_space<vmem>>, vector<1x1x32xf32>
    %76 = vector.shape_cast %75 : vector<1x1x32xf32> to vector<1x32xf32>
    %cst_52 = arith.constant dense<0.000000e+00> : vector<17xf32>
    %77 = vector.multi_reduction <add>, %72, %cst_52 [1] : vector<17x32xf32> to vector<17xf32>
    %78 = vector.shape_cast %77 : vector<17xf32> to vector<17x1xf32>
    %cst_53 = arith.constant 3.200000e+01 : f32
    %79 = vector.broadcast %cst_53 : f32 to vector<17x1xf32>
    %80 = arith.divf %78, %79 : vector<17x1xf32>
    %81 = vector.broadcast %80 : vector<17x1xf32> to vector<17x32xf32>
    %82 = arith.subf %72, %81 : vector<17x32xf32>
    %83 = arith.mulf %82, %82 : vector<17x32xf32>
    %cst_54 = arith.constant dense<0.000000e+00> : vector<17xf32>
    %84 = vector.multi_reduction <add>, %83, %cst_54 [1] : vector<17x32xf32> to vector<17xf32>
    %85 = vector.shape_cast %84 : vector<17xf32> to vector<17x1xf32>
    %cst_55 = arith.constant 3.200000e+01 : f32
    %86 = vector.broadcast %cst_55 : f32 to vector<17x1xf32>
    %87 = arith.divf %85, %86 : vector<17x1xf32>
    %88 = vector.broadcast %80 : vector<17x1xf32> to vector<17x32xf32>
    %89 = arith.subf %72, %88 : vector<17x32xf32>
    %cst_56 = arith.constant 9.99999974E-6 : f32
    %90 = vector.broadcast %cst_56 : f32 to vector<17x1xf32>
    %91 = arith.addf %87, %90 : vector<17x1xf32>
    %92 = math.rsqrt %91 : vector<17x1xf32>
    %93 = vector.broadcast %92 : vector<17x1xf32> to vector<17x32xf32>
    %94 = arith.mulf %89, %93 : vector<17x32xf32>
    %95 = vector.broadcast %74 : vector<1x32xf32> to vector<17x32xf32>
    %96 = arith.mulf %94, %95 : vector<17x32xf32>
    %97 = vector.broadcast %76 : vector<1x32xf32> to vector<17x32xf32>
    %98 = arith.addf %96, %97 : vector<17x32xf32>
    %99 = arith.truncf %98 : vector<17x32xf32> to vector<17x32xbf16>
    %c0_57 = arith.constant 0 : index
    %c0_58 = arith.constant 0 : index
    %c0_59 = arith.constant 0 : index
    %100 = vector.load %arg13[%c0_57, %c0_58, %c0_59] : memref<2x32x64xbf16, #tpu.memory_space<vmem>>, vector<1x32x64xbf16>
    %101 = vector.shape_cast %100 : vector<1x32x64xbf16> to vector<32x64xbf16>
    %cst_60 = arith.constant dense<0.000000e+00> : vector<17x64xf32>
    %102 = tpu.matmul %99, %101, %cst_60 {dimension_numbers = #tpu.dot_dimension_numbers<[1], [0], [0], [1], [0, 0, 1, 1], [], []>} : vector<17x32xbf16>, vector<32x64xbf16>, vector<17x64xf32> -> vector<17x64xf32>
    %c0_61 = arith.constant 0 : index
    %c0_62 = arith.constant 0 : index
    %c0_63 = arith.constant 0 : index
    %103 = vector.load %arg14[%c0_61, %c0_62, %c0_63] : memref<2x1x64xf32, #tpu.memory_space<vmem>>, vector<1x1x64xf32>
    %104 = vector.shape_cast %103 : vector<1x1x64xf32> to vector<1x64xf32>
    %105 = vector.broadcast %104 : vector<1x64xf32> to vector<17x64xf32>
    %106 = arith.addf %102, %105 : vector<17x64xf32>
    %cst_64 = arith.constant 5.000000e-01 : f32
    %107 = vector.broadcast %cst_64 : f32 to vector<17x64xf32>
    %108 = arith.mulf %107, %106 : vector<17x64xf32>
    %cst_65 = arith.constant 0.707106769 : f32
    %109 = vector.broadcast %cst_65 : f32 to vector<17x64xf32>
    %110 = arith.mulf %106, %109 : vector<17x64xf32>
    %cst_66 = arith.constant -4.000000e+00 : f32
    %cst_67 = arith.constant 4.000000e+00 : f32
    %111 = vector.broadcast %cst_66 : f32 to vector<17x64xf32>
    %112 = arith.maximumf %111, %110 : vector<17x64xf32>
    %113 = vector.broadcast %cst_67 : f32 to vector<17x64xf32>
    %114 = arith.minimumf %113, %112 : vector<17x64xf32>
    %115 = arith.mulf %114, %114 : vector<17x64xf32>
    %cst_68 = arith.constant 2.29050653E-4 : f32
    %116 = vector.broadcast %cst_68 : f32 to vector<17x64xf32>
    %117 = arith.mulf %116, %115 : vector<17x64xf32>
    %cst_69 = arith.constant 0.00340829091 : f32
    %118 = vector.broadcast %cst_69 : f32 to vector<17x64xf32>
    %119 = arith.addf %117, %118 : vector<17x64xf32>
    %120 = arith.mulf %119, %115 : vector<17x64xf32>
    %cst_70 = arith.constant 0.0509556942 : f32
    %121 = vector.broadcast %cst_70 : f32 to vector<17x64xf32>
    %122 = arith.addf %120, %121 : vector<17x64xf32>
    %123 = arith.mulf %122, %115 : vector<17x64xf32>
    %cst_71 = arith.constant 0.185208321 : f32
    %124 = vector.broadcast %cst_71 : f32 to vector<17x64xf32>
    %125 = arith.addf %123, %124 : vector<17x64xf32>
    %126 = arith.mulf %125, %115 : vector<17x64xf32>
    %cst_72 = arith.constant 1.12837911 : f32
    %127 = vector.broadcast %cst_72 : f32 to vector<17x64xf32>
    %128 = arith.addf %126, %127 : vector<17x64xf32>
    %cst_73 = arith.constant -1.17916031E-7 : f32
    %129 = vector.broadcast %cst_73 : f32 to vector<17x64xf32>
    %130 = arith.mulf %129, %115 : vector<17x64xf32>
    %cst_74 = arith.constant 2.35479656E-5 : f32
    %131 = vector.broadcast %cst_74 : f32 to vector<17x64xf32>
    %132 = arith.addf %130, %131 : vector<17x64xf32>
    %133 = arith.mulf %132, %115 : vector<17x64xf32>
    %cst_75 = arith.constant 0.00101796258 : f32
    %134 = vector.broadcast %cst_75 : f32 to vector<17x64xf32>
    %135 = arith.addf %133, %134 : vector<17x64xf32>
    %136 = arith.mulf %135, %115 : vector<17x64xf32>
    %cst_76 = arith.constant 0.0140704699 : f32
    %137 = vector.broadcast %cst_76 : f32 to vector<17x64xf32>
    %138 = arith.addf %136, %137 : vector<17x64xf32>
    %139 = arith.mulf %138, %115 : vector<17x64xf32>
    %cst_77 = arith.constant 0.110985048 : f32
    %140 = vector.broadcast %cst_77 : f32 to vector<17x64xf32>
    %141 = arith.addf %139, %140 : vector<17x64xf32>
    %142 = arith.mulf %141, %115 : vector<17x64xf32>
    %cst_78 = arith.constant 0.497469246 : f32
    %143 = vector.broadcast %cst_78 : f32 to vector<17x64xf32>
    %144 = arith.addf %142, %143 : vector<17x64xf32>
    %145 = arith.mulf %144, %115 : vector<17x64xf32>
    %cst_79 = arith.constant 1.000000e+00 : f32
    %146 = vector.broadcast %cst_79 : f32 to vector<17x64xf32>
    %147 = arith.addf %145, %146 : vector<17x64xf32>
    %148 = arith.mulf %114, %128 : vector<17x64xf32>
    %149 = tpu.reciprocal %147 : vector<17x64xf32> -> vector<17x64xf32>
    %150 = arith.mulf %148, %149 : vector<17x64xf32>
    %cst_80 = arith.constant 1.000000e+00 : f32
    %151 = vector.broadcast %cst_80 : f32 to vector<17x64xf32>
    %152 = arith.addf %151, %150 : vector<17x64xf32>
    %153 = arith.mulf %108, %152 : vector<17x64xf32>
    %154 = arith.truncf %153 : vector<17x64xf32> to vector<17x64xbf16>
    %c0_81 = arith.constant 0 : index
    %c0_82 = arith.constant 0 : index
    %c0_83 = arith.constant 0 : index
    %155 = vector.load %arg15[%c0_81, %c0_82, %c0_83] : memref<2x64x32xbf16, #tpu.memory_space<vmem>>, vector<1x64x32xbf16>
    %156 = vector.shape_cast %155 : vector<1x64x32xbf16> to vector<64x32xbf16>
    %cst_84 = arith.constant dense<0.000000e+00> : vector<17x32xf32>
    %157 = tpu.matmul %154, %156, %cst_84 {dimension_numbers = #tpu.dot_dimension_numbers<[1], [0], [0], [1], [0, 0, 1, 1], [], []>} : vector<17x64xbf16>, vector<64x32xbf16>, vector<17x32xf32> -> vector<17x32xf32>
    %c0_85 = arith.constant 0 : index
    %c0_86 = arith.constant 0 : index
    %c0_87 = arith.constant 0 : index
    %158 = vector.load %arg16[%c0_85, %c0_86, %c0_87] : memref<2x1x32xf32, #tpu.memory_space<vmem>>, vector<1x1x32xf32>
    %159 = vector.shape_cast %158 : vector<1x1x32xf32> to vector<1x32xf32>
    %160 = vector.broadcast %159 : vector<1x32xf32> to vector<17x32xf32>
    %161 = arith.addf %157, %160 : vector<17x32xf32>
    %162 = arith.addf %72, %161 : vector<17x32xf32>
    %c1 = arith.constant 1 : index
    %c0_88 = arith.constant 0 : index
    %c0_89 = arith.constant 0 : index
    %163 = vector.load %arg4[%c1, %c0_88, %c0_89] : memref<2x1x32xf32, #tpu.memory_space<vmem>>, vector<1x1x32xf32>
    %164 = vector.shape_cast %163 : vector<1x1x32xf32> to vector<1x32xf32>
    %c1_90 = arith.constant 1 : index
    %c0_91 = arith.constant 0 : index
    %c0_92 = arith.constant 0 : index
    %165 = vector.load %arg5[%c1_90, %c0_91, %c0_92] : memref<2x1x32xf32, #tpu.memory_space<vmem>>, vector<1x1x32xf32>
    %166 = vector.shape_cast %165 : vector<1x1x32xf32> to vector<1x32xf32>
    %cst_93 = arith.constant dense<0.000000e+00> : vector<17xf32>
    %167 = vector.multi_reduction <add>, %162, %cst_93 [1] : vector<17x32xf32> to vector<17xf32>
    %168 = vector.shape_cast %167 : vector<17xf32> to vector<17x1xf32>
    %cst_94 = arith.constant 3.200000e+01 : f32
    %169 = vector.broadcast %cst_94 : f32 to vector<17x1xf32>
    %170 = arith.divf %168, %169 : vector<17x1xf32>
    %171 = vector.broadcast %170 : vector<17x1xf32> to vector<17x32xf32>
    %172 = arith.subf %162, %171 : vector<17x32xf32>
    %173 = arith.mulf %172, %172 : vector<17x32xf32>
    %cst_95 = arith.constant dense<0.000000e+00> : vector<17xf32>
    %174 = vector.multi_reduction <add>, %173, %cst_95 [1] : vector<17x32xf32> to vector<17xf32>
    %175 = vector.shape_cast %174 : vector<17xf32> to vector<17x1xf32>
    %cst_96 = arith.constant 3.200000e+01 : f32
    %176 = vector.broadcast %cst_96 : f32 to vector<17x1xf32>
    %177 = arith.divf %175, %176 : vector<17x1xf32>
    %178 = vector.broadcast %170 : vector<17x1xf32> to vector<17x32xf32>
    %179 = arith.subf %162, %178 : vector<17x32xf32>
    %cst_97 = arith.constant 9.99999974E-6 : f32
    %180 = vector.broadcast %cst_97 : f32 to vector<17x1xf32>
    %181 = arith.addf %177, %180 : vector<17x1xf32>
    %182 = math.rsqrt %181 : vector<17x1xf32>
    %183 = vector.broadcast %182 : vector<17x1xf32> to vector<17x32xf32>
    %184 = arith.mulf %179, %183 : vector<17x32xf32>
    %185 = vector.broadcast %164 : vector<1x32xf32> to vector<17x32xf32>
    %186 = arith.mulf %184, %185 : vector<17x32xf32>
    %187 = vector.broadcast %166 : vector<1x32xf32> to vector<17x32xf32>
    %188 = arith.addf %186, %187 : vector<17x32xf32>
    %189 = arith.truncf %188 : vector<17x32xf32> to vector<17x32xbf16>
    %190 = vector.shape_cast %189 : vector<17x32xbf16> to vector<1x17x32xbf16>
    %191 = vector.broadcast %190 : vector<1x17x32xbf16> to vector<4x17x32xbf16>
    %c1_98 = arith.constant 1 : index
    %c0_99 = arith.constant 0 : index
    %c0_100 = arith.constant 0 : index
    %c0_101 = arith.constant 0 : index
    %192 = vector.load %arg6[%c1_98, %c0_99, %c0_100, %c0_101] : memref<2x4x32x8xbf16, #tpu.memory_space<vmem>>, vector<1x4x32x8xbf16>
    %193 = vector.shape_cast %192 : vector<1x4x32x8xbf16> to vector<4x32x8xbf16>
    "tpu.trace_start"() <{level = 10 : i32, message = "hnd,hde->hne"}> : () -> ()
    %cst_102 = arith.constant dense<0.000000e+00> : vector<4x17x8xf32>
    %194 = tpu.matmul %191, %193, %cst_102 {dimension_numbers = #tpu.dot_dimension_numbers<[2], [1], [1], [2], [0, 0, 0, 1, 1, 2], [0], [0]>} : vector<4x17x32xbf16>, vector<4x32x8xbf16>, vector<4x17x8xf32> -> vector<4x17x8xf32>
    "tpu.trace_stop"() : () -> ()
    %c1_103 = arith.constant 1 : index
    %c0_104 = arith.constant 0 : index
    %c0_105 = arith.constant 0 : index
    %c0_106 = arith.constant 0 : index
    %195 = vector.load %arg7[%c1_103, %c0_104, %c0_105, %c0_106] : memref<2x4x32x8xbf16, #tpu.memory_space<vmem>>, vector<1x4x32x8xbf16>
    %196 = vector.shape_cast %195 : vector<1x4x32x8xbf16> to vector<4x32x8xbf16>
    "tpu.trace_start"() <{level = 10 : i32, message = "hnd,hde->hne"}> : () -> ()
    %cst_107 = arith.constant dense<0.000000e+00> : vector<4x17x8xf32>
    %197 = tpu.matmul %191, %196, %cst_107 {dimension_numbers = #tpu.dot_dimension_numbers<[2], [1], [1], [2], [0, 0, 0, 1, 1, 2], [0], [0]>} : vector<4x17x32xbf16>, vector<4x32x8xbf16>, vector<4x17x8xf32> -> vector<4x17x8xf32>
    "tpu.trace_stop"() : () -> ()
    %c1_108 = arith.constant 1 : index
    %c0_109 = arith.constant 0 : index
    %c0_110 = arith.constant 0 : index
    %c0_111 = arith.constant 0 : index
    %198 = vector.load %arg8[%c1_108, %c0_109, %c0_110, %c0_111] : memref<2x4x32x8xbf16, #tpu.memory_space<vmem>>, vector<1x4x32x8xbf16>
    %199 = vector.shape_cast %198 : vector<1x4x32x8xbf16> to vector<4x32x8xbf16>
    "tpu.trace_start"() <{level = 10 : i32, message = "hnd,hde->hne"}> : () -> ()
    %cst_112 = arith.constant dense<0.000000e+00> : vector<4x17x8xf32>
    %200 = tpu.matmul %191, %199, %cst_112 {dimension_numbers = #tpu.dot_dimension_numbers<[2], [1], [1], [2], [0, 0, 0, 1, 1, 2], [0], [0]>} : vector<4x17x32xbf16>, vector<4x32x8xbf16>, vector<4x17x8xf32> -> vector<4x17x8xf32>
    "tpu.trace_stop"() : () -> ()
    %201 = arith.truncf %194 : vector<4x17x8xf32> to vector<4x17x8xbf16>
    %202 = arith.truncf %197 : vector<4x17x8xf32> to vector<4x17x8xbf16>
    "tpu.trace_start"() <{level = 10 : i32, message = "hnd,hmd->hnm"}> : () -> ()
    %cst_113 = arith.constant dense<0.000000e+00> : vector<4x17x17xf32>
    %203 = tpu.matmul %201, %202, %cst_113 {dimension_numbers = #tpu.dot_dimension_numbers<[2], [2], [1], [1], [0, 0, 0, 1, 1, 1], [0], [0]>} : vector<4x17x8xbf16>, vector<4x17x8xbf16>, vector<4x17x17xf32> -> vector<4x17x17xf32>
    "tpu.trace_stop"() : () -> ()
    %cst_114 = arith.constant 0.353553385 : f32
    %204 = vector.broadcast %cst_114 : f32 to vector<4x17x17xf32>
    %205 = arith.mulf %203, %204 : vector<4x17x17xf32>
    %cst_115 = arith.constant dense<0xFF800000> : vector<4x17xf32>
    %206 = vector.multi_reduction <maximumf>, %205, %cst_115 [2] : vector<4x17x17xf32> to vector<4x17xf32>
    %207 = vector.shape_cast %206 : vector<4x17xf32> to vector<4x17x1xf32>
    %208 = vector.broadcast %207 : vector<4x17x1xf32> to vector<4x17x17xf32>
    %209 = arith.subf %205, %208 : vector<4x17x17xf32>
    %210 = math.exp %209 : vector<4x17x17xf32>
    %cst_116 = arith.constant dense<0.000000e+00> : vector<4x17xf32>
    %211 = vector.multi_reduction <add>, %210, %cst_116 [2] : vector<4x17x17xf32> to vector<4x17xf32>
    %212 = vector.shape_cast %211 : vector<4x17xf32> to vector<4x17x1xf32>
    %213 = tpu.reciprocal %212 {approx = true} : vector<4x17x1xf32> -> vector<4x17x1xf32>
    %214 = vector.broadcast %213 : vector<4x17x1xf32> to vector<4x17x17xf32>
    %215 = arith.mulf %210, %214 : vector<4x17x17xf32>
    %216 = arith.truncf %215 : vector<4x17x17xf32> to vector<4x17x17xbf16>
    %217 = arith.truncf %200 : vector<4x17x8xf32> to vector<4x17x8xbf16>
    "tpu.trace_start"() <{level = 10 : i32, message = "hnm,hmd->hnd"}> : () -> ()
    %cst_117 = arith.constant dense<0.000000e+00> : vector<4x17x8xf32>
    %218 = tpu.matmul %216, %217, %cst_117 {dimension_numbers = #tpu.dot_dimension_numbers<[2], [1], [1], [2], [0, 0, 0, 1, 1, 2], [0], [0]>} : vector<4x17x17xbf16>, vector<4x17x8xbf16>, vector<4x17x8xf32> -> vector<4x17x8xf32>
    "tpu.trace_stop"() : () -> ()
    %219 = arith.truncf %218 : vector<4x17x8xf32> to vector<4x17x8xbf16>
    %c1_118 = arith.constant 1 : index
    %c0_119 = arith.constant 0 : index
    %c0_120 = arith.constant 0 : index
    %c0_121 = arith.constant 0 : index
    %220 = vector.load %arg9[%c1_118, %c0_119, %c0_120, %c0_121] : memref<2x4x8x32xbf16, #tpu.memory_space<vmem>>, vector<1x4x8x32xbf16>
    %221 = vector.shape_cast %220 : vector<1x4x8x32xbf16> to vector<4x8x32xbf16>
    "tpu.trace_start"() <{level = 10 : i32, message = "hnd,hdD->hnD"}> : () -> ()
    %cst_122 = arith.constant dense<0.000000e+00> : vector<4x17x32xf32>
    %222 = tpu.matmul %219, %221, %cst_122 {dimension_numbers = #tpu.dot_dimension_numbers<[2], [1], [1], [2], [0, 0, 0, 1, 1, 2], [0], [0]>} : vector<4x17x8xbf16>, vector<4x8x32xbf16>, vector<4x17x32xf32> -> vector<4x17x32xf32>
    "tpu.trace_stop"() : () -> ()
    %cst_123 = arith.constant dense<0.000000e+00> : vector<17x32xf32>
    %223 = vector.multi_reduction <add>, %222, %cst_123 [0] : vector<4x17x32xf32> to vector<17x32xf32>
    %224 = arith.addf %162, %223 : vector<17x32xf32>
    %c1_124 = arith.constant 1 : index
    %c0_125 = arith.constant 0 : index
    %c0_126 = arith.constant 0 : index
    %225 = vector.load %arg10[%c1_124, %c0_125, %c0_126] : memref<2x1x32xf32, #tpu.memory_space<vmem>>, vector<1x1x32xf32>
    %226 = vector.shape_cast %225 : vector<1x1x32xf32> to vector<1x32xf32>
    %227 = vector.broadcast %226 : vector<1x32xf32> to vector<17x32xf32>
    %228 = arith.addf %224, %227 : vector<17x32xf32>
    %c1_127 = arith.constant 1 : index
    %c0_128 = arith.constant 0 : index
    %c0_129 = arith.constant 0 : index
    %229 = vector.load %arg11[%c1_127, %c0_128, %c0_129] : memref<2x1x32xf32, #tpu.memory_space<vmem>>, vector<1x1x32xf32>
    %230 = vector.shape_cast %229 : vector<1x1x32xf32> to vector<1x32xf32>
    %c1_130 = arith.constant 1 : index
    %c0_131 = arith.constant 0 : index
    %c0_132 = arith.constant 0 : index
    %231 = vector.load %arg12[%c1_130, %c0_131, %c0_132] : memref<2x1x32xf32, #tpu.memory_space<vmem>>, vector<1x1x32xf32>
    %232 = vector.shape_cast %231 : vector<1x1x32xf32> to vector<1x32xf32>
    %cst_133 = arith.constant dense<0.000000e+00> : vector<17xf32>
    %233 = vector.multi_reduction <add>, %228, %cst_133 [1] : vector<17x32xf32> to vector<17xf32>
    %234 = vector.shape_cast %233 : vector<17xf32> to vector<17x1xf32>
    %cst_134 = arith.constant 3.200000e+01 : f32
    %235 = vector.broadcast %cst_134 : f32 to vector<17x1xf32>
    %236 = arith.divf %234, %235 : vector<17x1xf32>
    %237 = vector.broadcast %236 : vector<17x1xf32> to vector<17x32xf32>
    %238 = arith.subf %228, %237 : vector<17x32xf32>
    %239 = arith.mulf %238, %238 : vector<17x32xf32>
    %cst_135 = arith.constant dense<0.000000e+00> : vector<17xf32>
    %240 = vector.multi_reduction <add>, %239, %cst_135 [1] : vector<17x32xf32> to vector<17xf32>
    %241 = vector.shape_cast %240 : vector<17xf32> to vector<17x1xf32>
    %cst_136 = arith.constant 3.200000e+01 : f32
    %242 = vector.broadcast %cst_136 : f32 to vector<17x1xf32>
    %243 = arith.divf %241, %242 : vector<17x1xf32>
    %244 = vector.broadcast %236 : vector<17x1xf32> to vector<17x32xf32>
    %245 = arith.subf %228, %244 : vector<17x32xf32>
    %cst_137 = arith.constant 9.99999974E-6 : f32
    %246 = vector.broadcast %cst_137 : f32 to vector<17x1xf32>
    %247 = arith.addf %243, %246 : vector<17x1xf32>
    %248 = math.rsqrt %247 : vector<17x1xf32>
    %249 = vector.broadcast %248 : vector<17x1xf32> to vector<17x32xf32>
    %250 = arith.mulf %245, %249 : vector<17x32xf32>
    %251 = vector.broadcast %230 : vector<1x32xf32> to vector<17x32xf32>
    %252 = arith.mulf %250, %251 : vector<17x32xf32>
    %253 = vector.broadcast %232 : vector<1x32xf32> to vector<17x32xf32>
    %254 = arith.addf %252, %253 : vector<17x32xf32>
    %255 = arith.truncf %254 : vector<17x32xf32> to vector<17x32xbf16>
    %c1_138 = arith.constant 1 : index
    %c0_139 = arith.constant 0 : index
    %c0_140 = arith.constant 0 : index
    %256 = vector.load %arg13[%c1_138, %c0_139, %c0_140] : memref<2x32x64xbf16, #tpu.memory_space<vmem>>, vector<1x32x64xbf16>
    %257 = vector.shape_cast %256 : vector<1x32x64xbf16> to vector<32x64xbf16>
    %cst_141 = arith.constant dense<0.000000e+00> : vector<17x64xf32>
    %258 = tpu.matmul %255, %257, %cst_141 {dimension_numbers = #tpu.dot_dimension_numbers<[1], [0], [0], [1], [0, 0, 1, 1], [], []>} : vector<17x32xbf16>, vector<32x64xbf16>, vector<17x64xf32> -> vector<17x64xf32>
    %c1_142 = arith.constant 1 : index
    %c0_143 = arith.constant 0 : index
    %c0_144 = arith.constant 0 : index
    %259 = vector.load %arg14[%c1_142, %c0_143, %c0_144] : memref<2x1x64xf32, #tpu.memory_space<vmem>>, vector<1x1x64xf32>
    %260 = vector.shape_cast %259 : vector<1x1x64xf32> to vector<1x64xf32>
    %261 = vector.broadcast %260 : vector<1x64xf32> to vector<17x64xf32>
    %262 = arith.addf %258, %261 : vector<17x64xf32>
    %cst_145 = arith.constant 5.000000e-01 : f32
    %263 = vector.broadcast %cst_145 : f32 to vector<17x64xf32>
    %264 = arith.mulf %263, %262 : vector<17x64xf32>
    %cst_146 = arith.constant 0.707106769 : f32
    %265 = vector.broadcast %cst_146 : f32 to vector<17x64xf32>
    %266 = arith.mulf %262, %265 : vector<17x64xf32>
    %cst_147 = arith.constant -4.000000e+00 : f32
    %cst_148 = arith.constant 4.000000e+00 : f32
    %267 = vector.broadcast %cst_147 : f32 to vector<17x64xf32>
    %268 = arith.maximumf %267, %266 : vector<17x64xf32>
    %269 = vector.broadcast %cst_148 : f32 to vector<17x64xf32>
    %270 = arith.minimumf %269, %268 : vector<17x64xf32>
    %271 = arith.mulf %270, %270 : vector<17x64xf32>
    %cst_149 = arith.constant 2.29050653E-4 : f32
    %272 = vector.broadcast %cst_149 : f32 to vector<17x64xf32>
    %273 = arith.mulf %272, %271 : vector<17x64xf32>
    %cst_150 = arith.constant 0.00340829091 : f32
    %274 = vector.broadcast %cst_150 : f32 to vector<17x64xf32>
    %275 = arith.addf %273, %274 : vector<17x64xf32>
    %276 = arith.mulf %275, %271 : vector<17x64xf32>
    %cst_151 = arith.constant 0.0509556942 : f32
    %277 = vector.broadcast %cst_151 : f32 to vector<17x64xf32>
    %278 = arith.addf %276, %277 : vector<17x64xf32>
    %279 = arith.mulf %278, %271 : vector<17x64xf32>
    %cst_152 = arith.constant 0.185208321 : f32
    %280 = vector.broadcast %cst_152 : f32 to vector<17x64xf32>
    %281 = arith.addf %279, %280 : vector<17x64xf32>
    %282 = arith.mulf %281, %271 : vector<17x64xf32>
    %cst_153 = arith.constant 1.12837911 : f32
    %283 = vector.broadcast %cst_153 : f32 to vector<17x64xf32>
    %284 = arith.addf %282, %283 : vector<17x64xf32>
    %cst_154 = arith.constant -1.17916031E-7 : f32
    %285 = vector.broadcast %cst_154 : f32 to vector<17x64xf32>
    %286 = arith.mulf %285, %271 : vector<17x64xf32>
    %cst_155 = arith.constant 2.35479656E-5 : f32
    %287 = vector.broadcast %cst_155 : f32 to vector<17x64xf32>
    %288 = arith.addf %286, %287 : vector<17x64xf32>
    %289 = arith.mulf %288, %271 : vector<17x64xf32>
    %cst_156 = arith.constant 0.00101796258 : f32
    %290 = vector.broadcast %cst_156 : f32 to vector<17x64xf32>
    %291 = arith.addf %289, %290 : vector<17x64xf32>
    %292 = arith.mulf %291, %271 : vector<17x64xf32>
    %cst_157 = arith.constant 0.0140704699 : f32
    %293 = vector.broadcast %cst_157 : f32 to vector<17x64xf32>
    %294 = arith.addf %292, %293 : vector<17x64xf32>
    %295 = arith.mulf %294, %271 : vector<17x64xf32>
    %cst_158 = arith.constant 0.110985048 : f32
    %296 = vector.broadcast %cst_158 : f32 to vector<17x64xf32>
    %297 = arith.addf %295, %296 : vector<17x64xf32>
    %298 = arith.mulf %297, %271 : vector<17x64xf32>
    %cst_159 = arith.constant 0.497469246 : f32
    %299 = vector.broadcast %cst_159 : f32 to vector<17x64xf32>
    %300 = arith.addf %298, %299 : vector<17x64xf32>
    %301 = arith.mulf %300, %271 : vector<17x64xf32>
    %cst_160 = arith.constant 1.000000e+00 : f32
    %302 = vector.broadcast %cst_160 : f32 to vector<17x64xf32>
    %303 = arith.addf %301, %302 : vector<17x64xf32>
    %304 = arith.mulf %270, %284 : vector<17x64xf32>
    %305 = tpu.reciprocal %303 : vector<17x64xf32> -> vector<17x64xf32>
    %306 = arith.mulf %304, %305 : vector<17x64xf32>
    %cst_161 = arith.constant 1.000000e+00 : f32
    %307 = vector.broadcast %cst_161 : f32 to vector<17x64xf32>
    %308 = arith.addf %307, %306 : vector<17x64xf32>
    %309 = arith.mulf %264, %308 : vector<17x64xf32>
    %310 = arith.truncf %309 : vector<17x64xf32> to vector<17x64xbf16>
    %c1_162 = arith.constant 1 : index
    %c0_163 = arith.constant 0 : index
    %c0_164 = arith.constant 0 : index
    %311 = vector.load %arg15[%c1_162, %c0_163, %c0_164] : memref<2x64x32xbf16, #tpu.memory_space<vmem>>, vector<1x64x32xbf16>
    %312 = vector.shape_cast %311 : vector<1x64x32xbf16> to vector<64x32xbf16>
    %cst_165 = arith.constant dense<0.000000e+00> : vector<17x32xf32>
    %313 = tpu.matmul %310, %312, %cst_165 {dimension_numbers = #tpu.dot_dimension_numbers<[1], [0], [0], [1], [0, 0, 1, 1], [], []>} : vector<17x64xbf16>, vector<64x32xbf16>, vector<17x32xf32> -> vector<17x32xf32>
    %c1_166 = arith.constant 1 : index
    %c0_167 = arith.constant 0 : index
    %c0_168 = arith.constant 0 : index
    %314 = vector.load %arg16[%c1_166, %c0_167, %c0_168] : memref<2x1x32xf32, #tpu.memory_space<vmem>>, vector<1x1x32xf32>
    %315 = vector.shape_cast %314 : vector<1x1x32xf32> to vector<1x32xf32>
    %316 = vector.broadcast %315 : vector<1x32xf32> to vector<17x32xf32>
    %317 = arith.addf %313, %316 : vector<17x32xf32>
    %318 = arith.addf %228, %317 : vector<17x32xf32>
    %319 = vector.extract_strided_slice %318 {offsets = [0, 0], sizes = [1, 32], strides = [1, 1]} : vector<17x32xf32> to vector<1x32xf32>
    %c0_169 = arith.constant 0 : index
    %c0_170 = arith.constant 0 : index
    %320 = vector.load %arg17[%c0_169, %c0_170] : memref<1x32xf32, #tpu.memory_space<vmem>>, vector<1x32xf32>
    %c0_171 = arith.constant 0 : index
    %c0_172 = arith.constant 0 : index
    %321 = vector.load %arg18[%c0_171, %c0_172] : memref<1x32xf32, #tpu.memory_space<vmem>>, vector<1x32xf32>
    %cst_173 = arith.constant dense<0.000000e+00> : vector<1xf32>
    %322 = vector.multi_reduction <add>, %319, %cst_173 [1] : vector<1x32xf32> to vector<1xf32>
    %323 = vector.shape_cast %322 : vector<1xf32> to vector<1x1xf32>
    %cst_174 = arith.constant 3.200000e+01 : f32
    %324 = vector.broadcast %cst_174 : f32 to vector<1x1xf32>
    %325 = arith.divf %323, %324 : vector<1x1xf32>
    %326 = vector.broadcast %325 : vector<1x1xf32> to vector<1x32xf32>
    %327 = arith.subf %319, %326 : vector<1x32xf32>
    %328 = arith.mulf %327, %327 : vector<1x32xf32>
    %cst_175 = arith.constant dense<0.000000e+00> : vector<1xf32>
    %329 = vector.multi_reduction <add>, %328, %cst_175 [1] : vector<1x32xf32> to vector<1xf32>
    %330 = vector.shape_cast %329 : vector<1xf32> to vector<1x1xf32>
    %cst_176 = arith.constant 3.200000e+01 : f32
    %331 = vector.broadcast %cst_176 : f32 to vector<1x1xf32>
    %332 = arith.divf %330, %331 : vector<1x1xf32>
    %333 = vector.broadcast %325 : vector<1x1xf32> to vector<1x32xf32>
    %334 = arith.subf %319, %333 : vector<1x32xf32>
    %cst_177 = arith.constant 9.99999974E-6 : f32
    %335 = vector.broadcast %cst_177 : f32 to vector<1x1xf32>
    %336 = arith.addf %332, %335 : vector<1x1xf32>
    %337 = math.rsqrt %336 : vector<1x1xf32>
    %338 = vector.broadcast %337 : vector<1x1xf32> to vector<1x32xf32>
    %339 = arith.mulf %334, %338 : vector<1x32xf32>
    %340 = arith.mulf %339, %320 : vector<1x32xf32>
    %341 = arith.addf %340, %321 : vector<1x32xf32>
    %342 = arith.truncf %341 : vector<1x32xf32> to vector<1x32xbf16>
    %c0_178 = arith.constant 0 : index
    %c0_179 = arith.constant 0 : index
    %343 = vector.load %arg19[%c0_178, %c0_179] : memref<32x7xbf16, #tpu.memory_space<vmem>>, vector<32x7xbf16>
    %cst_180 = arith.constant dense<0.000000e+00> : vector<1x7xf32>
    %344 = tpu.matmul %342, %343, %cst_180 {dimension_numbers = #tpu.dot_dimension_numbers<[1], [0], [0], [1], [0, 0, 1, 1], [], []>} : vector<1x32xbf16>, vector<32x7xbf16>, vector<1x7xf32> -> vector<1x7xf32>
    %c0_181 = arith.constant 0 : index
    %c0_182 = arith.constant 0 : index
    %345 = vector.load %arg20[%c0_181, %c0_182] : memref<1x7xf32, #tpu.memory_space<vmem>>, vector<1x7xf32>
    %346 = arith.addf %344, %345 : vector<1x7xf32>
    %c0_183 = arith.constant 0 : index
    %c0_184 = arith.constant 0 : index
    %c0_185 = arith.constant 0 : index
    %347 = vector.load %arg21[%c0_183, %c0_184, %c0_185] : memref<1x1x7xf32, #tpu.memory_space<vmem>>, vector<1x1x7xf32>
    %348 = vector.shape_cast %347 : vector<1x1x7xf32> to vector<1x7xf32>
    %349 = vector.shape_cast %346 : vector<1x7xf32> to vector<1x1x7xf32>
    tpu.vector_store %arg21[%c0_183, %c0_184, %c0_185], %349 {strides = array<i32>} : memref<1x1x7xf32, #tpu.memory_space<vmem>>, vector<1x1x7xf32>,
    return
  }
  func.func @transform_0(%arg0: i32) -> (i32, i32, i32) {
    %c0_i32 = arith.constant 0 : i32
    %c0_i32_0 = arith.constant 0 : i32
    %c0_i32_1 = arith.constant 0 : i32
    return %arg0, %c0_i32, %c0_i32_0 : i32, i32, i32
  }
  func.func @transform_1(%arg0: i32) -> (i32, i32) {
    %c0_i32 = arith.constant 0 : i32
    %c0_i32_0 = arith.constant 0 : i32
    %c0_i32_1 = arith.constant 0 : i32
    return %c0_i32, %c0_i32_0 : i32, i32
  }
  func.func @transform_2(%arg0: i32) -> (i32, i32) {
    %c0_i32 = arith.constant 0 : i32
    %c0_i32_0 = arith.constant 0 : i32
    %c0_i32_1 = arith.constant 0 : i32
    return %c0_i32, %c0_i32_0 : i32, i32
  }
  func.func @transform_3(%arg0: i32) -> (i32, i32, i32) {
    %c0_i32 = arith.constant 0 : i32
    %c0_i32_0 = arith.constant 0 : i32
    %c0_i32_1 = arith.constant 0 : i32
    %c0_i32_2 = arith.constant 0 : i32
    return %c0_i32, %c0_i32_0, %c0_i32_1 : i32, i32, i32
  }
  func.func @transform_4(%arg0: i32) -> (i32, i32, i32) {
    %c0_i32 = arith.constant 0 : i32
    %c0_i32_0 = arith.constant 0 : i32
    %c0_i32_1 = arith.constant 0 : i32
    %c0_i32_2 = arith.constant 0 : i32
    return %c0_i32, %c0_i32_0, %c0_i32_1 : i32, i32, i32
  }
  func.func @transform_5(%arg0: i32) -> (i32, i32, i32, i32) {
    %c0_i32 = arith.constant 0 : i32
    %c0_i32_0 = arith.constant 0 : i32
    %c0_i32_1 = arith.constant 0 : i32
    %c0_i32_2 = arith.constant 0 : i32
    %c0_i32_3 = arith.constant 0 : i32
    return %c0_i32, %c0_i32_0, %c0_i32_1, %c0_i32_2 : i32, i32, i32, i32
  }
  func.func @transform_6(%arg0: i32) -> (i32, i32, i32, i32) {
    %c0_i32 = arith.constant 0 : i32
    %c0_i32_0 = arith.constant 0 : i32
    %c0_i32_1 = arith.constant 0 : i32
    %c0_i32_2 = arith.constant 0 : i32
    %c0_i32_3 = arith.constant 0 : i32
    return %c0_i32, %c0_i32_0, %c0_i32_1, %c0_i32_2 : i32, i32, i32, i32
  }
  func.func @transform_7(%arg0: i32) -> (i32, i32, i32, i32) {
    %c0_i32 = arith.constant 0 : i32
    %c0_i32_0 = arith.constant 0 : i32
    %c0_i32_1 = arith.constant 0 : i32
    %c0_i32_2 = arith.constant 0 : i32
    %c0_i32_3 = arith.constant 0 : i32
    return %c0_i32, %c0_i32_0, %c0_i32_1, %c0_i32_2 : i32, i32, i32, i32
  }
  func.func @transform_8(%arg0: i32) -> (i32, i32, i32, i32) {
    %c0_i32 = arith.constant 0 : i32
    %c0_i32_0 = arith.constant 0 : i32
    %c0_i32_1 = arith.constant 0 : i32
    %c0_i32_2 = arith.constant 0 : i32
    %c0_i32_3 = arith.constant 0 : i32
    return %c0_i32, %c0_i32_0, %c0_i32_1, %c0_i32_2 : i32, i32, i32, i32
  }
  func.func @transform_9(%arg0: i32) -> (i32, i32, i32) {
    %c0_i32 = arith.constant 0 : i32
    %c0_i32_0 = arith.constant 0 : i32
    %c0_i32_1 = arith.constant 0 : i32
    %c0_i32_2 = arith.constant 0 : i32
    return %c0_i32, %c0_i32_0, %c0_i32_1 : i32, i32, i32
  }
  func.func @transform_10(%arg0: i32) -> (i32, i32, i32) {
    %c0_i32 = arith.constant 0 : i32
    %c0_i32_0 = arith.constant 0 : i32
    %c0_i32_1 = arith.constant 0 : i32
    %c0_i32_2 = arith.constant 0 : i32
    return %c0_i32, %c0_i32_0, %c0_i32_1 : i32, i32, i32
  }
  func.func @transform_11(%arg0: i32) -> (i32, i32, i32) {
    %c0_i32 = arith.constant 0 : i32
    %c0_i32_0 = arith.constant 0 : i32
    %c0_i32_1 = arith.constant 0 : i32
    %c0_i32_2 = arith.constant 0 : i32
    return %c0_i32, %c0_i32_0, %c0_i32_1 : i32, i32, i32
  }
  func.func @transform_12(%arg0: i32) -> (i32, i32, i32) {
    %c0_i32 = arith.constant 0 : i32
    %c0_i32_0 = arith.constant 0 : i32
    %c0_i32_1 = arith.constant 0 : i32
    %c0_i32_2 = arith.constant 0 : i32
    return %c0_i32, %c0_i32_0, %c0_i32_1 : i32, i32, i32
  }
  func.func @transform_13(%arg0: i32) -> (i32, i32, i32) {
    %c0_i32 = arith.constant 0 : i32
    %c0_i32_0 = arith.constant 0 : i32
    %c0_i32_1 = arith.constant 0 : i32
    %c0_i32_2 = arith.constant 0 : i32
    return %c0_i32, %c0_i32_0, %c0_i32_1 : i32, i32, i32
  }
  func.func @transform_14(%arg0: i32) -> (i32, i32, i32) {
    %c0_i32 = arith.constant 0 : i32
    %c0_i32_0 = arith.constant 0 : i32
    %c0_i32_1 = arith.constant 0 : i32
    %c0_i32_2 = arith.constant 0 : i32
    return %c0_i32, %c0_i32_0, %c0_i32_1 : i32, i32, i32
  }
  func.func @transform_15(%arg0: i32) -> (i32, i32, i32) {
    %c0_i32 = arith.constant 0 : i32
    %c0_i32_0 = arith.constant 0 : i32
    %c0_i32_1 = arith.constant 0 : i32
    %c0_i32_2 = arith.constant 0 : i32
    return %c0_i32, %c0_i32_0, %c0_i32_1 : i32, i32, i32
  }
  func.func @transform_16(%arg0: i32) -> (i32, i32) {
    %c0_i32 = arith.constant 0 : i32
    %c0_i32_0 = arith.constant 0 : i32
    %c0_i32_1 = arith.constant 0 : i32
    return %c0_i32, %c0_i32_0 : i32, i32
  }
  func.func @transform_17(%arg0: i32) -> (i32, i32) {
    %c0_i32 = arith.constant 0 : i32
    %c0_i32_0 = arith.constant 0 : i32
    %c0_i32_1 = arith.constant 0 : i32
    return %c0_i32, %c0_i32_0 : i32, i32
  }
  func.func @transform_18(%arg0: i32) -> (i32, i32) {
    %c0_i32 = arith.constant 0 : i32
    %c0_i32_0 = arith.constant 0 : i32
    %c0_i32_1 = arith.constant 0 : i32
    return %c0_i32, %c0_i32_0 : i32, i32
  }
  func.func @transform_19(%arg0: i32) -> (i32, i32) {
    %c0_i32 = arith.constant 0 : i32
    %c0_i32_0 = arith.constant 0 : i32
    %c0_i32_1 = arith.constant 0 : i32
    return %c0_i32, %c0_i32_0 : i32, i32
  }
  func.func @transform_20(%arg0: i32) -> (i32, i32, i32) {
    %c0_i32 = arith.constant 0 : i32
    %c0_i32_0 = arith.constant 0 : i32
    %c0_i32_1 = arith.constant 0 : i32
    return %arg0, %c0_i32, %c0_i32_0 : i32, i32, i32
  }
}

</mosaic_0001>

<llo_original>
// kernel: vit_forward.1
$region0: #{vit_forward.1}
  #allocation0 [shape = 'u32[]', space=smem, size = 0x4, offset = 0x4, fixed_abs, tag = 'smem constant byte address 0x4 - core index']
  #allocation1 [shape = 'u32[144,128]{1,0:T(1,128)}', space=vmem, size = 0x12000, scoped, tag = 'internal scratch']
  %s0 = inlined_call_operand.vmem [shape: f32[2,17,48], index: 0, kind: input, shape index: {}]
  %s1 = inlined_call_operand.vmem [shape: bf16[48,32], index: 1, kind: input, shape index: {}]
  %s2 = inlined_call_operand.vmem [shape: f32[17,32], index: 2, kind: input, shape index: {}]
  %s3 = inlined_call_operand.vmem [shape: f32[2,1,32], index: 3, kind: input, shape index: {}]
  %s4 = inlined_call_operand.vmem [shape: f32[2,1,32], index: 4, kind: input, shape index: {}]
  %s5 = inlined_call_operand.vmem [shape: bf16[2,4,32,8], index: 5, kind: input, shape index: {}]
  %s6 = inlined_call_operand.vmem [shape: bf16[2,4,32,8], index: 6, kind: input, shape index: {}]
  %s7 = inlined_call_operand.vmem [shape: bf16[2,4,32,8], index: 7, kind: input, shape index: {}]
  %s8 = inlined_call_operand.vmem [shape: bf16[2,4,8,32], index: 8, kind: input, shape index: {}]
  %s9 = inlined_call_operand.vmem [shape: f32[2,1,32], index: 9, kind: input, shape index: {}]
  %s10 = inlined_call_operand.vmem [shape: f32[2,1,32], index: 10, kind: input, shape index: {}]
  %s11 = inlined_call_operand.vmem [shape: f32[2,1,32], index: 11, kind: input, shape index: {}]
  %s12 = inlined_call_operand.vmem [shape: bf16[2,32,64], index: 12, kind: input, shape index: {}]
  %s13 = inlined_call_operand.vmem [shape: f32[2,1,64], index: 13, kind: input, shape index: {}]
  %s14 = inlined_call_operand.vmem [shape: bf16[2,64,32], index: 14, kind: input, shape index: {}]
  %s15 = inlined_call_operand.vmem [shape: f32[2,1,32], index: 15, kind: input, shape index: {}]
  %s16 = inlined_call_operand.vmem [shape: f32[1,32], index: 16, kind: input, shape index: {}]
  %s17 = inlined_call_operand.vmem [shape: f32[1,32], index: 17, kind: input, shape index: {}]
  %s18 = inlined_call_operand.vmem [shape: bf16[32,7], index: 18, kind: input, shape index: {}]
  %s19 = inlined_call_operand.vmem [shape: f32[1,7], index: 19, kind: input, shape index: {}]
  %s20 = inlined_call_operand.hbm [shape: f32[2,1,7], index: 20, kind: output, shape index: {}]
  %s21 = sld [smem:[#allocation0]]
  $region113: #{vit_forward.1} parent=0
    _
  %s23 = ssub.s32 1, %s21
  %s24 = scalar_select 0, %s23, %s21
  $region1: #{vit_forward.1} parent=0
    #allocation2 [shape = 'u8[1024]{0}', space=vmem, size = 0x400, scoped, tag = 'output window, operand 0']
    #allocation3 [shape = 's32[2]{0}', space=sflag, size = 0x8, scoped, tag = 'scoped memory for vit_forward.1']
    %25 = vsyncpa [#allocation3], 0
    %s26 = scalar_lea.sflag [#allocation3], 1
    %27 = vsyncpa %s26, 0
    loop: start=0, step=1, limit=4
    $region2: #{vit_forward.1} parent=1 // loop_pre_header
      _
    $region3: #{vit_forward.1} parent=1 // loop_header
      %s29 = sphi 0, %s33
      %p30 = scmp.ge.s32.totalorder %s29, 4
      %s39 = sphi 0, %s41
      %s42 = sphi 0, %s39
      %s43 = sphi 0, %s42
      %s59 = sphi 0, %s43
      %s63 = sphi 0, %s63
      %s65 = sphi 0, %s63
      %s66 = sphi 0, %s65
      %s80 = sphi 0, %s66
      %s84 = sphi 0, %s84
      %s86 = sphi 0, %s84
      %s87 = sphi 0, %s86
      %s101 = sphi 0, %s87
      %s105 = sphi 0, %s105
      %s107 = sphi 0, %s105
      %s108 = sphi 0, %s107
      %s122 = sphi 0, %s108
      %s126 = sphi 0, %s126
      %s128 = sphi 0, %s126
      %s129 = sphi 0, %s128
      %s143 = sphi 0, %s129
      %s147 = sphi 0, %s147
      %s149 = sphi 0, %s147
      %s150 = sphi 0, %s149
      %s164 = sphi 0, %s150
      %s168 = sphi 0, %s168
      %s170 = sphi 0, %s168
      %s171 = sphi 0, %s170
      %s185 = sphi 0, %s171
      %s189 = sphi 0, %s189
      %s191 = sphi 0, %s189
      %s192 = sphi 0, %s191
      %s206 = sphi 0, %s192
      %s210 = sphi 0, %s210
      %s212 = sphi 0, %s210
      %s213 = sphi 0, %s212
      %s227 = sphi 0, %s213
      %s231 = sphi 0, %s231
      %s233 = sphi 0, %s231
      %s234 = sphi 0, %s233
      %s248 = sphi 0, %s234
      %s252 = sphi 0, %s252
      %s254 = sphi 0, %s252
      %s255 = sphi 0, %s254
      %s269 = sphi 0, %s255
      %s273 = sphi 0, %s273
      %s275 = sphi 0, %s273
      %s276 = sphi 0, %s275
      %s290 = sphi 0, %s276
      %s294 = sphi 0, %s294
      %s296 = sphi 0, %s294
      %s297 = sphi 0, %s296
      %s311 = sphi 0, %s297
      %s315 = sphi 0, %s315
      %s317 = sphi 0, %s315
      %s318 = sphi 0, %s317
      %s332 = sphi 0, %s318
      %s336 = sphi 0, %s336
      %s338 = sphi 0, %s336
      %s339 = sphi 0, %s338
      %s353 = sphi 0, %s339
      %s357 = sphi 0, %s357
      %s359 = sphi 0, %s357
      %s360 = sphi 0, %s359
      %s374 = sphi 0, %s360
      %s378 = sphi 0, %s378
      %s380 = sphi 0, %s378
      %s381 = sphi 0, %s380
      %s395 = sphi 0, %s381
      %s399 = sphi 0, %s399
      %s401 = sphi 0, %s399
      %s402 = sphi 0, %s401
      %s416 = sphi 0, %s402
      %s420 = sphi 0, %s420
      %s422 = sphi 0, %s420
      %s423 = sphi 0, %s422
      %s437 = sphi 0, %s423
      %s441 = sphi 0, %s441
      %s443 = sphi 0, %s441
      %s444 = sphi 0, %s443
      %s458 = sphi 0, %s444
      %s464 = sphi 0, %s466
      %s467 = sphi 0, %s464
      %s468 = sphi 0, %s467
      %s484 = sphi 0, %s468
    $region4: #{vit_forward.1} parent=1 // loop_header_branch
      %32 = sbr.rel (%p30) target = $region8
    $region5: #{vit_forward.1} parent=1 // loop_body
      %s34 = ssub.s32 %s29, 1
      %s35 = ssub.s32 %s29, 2
      %s36 = sadd.s32 %s29, 1
      %s37 = ssub.s32 %s29, %s36
      %p38 = scmp.eq.s32.totalorder %s37, 0
      %s40 = sadd.s32 %s39, 1
      %s41 = scalar_select %p38, %s39, %s40
      %p44 = pneg %p38
      %p45 = scmp.eq.s32.totalorder %s29, 1
      %p46 = por %p44, %p45
      %p47 = scmp.ne.s32.totalorder %s39, %s42
      %p48 = scmp.eq.s32.totalorder %s29, 0
      %p49 = por %p47, %p48
      %p50 = scmp.ne.s32.totalorder %s39, %s42
      %p51 = scmp.eq.s32.totalorder %s34, 1
      %p52 = por %p50, %p51
      %p53 = scmp.ne.s32.totalorder %s42, %s43
      %p54 = scmp.eq.s32.totalorder %s34, 0
      %p55 = por %p53, %p54
      %p56 = scmp.ne.s32.totalorder %s42, %s43
      %p57 = scmp.eq.s32.totalorder %s35, 1
      %p58 = por %p56, %p57
      %p60 = scmp.ne.s32.totalorder %s43, %s59
      %p61 = scmp.eq.s32.totalorder %s35, 0
      %p62 = por %p60, %p61
      %s64 = sadd.s32 %s63, 1
      %p67 = scmp.eq.s32.totalorder %s29, 1
      %p68 = scmp.ne.s32.totalorder %s63, %s65
      %p69 = scmp.eq.s32.totalorder %s29, 0
      %p70 = por %p68, %p69
      %p71 = scmp.ne.s32.totalorder %s63, %s65
      %p72 = scmp.eq.s32.totalorder %s34, 1
      %p73 = por %p71, %p72
      %p74 = scmp.ne.s32.totalorder %s65, %s66
      %p75 = scmp.eq.s32.totalorder %s34, 0
      %p76 = por %p74, %p75
      %p77 = scmp.ne.s32.totalorder %s65, %s66
      %p78 = scmp.eq.s32.totalorder %s35, 1
      %p79 = por %p77, %p78
      %p81 = scmp.ne.s32.totalorder %s66, %s80
      %p82 = scmp.eq.s32.totalorder %s35, 0
      %p83 = por %p81, %p82
      %s85 = sadd.s32 %s84, 1
      %p88 = scmp.eq.s32.totalorder %s29, 1
      %p89 = scmp.ne.s32.totalorder %s84, %s86
      %p90 = scmp.eq.s32.totalorder %s29, 0
      %p91 = por %p89, %p90
      %p92 = scmp.ne.s32.totalorder %s84, %s86
      %p93 = scmp.eq.s32.totalorder %s34, 1
      %p94 = por %p92, %p93
      %p95 = scmp.ne.s32.totalorder %s86, %s87
      %p96 = scmp.eq.s32.totalorder %s34, 0
      %p97 = por %p95, %p96
      %p98 = scmp.ne.s32.totalorder %s86, %s87
      %p99 = scmp.eq.s32.totalorder %s35, 1
      %p100 = por %p98, %p99
      %p102 = scmp.ne.s32.totalorder %s87, %s101
      %p103 = scmp.eq.s32.totalorder %s35, 0
      %p104 = por %p102, %p103
      %s106 = sadd.s32 %s105, 1
      %p109 = scmp.eq.s32.totalorder %s29, 1
      %p110 = scmp.ne.s32.totalorder %s105, %s107
      %p111 = scmp.eq.s32.totalorder %s29, 0
      %p112 = por %p110, %p111
      %p113 = scmp.ne.s32.totalorder %s105, %s107
      %p114 = scmp.eq.s32.totalorder %s34, 1
      %p115 = por %p113, %p114
      %p116 = scmp.ne.s32.totalorder %s107, %s108
      %p117 = scmp.eq.s32.totalorder %s34, 0
      %p118 = por %p116, %p117
      %p119 = scmp.ne.s32.totalorder %s107, %s108
      %p120 = scmp.eq.s32.totalorder %s35, 1
      %p121 = por %p119, %p120
      %p123 = scmp.ne.s32.totalorder %s108, %s122
      %p124 = scmp.eq.s32.totalorder %s35, 0
      %p125 = por %p123, %p124
      %s127 = sadd.s32 %s126, 1
      %p130 = scmp.eq.s32.totalorder %s29, 1
      %p131 = scmp.ne.s32.totalorder %s126, %s128
      %p132 = scmp.eq.s32.totalorder %s29, 0
      %p133 = por %p131, %p132
      %p134 = scmp.ne.s32.totalorder %s126, %s128
      %p135 = scmp.eq.s32.totalorder %s34, 1
      %p136 = por %p134, %p135
      %p137 = scmp.ne.s32.totalorder %s128, %s129
      %p138 = scmp.eq.s32.totalorder %s34, 0
      %p139 = por %p137, %p138
      %p140 = scmp.ne.s32.totalorder %s128, %s129
      %p141 = scmp.eq.s32.totalorder %s35, 1
      %p142 = por %p140, %p141
      %p144 = scmp.ne.s32.totalorder %s129, %s143
      %p145 = scmp.eq.s32.totalorder %s35, 0
      %p146 = por %p144, %p145
      %s148 = sadd.s32 %s147, 1
      %p151 = scmp.eq.s32.totalorder %s29, 1
      %p152 = scmp.ne.s32.totalorder %s147, %s149
      %p153 = scmp.eq.s32.totalorder %s29, 0
      %p154 = por %p152, %p153
      %p155 = scmp.ne.s32.totalorder %s147, %s149
      %p156 = scmp.eq.s32.totalorder %s34, 1
      %p157 = por %p155, %p156
      %p158 = scmp.ne.s32.totalorder %s149, %s150
      %p159 = scmp.eq.s32.totalorder %s34, 0
      %p160 = por %p158, %p159
      %p161 = scmp.ne.s32.totalorder %s149, %s150
      %p162 = scmp.eq.s32.totalorder %s35, 1
      %p163 = por %p161, %p162
      %p165 = scmp.ne.s32.totalorder %s150, %s164
      %p166 = scmp.eq.s32.totalorder %s35, 0
      %p167 = por %p165, %p166
      %s169 = sadd.s32 %s168, 1
      %p172 = scmp.eq.s32.totalorder %s29, 1
      %p173 = scmp.ne.s32.totalorder %s168, %s170
      %p174 = scmp.eq.s32.totalorder %s29, 0
      %p175 = por %p173, %p174
      %p176 = scmp.ne.s32.totalorder %s168, %s170
      %p177 = scmp.eq.s32.totalorder %s34, 1
      %p178 = por %p176, %p177
      %p179 = scmp.ne.s32.totalorder %s170, %s171
      %p180 = scmp.eq.s32.totalorder %s34, 0
      %p181 = por %p179, %p180
      %p182 = scmp.ne.s32.totalorder %s170, %s171
      %p183 = scmp.eq.s32.totalorder %s35, 1
      %p184 = por %p182, %p183
      %p186 = scmp.ne.s32.totalorder %s171, %s185
      %p187 = scmp.eq.s32.totalorder %s35, 0
      %p188 = por %p186, %p187
      %s190 = sadd.s32 %s189, 1
      %p193 = scmp.eq.s32.totalorder %s29, 1
      %p194 = scmp.ne.s32.totalorder %s189, %s191
      %p195 = scmp.eq.s32.totalorder %s29, 0
      %p196 = por %p194, %p195
      %p197 = scmp.ne.s32.totalorder %s189, %s191
      %p198 = scmp.eq.s32.totalorder %s34, 1
      %p199 = por %p197, %p198
      %p200 = scmp.ne.s32.totalorder %s191, %s192
      %p201 = scmp.eq.s32.totalorder %s34, 0
      %p202 = por %p200, %p201
      %p203 = scmp.ne.s32.totalorder %s191, %s192
      %p204 = scmp.eq.s32.totalorder %s35, 1
      %p205 = por %p203, %p204
      %p207 = scmp.ne.s32.totalorder %s192, %s206
      %p208 = scmp.eq.s32.totalorder %s35, 0
      %p209 = por %p207, %p208
      %s211 = sadd.s32 %s210, 1
      %p214 = scmp.eq.s32.totalorder %s29, 1
      %p215 = scmp.ne.s32.totalorder %s210, %s212
      %p216 = scmp.eq.s32.totalorder %s29, 0
      %p217 = por %p215, %p216
      %p218 = scmp.ne.s32.totalorder %s210, %s212
      %p219 = scmp.eq.s32.totalorder %s34, 1
      %p220 = por %p218, %p219
      %p221 = scmp.ne.s32.totalorder %s212, %s213
      %p222 = scmp.eq.s32.totalorder %s34, 0
      %p223 = por %p221, %p222
      %p224 = scmp.ne.s32.totalorder %s212, %s213
      %p225 = scmp.eq.s32.totalorder %s35, 1
      %p226 = por %p224, %p225
      %p228 = scmp.ne.s32.totalorder %s213, %s227
      %p229 = scmp.eq.s32.totalorder %s35, 0
      %p230 = por %p228, %p229
      %s232 = sadd.s32 %s231, 1
      %p235 = scmp.eq.s32.totalorder %s29, 1
      %p236 = scmp.ne.s32.totalorder %s231, %s233
      %p237 = scmp.eq.s32.totalorder %s29, 0
      %p238 = por %p236, %p237
      %p239 = scmp.ne.s32.totalorder %s231, %s233
      %p240 = scmp.eq.s32.totalorder %s34, 1
      %p241 = por %p239, %p240
      %p242 = scmp.ne.s32.totalorder %s233, %s234
      %p243 = scmp.eq.s32.totalorder %s34, 0
      %p244 = por %p242, %p243
      %p245 = scmp.ne.s32.totalorder %s233, %s234
      %p246 = scmp.eq.s32.totalorder %s35, 1
      %p247 = por %p245, %p246
      %p249 = scmp.ne.s32.totalorder %s234, %s248
      %p250 = scmp.eq.s32.totalorder %s35, 0
      %p251 = por %p249, %p250
      %s253 = sadd.s32 %s252, 1
      %p256 = scmp.eq.s32.totalorder %s29, 1
      %p257 = scmp.ne.s32.totalorder %s252, %s254
      %p258 = scmp.eq.s32.totalorder %s29, 0
      %p259 = por %p257, %p258
      %p260 = scmp.ne.s32.totalorder %s252, %s254
      %p261 = scmp.eq.s32.totalorder %s34, 1
      %p262 = por %p260, %p261
      %p263 = scmp.ne.s32.totalorder %s254, %s255
      %p264 = scmp.eq.s32.totalorder %s34, 0
      %p265 = por %p263, %p264
      %p266 = scmp.ne.s32.totalorder %s254, %s255
      %p267 = scmp.eq.s32.totalorder %s35, 1
      %p268 = por %p266, %p267
      %p270 = scmp.ne.s32.totalorder %s255, %s269
      %p271 = scmp.eq.s32.totalorder %s35, 0
      %p272 = por %p270, %p271
      %s274 = sadd.s32 %s273, 1
      %p277 = scmp.eq.s32.totalorder %s29, 1
      %p278 = scmp.ne.s32.totalorder %s273, %s275
      %p279 = scmp.eq.s32.totalorder %s29, 0
      %p280 = por %p278, %p279
      %p281 = scmp.ne.s32.totalorder %s273, %s275
      %p282 = scmp.eq.s32.totalorder %s34, 1
      %p283 = por %p281, %p282
      %p284 = scmp.ne.s32.totalorder %s275, %s276
      %p285 = scmp.eq.s32.totalorder %s34, 0
      %p286 = por %p284, %p285
      %p287 = scmp.ne.s32.totalorder %s275, %s276
      %p288 = scmp.eq.s32.totalorder %s35, 1
      %p289 = por %p287, %p288
      %p291 = scmp.ne.s32.totalorder %s276, %s290
      %p292 = scmp.eq.s32.totalorder %s35, 0
      %p293 = por %p291, %p292
      %s295 = sadd.s32 %s294, 1
      %p298 = scmp.eq.s32.totalorder %s29, 1
      %p299 = scmp.ne.s32.totalorder %s294, %s296
      %p300 = scmp.eq.s32.totalorder %s29, 0
      %p301 = por %p299, %p300
      %p302 = scmp.ne.s32.totalorder %s294, %s296
      %p303 = scmp.eq.s32.totalorder %s34, 1
      %p304 = por %p302, %p303
      %p305 = scmp.ne.s32.totalorder %s296, %s297
      %p306 = scmp.eq.s32.totalorder %s34, 0
      %p307 = por %p305, %p306
      %p308 = scmp.ne.s32.totalorder %s296, %s297
      %p309 = scmp.eq.s32.totalorder %s35, 1
      %p310 = por %p308, %p309
      %p312 = scmp.ne.s32.totalorder %s297, %s311
      %p313 = scmp.eq.s32.totalorder %s35, 0
      %p314 = por %p312, %p313
      %s316 = sadd.s32 %s315, 1
      %p319 = scmp.eq.s32.totalorder %s29, 1
      %p320 = scmp.ne.s32.totalorder %s315, %s317
      %p321 = scmp.eq.s32.totalorder %s29, 0
      %p322 = por %p320, %p321
      %p323 = scmp.ne.s32.totalorder %s315, %s317
      %p324 = scmp.eq.s32.totalorder %s34, 1
      %p325 = por %p323, %p324
      %p326 = scmp.ne.s32.totalorder %s317, %s318
      %p327 = scmp.eq.s32.totalorder %s34, 0
      %p328 = por %p326, %p327
      %p329 = scmp.ne.s32.totalorder %s317, %s318
      %p330 = scmp.eq.s32.totalorder %s35, 1
      %p331 = por %p329, %p330
      %p333 = scmp.ne.s32.totalorder %s318, %s332
      %p334 = scmp.eq.s32.totalorder %s35, 0
      %p335 = por %p333, %p334
      %s337 = sadd.s32 %s336, 1
      %p340 = scmp.eq.s32.totalorder %s29, 1
      %p341 = scmp.ne.s32.totalorder %s336, %s338
      %p342 = scmp.eq.s32.totalorder %s29, 0
      %p343 = por %p341, %p342
      %p344 = scmp.ne.s32.totalorder %s336, %s338
      %p345 = scmp.eq.s32.totalorder %s34, 1
      %p346 = por %p344, %p345
      %p347 = scmp.ne.s32.totalorder %s338, %s339
      %p348 = scmp.eq.s32.totalorder %s34, 0
      %p349 = por %p347, %p348
      %p350 = scmp.ne.s32.totalorder %s338, %s339
      %p351 = scmp.eq.s32.totalorder %s35, 1
      %p352 = por %p350, %p351
      %p354 = scmp.ne.s32.totalorder %s339, %s353
      %p355 = scmp.eq.s32.totalorder %s35, 0
      %p356 = por %p354, %p355
      %s358 = sadd.s32 %s357, 1
      %p361 = scmp.eq.s32.totalorder %s29, 1
      %p362 = scmp.ne.s32.totalorder %s357, %s359
      %p363 = scmp.eq.s32.totalorder %s29, 0
      %p364 = por %p362, %p363
      %p365 = scmp.ne.s32.totalorder %s357, %s359
      %p366 = scmp.eq.s32.totalorder %s34, 1
      %p367 = por %p365, %p366
      %p368 = scmp.ne.s32.totalorder %s359, %s360
      %p369 = scmp.eq.s32.totalorder %s34, 0
      %p370 = por %p368, %p369
      %p371 = scmp.ne.s32.totalorder %s359, %s360
      %p372 = scmp.eq.s32.totalorder %s35, 1
      %p373 = por %p371, %p372
      %p375 = scmp.ne.s32.totalorder %s360, %s374
      %p376 = scmp.eq.s32.totalorder %s35, 0
      %p377 = por %p375, %p376
      %s379 = sadd.s32 %s378, 1
      %p382 = scmp.eq.s32.totalorder %s29, 1
      %p383 = scmp.ne.s32.totalorder %s378, %s380
      %p384 = scmp.eq.s32.totalorder %s29, 0
      %p385 = por %p383, %p384
      %p386 = scmp.ne.s32.totalorder %s378, %s380
      %p387 = scmp.eq.s32.totalorder %s34, 1
      %p388 = por %p386, %p387
      %p389 = scmp.ne.s32.totalorder %s380, %s381
      %p390 = scmp.eq.s32.totalorder %s34, 0
      %p391 = por %p389, %p390
      %p392 = scmp.ne.s32.totalorder %s380, %s381
      %p393 = scmp.eq.s32.totalorder %s35, 1
      %p394 = por %p392, %p393
      %p396 = scmp.ne.s32.totalorder %s381, %s395
      %p397 = scmp.eq.s32.totalorder %s35, 0
      %p398 = por %p396, %p397
      %s400 = sadd.s32 %s399, 1
      %p403 = scmp.eq.s32.totalorder %s29, 1
      %p404 = scmp.ne.s32.totalorder %s399, %s401
      %p405 = scmp.eq.s32.totalorder %s29, 0
      %p406 = por %p404, %p405
      %p407 = scmp.ne.s32.totalorder %s399, %s401
      %p408 = scmp.eq.s32.totalorder %s34, 1
      %p409 = por %p407, %p408
      %p410 = scmp.ne.s32.totalorder %s401, %s402
      %p411 = scmp.eq.s32.totalorder %s34, 0
      %p412 = por %p410, %p411
      %p413 = scmp.ne.s32.totalorder %s401, %s402
      %p414 = scmp.eq.s32.totalorder %s35, 1
      %p415 = por %p413, %p414
      %p417 = scmp.ne.s32.totalorder %s402, %s416
      %p418 = scmp.eq.s32.totalorder %s35, 0
      %p419 = por %p417, %p418
      %s421 = sadd.s32 %s420, 1
      %p424 = scmp.eq.s32.totalorder %s29, 1
      %p425 = scmp.ne.s32.totalorder %s420, %s422
      %p426 = scmp.eq.s32.totalorder %s29, 0
      %p427 = por %p425, %p426
      %p428 = scmp.ne.s32.totalorder %s420, %s422
      %p429 = scmp.eq.s32.totalorder %s34, 1
      %p430 = por %p428, %p429
      %p431 = scmp.ne.s32.totalorder %s422, %s423
      %p432 = scmp.eq.s32.totalorder %s34, 0
      %p433 = por %p431, %p432
      %p434 = scmp.ne.s32.totalorder %s422, %s423
      %p435 = scmp.eq.s32.totalorder %s35, 1
      %p436 = por %p434, %p435
      %p438 = scmp.ne.s32.totalorder %s423, %s437
      %p439 = scmp.eq.s32.totalorder %s35, 0
      %p440 = por %p438, %p439
      %s442 = sadd.s32 %s441, 1
      %p445 = scmp.eq.s32.totalorder %s29, 1
      %p446 = scmp.ne.s32.totalorder %s441, %s443
      %p447 = scmp.eq.s32.totalorder %s29, 0
      %p448 = por %p446, %p447
      %p449 = scmp.ne.s32.totalorder %s441, %s443
      %p450 = scmp.eq.s32.totalorder %s34, 1
      %p451 = por %p449, %p450
      %p452 = scmp.ne.s32.totalorder %s443, %s444
      %p453 = scmp.eq.s32.totalorder %s34, 0
      %p454 = por %p452, %p453
      %p455 = scmp.ne.s32.totalorder %s443, %s444
      %p456 = scmp.eq.s32.totalorder %s35, 1
      %p457 = por %p455, %p456
      %p459 = scmp.ne.s32.totalorder %s444, %s458
      %p460 = scmp.eq.s32.totalorder %s35, 0
      %p461 = por %p459, %p460
      %s462 = ssub.s32 %s29, %s36
      %p463 = scmp.eq.s32.totalorder %s462, 0
      %s465 = sadd.s32 %s464, 1
      %s466 = scalar_select %p463, %s464, %s465
      %p469 = pneg %p463
      %p470 = scmp.eq.s32.totalorder %s29, 1
      %p471 = por %p469, %p470
      %p472 = scmp.ne.s32.totalorder %s464, %s467
      %p473 = scmp.eq.s32.totalorder %s29, 0
      %p474 = por %p472, %p473
      %p475 = scmp.ne.s32.totalorder %s464, %s467
      %p476 = scmp.eq.s32.totalorder %s34, 1
      %p477 = por %p475, %p476
      %p478 = scmp.ne.s32.totalorder %s467, %s468
      %p479 = scmp.eq.s32.totalorder %s34, 0
      %p480 = por %p478, %p479
      %p481 = scmp.ne.s32.totalorder %s467, %s468
      %p482 = scmp.eq.s32.totalorder %s35, 1
      %p483 = por %p481, %p482
      %p485 = scmp.ne.s32.totalorder %s468, %s484
      %p486 = scmp.eq.s32.totalorder %s35, 0
      %p487 = por %p485, %p486
      %p488 = scmp.le.s32.totalorder 1, %s29
      %p489 = scmp.lt.s32.totalorder %s29, 3
      %p490 = pnand %p488, %p489
      %p491 = pneg %p490
      // Predicated region
      $region9: #{vit_forward.1} parent=5 // pred_check
        _
      $region10: #{vit_forward.1} parent=5 // pred_check_branch
        %493 = sbr.rel (%p490) target = $region12
      $region11: #{vit_forward.1} parent=5 // pred_region
        %s494 = ssub.s32 %s29, 1
        // Predicated region
        $region13: #{vit_forward.1} parent=11 // pred_check
          %p495 = pneg %p76
        $region14: #{vit_forward.1} parent=11 // pred_check_branch
          %497 = sbr.rel (%p495) target = $region16
        $region15: #{vit_forward.1} parent=11 // pred_region
          _
        $region16: #{vit_forward.1} parent=11 // pred_fallthru
          _
        // Predicated region
        $region17: #{vit_forward.1} parent=11 // pred_check
          %p498 = pneg %p97
        $region18: #{vit_forward.1} parent=11 // pred_check_branch
          %500 = sbr.rel (%p498) target = $region20
        $region19: #{vit_forward.1} parent=11 // pred_region
          _
        $region20: #{vit_forward.1} parent=11 // pred_fallthru
          _
        // Predicated region
        $region21: #{vit_forward.1} parent=11 // pred_check
          %p501 = pneg %p118
        $region22: #{vit_forward.1} parent=11 // pred_check_branch
          %503 = sbr.rel (%p501) target = $region24
        $region23: #{vit_forward.1} parent=11 // pred_region
          _
        $region24: #{vit_forward.1} parent=11 // pred_fallthru
          _
        // Predicated region
        $region25: #{vit_forward.1} parent=11 // pred_check
          %p504 = pneg %p139
        $region26: #{vit_forward.1} parent=11 // pred_check_branch
          %506 = sbr.rel (%p504) target = $region28
        $region27: #{vit_forward.1} parent=11 // pred_region
          _
        $region28: #{vit_forward.1} parent=11 // pred_fallthru
          _
        // Predicated region
        $region29: #{vit_forward.1} parent=11 // pred_check
          %p507 = pneg %p160
        $region30: #{vit_forward.1} parent=11 // pred_check_branch
          %509 = sbr.rel (%p507) target = $region32
        $region31: #{vit_forward.1} parent=11 // pred_region
          _
        $region32: #{vit_forward.1} parent=11 // pred_fallthru
          _
        // Predicated region
        $region33: #{vit_forward.1} parent=11 // pred_check
          %p510 = pneg %p181
        $region34: #{vit_forward.1} parent=11 // pred_check_branch
          %512 = sbr.rel (%p510) target = $region36
        $region35: #{vit_forward.1} parent=11 // pred_region
          _
        $region36: #{vit_forward.1} parent=11 // pred_fallthru
          _
        // Predicated region
        $region37: #{vit_forward.1} parent=11 // pred_check
          %p513 = pneg %p202
        $region38: #{vit_forward.1} parent=11 // pred_check_branch
          %515 = sbr.rel (%p513) target = $region40
        $region39: #{vit_forward.1} parent=11 // pred_region
          _
        $region40: #{vit_forward.1} parent=11 // pred_fallthru
          _
        // Predicated region
        $region41: #{vit_forward.1} parent=11 // pred_check
          %p516 = pneg %p223
        $region42: #{vit_forward.1} parent=11 // pred_check_branch
          %518 = sbr.rel (%p516) target = $region44
        $region43: #{vit_forward.1} parent=11 // pred_region
          _
        $region44: #{vit_forward.1} parent=11 // pred_fallthru
          _
        // Predicated region
        $region45: #{vit_forward.1} parent=11 // pred_check
          %p519 = pneg %p244
        $region46: #{vit_forward.1} parent=11 // pred_check_branch
          %521 = sbr.rel (%p519) target = $region48
        $region47: #{vit_forward.1} parent=11 // pred_region
          _
        $region48: #{vit_forward.1} parent=11 // pred_fallthru
          _
        // Predicated region
        $region49: #{vit_forward.1} parent=11 // pred_check
          %p522 = pneg %p265
        $region50: #{vit_forward.1} parent=11 // pred_check_branch
          %524 = sbr.rel (%p522) target = $region52
        $region51: #{vit_forward.1} parent=11 // pred_region
          _
        $region52: #{vit_forward.1} parent=11 // pred_fallthru
          _
        // Predicated region
        $region53: #{vit_forward.1} parent=11 // pred_check
          %p525 = pneg %p286
        $region54: #{vit_forward.1} parent=11 // pred_check_branch
          %527 = sbr.rel (%p525) target = $region56
        $region55: #{vit_forward.1} parent=11 // pred_region
          _
        $region56: #{vit_forward.1} parent=11 // pred_fallthru
          _
        // Predicated region
        $region57: #{vit_forward.1} parent=11 // pred_check
          %p528 = pneg %p307
        $region58: #{vit_forward.1} parent=11 // pred_check_branch
          %530 = sbr.rel (%p528) target = $region60
        $region59: #{vit_forward.1} parent=11 // pred_region
          _
        $region60: #{vit_forward.1} parent=11 // pred_fallthru
          _
        // Predicated region
        $region61: #{vit_forward.1} parent=11 // pred_check
          %p531 = pneg %p328
        $region62: #{vit_forward.1} parent=11 // pred_check_branch
          %533 = sbr.rel (%p531) target = $region64
        $region63: #{vit_forward.1} parent=11 // pred_region
          _
        $region64: #{vit_forward.1} parent=11 // pred_fallthru
          _
        // Predicated region
        $region65: #{vit_forward.1} parent=11 // pred_check
          %p534 = pneg %p349
        $region66: #{vit_forward.1} parent=11 // pred_check_branch
          %536 = sbr.rel (%p534) target = $region68
        $region67: #{vit_forward.1} parent=11 // pred_region
          _
        $region68: #{vit_forward.1} parent=11 // pred_fallthru
          _
        // Predicated region
        $region69: #{vit_forward.1} parent=11 // pred_check
          %p537 = pneg %p370
        $region70: #{vit_forward.1} parent=11 // pred_check_branch
          %539 = sbr.rel (%p537) target = $region72
        $region71: #{vit_forward.1} parent=11 // pred_region
          _
        $region72: #{vit_forward.1} parent=11 // pred_fallthru
          _
        // Predicated region
        $region73: #{vit_forward.1} parent=11 // pred_check
          %p540 = pneg %p391
        $region74: #{vit_forward.1} parent=11 // pred_check_branch
          %542 = sbr.rel (%p540) target = $region76
        $region75: #{vit_forward.1} parent=11 // pred_region
          _
        $region76: #{vit_forward.1} parent=11 // pred_fallthru
          _
        // Predicated region
        $region77: #{vit_forward.1} parent=11 // pred_check
          %p543 = pneg %p412
        $region78: #{vit_forward.1} parent=11 // pred_check_branch
          %545 = sbr.rel (%p543) target = $region80
        $region79: #{vit_forward.1} parent=11 // pred_region
          _
        $region80: #{vit_forward.1} parent=11 // pred_fallthru
          _
        // Predicated region
        $region81: #{vit_forward.1} parent=11 // pred_check
          %p546 = pneg %p433
        $region82: #{vit_forward.1} parent=11 // pred_check_branch
          %548 = sbr.rel (%p546) target = $region84
        $region83: #{vit_forward.1} parent=11 // pred_region
          _
        $region84: #{vit_forward.1} parent=11 // pred_fallthru
          _
        // Predicated region
        $region85: #{vit_forward.1} parent=11 // pred_check
          %p549 = pneg %p454
        $region86: #{vit_forward.1} parent=11 // pred_check_branch
          %551 = sbr.rel (%p549) target = $region88
        $region87: #{vit_forward.1} parent=11 // pred_region
          _
        $region88: #{vit_forward.1} parent=11 // pred_fallthru
          _
      $region12: #{vit_forward.1} parent=5 // pred_fallthru
        _
      %p552 = scmp.lt.s32.totalorder %s29, 2
      // Predicated region
      $region89: #{vit_forward.1} parent=5 // pred_check
        %p553 = pneg %p552
      $region90: #{vit_forward.1} parent=5 // pred_check_branch
        %555 = sbr.rel (%p553) target = $region92
      $region91: #{vit_forward.1} parent=5 // pred_region
        // Predicated region
        $region93: #{vit_forward.1} parent=91 // pred_check
          %p556 = pneg %p49
        $region94: #{vit_forward.1} parent=91 // pred_check_branch
          %558 = sbr.rel (%p556) target = $region96
        $region95: #{vit_forward.1} parent=91 // pred_region
          %p559 = scmp.lt.s32.totalorder %s29, 1
          %s560 = scalar_select %p559, %s29, 1
          %s561 = smul.addr %s560, 3
          %s562 = smul.addr %s561, 8
          %s563 = scalar_lea.vmem %s0, %s562
        $region96: #{vit_forward.1} parent=91 // pred_fallthru
          _
      $region92: #{vit_forward.1} parent=5 // pred_fallthru
        _
      %p564 = scmp.le.s32.totalorder 1, %s29
      %p565 = scmp.lt.s32.totalorder %s29, 3
      %p566 = pnand %p564, %p565
      %p567 = pneg %p566
      // Predicated region
      $region97: #{vit_forward.1} parent=5 // pred_check
        _
      $region98: #{vit_forward.1} parent=5 // pred_check_branch
        %569 = sbr.rel (%p566) target = $region100
      $region99: #{vit_forward.1} parent=5 // pred_region
        %s570 = ssub.s32 %s29, 1
        %p571 = scmp.lt.s32.totalorder %s34, 1
        %s572 = scalar_select %p571, %s34, 1
        %s573 = smul.addr %s572, 3
        %s574 = smul.addr %s573, 8
        %s575 = scalar_lea.vmem %s0, %s574
        %p576 = pneg %p55
        %p577 = pneg %p52
        %p578 = pneg %p76
        %p579 = pneg %p73
        %p580 = pneg %p97
        %p581 = pneg %p94
        %p582 = pneg %p118
        %p583 = pneg %p115
        %p584 = pneg %p139
        %p585 = pneg %p136
        %p586 = pneg %p160
        %p587 = pneg %p157
        %p588 = pneg %p181
        %p589 = pneg %p178
        %p590 = pneg %p202
        %p591 = pneg %p199
        %p592 = pneg %p223
        %p593 = pneg %p220
        %p594 = pneg %p244
        %p595 = pneg %p241
        %p596 = pneg %p265
        %p597 = pneg %p262
        %p598 = pneg %p286
        %p599 = pneg %p283
        %p600 = pneg %p307
        %p601 = pneg %p304
        %p602 = pneg %p328
        %p603 = pneg %p325
        %p604 = pneg %p349
        %p605 = pneg %p346
        %p606 = pneg %p370
        %p607 = pneg %p367
        %p608 = pneg %p391
        %p609 = pneg %p388
        %p610 = pneg %p412
        %p611 = pneg %p409
        %p612 = pneg %p433
        %p613 = pneg %p430
        %p614 = pneg %p454
        %p615 = pneg %p451
        %p616 = pneg %p480
        %p617 = pneg %p477
        %s618 = sand.u32 %s467, 1
        %s619 = scalar_lea.sflag [#allocation3], %s618
        %s620 = sand.u32 %s467, 1
        %s621 = scalar_lea.vmem [#allocation2], %s620
        %p622 = scmp.lt.s32.totalorder %s34, 1
        %s623 = scalar_select %p622, %s34, 1
        %s624 = smul.addr %s623, 3
        %s625 = smul.addr %s624, 8
        %s626 = scalar_lea.vmem %s0, %s625
        %v628 = vld [vmem:[%s626] sm:$0xff]
        %v629 = vld [vmem:[%s626 + $0x8] sm:$0xff]
        %v630 = vld [vmem:[%s626 + $0x10] sm:$0x1]
        %v631 = vpack.c.bf16 %v629, %v628
        %v632 = vpack.c.bf16 %v630, %v630
        %v633 = vld [vmem:[%s1] sm:$0xf]
        %v634 = vld [vmem:[%s1 + $0x4] sm:$0xf]
        %v635 = vld [vmem:[%s1 + $0x8] sm:$0xf]
        %v636 = vld [vmem:[%s1 + $0xc] sm:$0xf]
        %v637 = vld [vmem:[%s1 + $0x10] sm:$0xf]
        %v638 = vld [vmem:[%s1 + $0x14] sm:$0xf]
        %v639 = vld [vmem:[%s2] sm:$0xff]
        %v640 = vld [vmem:[%s2 + $0x8] sm:$0xff]
        %v641 = vld [vmem:[%s2 + $0x10] sm:$0x1]
        %v648 = vunpack.c.l.b16 %v633
        %v649 = vunpack.c.l.b16 %v634
        %v650 = vunpack.c.l.b16 %v635
        %v651 = vunpack.c.l.b16 %v636
        %v652 = vunpack.c.l.b16 %v637
        %v653 = vunpack.c.l.b16 %v638
        %v654 = vpack.c.b16 %v649, %v648
        %v655 = vpack.c.b16 %v651, %v650
        %v656 = vpack.c.b16 %v653, %v652
        %vm660 = vcmask 392192
        %v662 = vsel %vm660, %v631, 0
        %v665 = vsel %vm660, %v632, 0
        %667 = vmatprep.subr.bf16.mxu0 0
        %668 = vmatpush1.bf16.msra.mxu0 %v654
        %669 = vmatprep.subr.bf16.mxu0 0
        %670 = vmatpush1.bf16.msra.mxu0 %v655
        %671 = vmatprep.subr.bf16.mxu0 0
        %672 = vmatpush1.bf16.msra.mxu0 %v656
        %673 = vmatprep.subr.bf16.mxu0 0
        %674 = vmatpush1.bf16.msra.mxu0 0
        %675 = vmatprep.subr.bf16.mxu0 0
        %676 = vmatpush1.bf16.msra.mxu0 0
        %677 = vmatprep.subr.bf16.mxu0 0
        %678 = vmatpush1.bf16.msra.mxu0 0
        %679 = vmatprep.subr.bf16.mxu0 0
        %680 = vmatpush1.bf16.msra.mxu0 0
        %681 = vmatprep.subr.bf16.mxu0 0
        %682 = vmatpush1.bf16.msra.mxu0 0
        %683 = vmatprep.subr.bf16.mxu0 0
        %684 = vmatpush1.bf16.msra.mxu0 0
        %685 = vmatprep.subr.bf16.mxu0 0
        %686 = vmatpush1.bf16.msra.mxu0 0
        %687 = vmatprep.subr.bf16.mxu0 0
        %688 = vmatpush1.bf16.msra.mxu0 0
        %689 = vmatprep.subr.bf16.mxu0 0
        %690 = vmatpush1.bf16.msra.mxu0 0
        %691 = vmatprep.subr.bf16.mxu0 0
        %692 = vmatpush1.bf16.msra.mxu0 0
        %693 = vmatprep.subr.bf16.mxu0 0
        %694 = vmatpush1.bf16.msra.mxu0 0
        %695 = vmatprep.subr.bf16.mxu0 0
        %696 = vmatpush1.bf16.msra.mxu0 0
        %697 = vmatprep.subr.bf16.mxu0 0
        %698 = vmatpush1.bf16.msra.mxu0 0
        %699 = vmatprep.mubr.bf16.mxu0 0
        %700 = vmatmul.mubr.bf16.gmra.mrb[0].mxu0 %v662
        %v701 = vpop.f32.mrb[0].mxu0
        %v702 = vadd.f32 %v639, %v701
        %v703 = vpop.f32.mrb[0].mxu0
        %v704 = vpop.f32.mrb[0].mxu0
        %v705 = vadd.f32 %v640, %v704
        %v706 = vpop.f32.mrb[0].mxu0
        %707 = vmatprep.mubr.bf16.mxu0 0
        %708 = vmatmul.mubr.bf16.gmra.mrb[0].mxu0 %v665
        %v709 = vpop.f32.mrb[0].mxu0
        %v710 = vadd.f32 %v641, %v709
        %v711 = vpop.f32.mrb[0].mxu0
        %v712 = vpop.f32.mrb[0].mxu0
        %v713 = vpop.f32.mrb[0].mxu0
        %714 = vdwg.mxu0
        %v715 = vld [vmem:[%s3] sm:$0x1]
        %v716 = vld [vmem:[%s4] sm:$0x1]
        %vm717 = vcmask 261120
        %v718 = vsel %vm717, %v702, 0.0
        %719 = vadd.xlane.f32.xlu0 %v718
        %v720 = vpop.xlane.xlu0 %719
        %v721 = vsel %vm717, %v705, 0.0
        %722 = vadd.xlane.f32.xlu0 %v721
        %v723 = vpop.xlane.xlu0 %722
        %vm724 = vcmask 253952
        %v725 = vsel %vm724, %v710, 0.0
        %726 = vadd.xlane.f32.xlu0 %v725
        %v727 = vpop.xlane.xlu0 %726
        %v728 = vrcp.pop 32.0
        %v729 = vmul.f32 %v720, %v728
        %v730 = vmul.f32 %v723, %v728
        %v731 = vmul.f32 %v727, %v728
        %v732 = vsub.f32 %v702, %v729
        %v733 = vsub.f32 %v705, %v730
        %v734 = vsub.f32 %v710, %v731
        %v735 = vmul.f32 %v732, %v732
        %v736 = vmul.f32 %v733, %v733
        %v737 = vmul.f32 %v734, %v734
        %v738 = vsel %vm717, %v735, 0.0
        %739 = vadd.xlane.f32.xlu0 %v738
        %v740 = vpop.xlane.xlu0 %739
        %v741 = vsel %vm717, %v736, 0.0
        %742 = vadd.xlane.f32.xlu0 %v741
        %v743 = vpop.xlane.xlu0 %742
        %v744 = vsel %vm724, %v737, 0.0
        %745 = vadd.xlane.f32.xlu0 %v744
        %v746 = vpop.xlane.xlu0 %745
        %v747 = vmul.f32 %v740, %v728
        %v748 = vmul.f32 %v743, %v728
        %v749 = vmul.f32 %v746, %v728
        %v750 = vadd.f32 %v747, 1e-05
        %v751 = vadd.f32 %v748, 1e-05
        %v752 = vadd.f32 %v749, 1e-05
        %v753 = vrsqrt.pop %v750
        %v754 = vrsqrt.pop %v751
        %v755 = vrsqrt.pop %v752
        %v756 = vmul.f32 %v732, %v753
        %v757 = vmul.f32 %v733, %v754
        %v758 = vmul.f32 %v734, %v755
        %v760 = vlaneseq
        %v761 = vshrl.u32 %v760, 7
        %v762 = vsub.s32 0, %v761
        %v763 = vrot.slane %v715, %v762
        %v765 = vmul.f32 %v756, %v763
        %v766 = vmul.f32 %v757, %v763
        %v767 = vmul.f32 %v758, %v763
        %v769 = vlaneseq
        %v770 = vshrl.u32 %v769, 7
        %v771 = vsub.s32 0, %v770
        %v772 = vrot.slane %v716, %v771
        %v774 = vadd.f32 %v765, %v772
        %v775 = vadd.f32 %v766, %v772
        %v776 = vadd.f32 %v767, %v772
        %v777 = vpack.c.bf16 %v775, %v774
        %v778 = vpack.c.bf16 %v776, %v776
        %v779 = vld [vmem:[%s5] sm:$0xf]
        %v780 = vld [vmem:[%s5 + $0x4] sm:$0xf]
        %v781 = vld [vmem:[%s5 + $0x8] sm:$0xf]
        %v782 = vld [vmem:[%s5 + $0xc] sm:$0xf]
        %v783 = vld [vmem:[%s5 + $0x10] sm:$0xf]
        %v784 = vld [vmem:[%s5 + $0x14] sm:$0xf]
        %v785 = vld [vmem:[%s5 + $0x18] sm:$0xf]
        %v786 = vld [vmem:[%s5 + $0x1c] sm:$0xf]
        %v787 = vld [vmem:[%s5 + $0x20] sm:$0xf]
        %v788 = vld [vmem:[%s5 + $0x24] sm:$0xf]
        %v789 = vld [vmem:[%s5 + $0x28] sm:$0xf]
        %v790 = vld [vmem:[%s5 + $0x2c] sm:$0xf]
        %v791 = vld [vmem:[%s5 + $0x30] sm:$0xf]
        %v792 = vld [vmem:[%s5 + $0x34] sm:$0xf]
        %v793 = vld [vmem:[%s5 + $0x38] sm:$0xf]
        %v794 = vld [vmem:[%s5 + $0x3c] sm:$0xf]
        %v799 = vunpack.c.l.b16 %v779
        %v800 = vunpack.c.l.b16 %v780
        %v801 = vunpack.c.l.b16 %v781
        %v802 = vunpack.c.l.b16 %v782
        %v803 = vpack.c.b16 %v800, %v799
        %v804 = vpack.c.b16 %v802, %v801
        %v808 = vsel %vm717, %v777, 0
        %v811 = vsel %vm717, %v778, 0
        %813 = vmatprep.subr.bf16.mxu0 0
        %814 = vmatpush1.bf16.msra.mxu0 %v803
        %815 = vmatprep.subr.bf16.mxu0 0
        %816 = vmatpush1.bf16.msra.mxu0 %v804
        %817 = vmatprep.subr.bf16.mxu0 0
        %818 = vmatpush1.bf16.msra.mxu0 0
        %819 = vmatprep.subr.bf16.mxu0 0
        %820 = vmatpush1.bf16.msra.mxu0 0
        %821 = vmatprep.subr.bf16.mxu0 0
        %822 = vmatpush1.bf16.msra.mxu0 0
        %823 = vmatprep.subr.bf16.mxu0 0
        %824 = vmatpush1.bf16.msra.mxu0 0
        %825 = vmatprep.subr.bf16.mxu0 0
        %826 = vmatpush1.bf16.msra.mxu0 0
        %827 = vmatprep.subr.bf16.mxu0 0
        %828 = vmatpush1.bf16.msra.mxu0 0
        %829 = vmatprep.subr.bf16.mxu0 0
        %830 = vmatpush1.bf16.msra.mxu0 0
        %831 = vmatprep.subr.bf16.mxu0 0
        %832 = vmatpush1.bf16.msra.mxu0 0
        %833 = vmatprep.subr.bf16.mxu0 0
        %834 = vmatpush1.bf16.msra.mxu0 0
        %835 = vmatprep.subr.bf16.mxu0 0
        %836 = vmatpush1.bf16.msra.mxu0 0
        %837 = vmatprep.subr.bf16.mxu0 0
        %838 = vmatpush1.bf16.msra.mxu0 0
        %839 = vmatprep.subr.bf16.mxu0 0
        %840 = vmatpush1.bf16.msra.mxu0 0
        %841 = vmatprep.subr.bf16.mxu0 0
        %842 = vmatpush1.bf16.msra.mxu0 0
        %843 = vmatprep.subr.bf16.mxu0 0
        %844 = vmatpush1.bf16.msra.mxu0 0
        %845 = vmatprep.mubr.bf16.mxu0 0
        %846 = vmatmul.mubr.bf16.gmra.mrb[0].mxu0 %v808
        %v847 = vpop.f32.mrb[0].mxu0
        %v848 = vadd.f32 0.0, %v847
        %v849 = vpop.f32.mrb[0].mxu0
        %v850 = vpop.f32.mrb[0].mxu0
        %v851 = vadd.f32 0.0, %v850
        %v852 = vpop.f32.mrb[0].mxu0
        %853 = vmatprep.mubr.bf16.mxu0 0
        %854 = vmatmul.mubr.bf16.gmra.mrb[0].mxu0 %v811
        %v855 = vpop.f32.mrb[0].mxu0
        %v856 = vadd.f32 0.0, %v855
        %v857 = vpop.f32.mrb[0].mxu0
        %v858 = vpop.f32.mrb[0].mxu0
        %v859 = vpop.f32.mrb[0].mxu0
        %860 = vdwg.mxu0
        %v865 = vunpack.c.l.b16 %v783
        %v866 = vunpack.c.l.b16 %v784
        %v867 = vunpack.c.l.b16 %v785
        %v868 = vunpack.c.l.b16 %v786
        %v869 = vpack.c.b16 %v866, %v865
        %v870 = vpack.c.b16 %v868, %v867
        %873 = vmatprep.subr.bf16.mxu0 0
        %874 = vmatpush1.bf16.msra.mxu0 %v869
        %875 = vmatprep.subr.bf16.mxu0 0
        %876 = vmatpush1.bf16.msra.mxu0 %v870
        %877 = vmatprep.subr.bf16.mxu0 0
        %878 = vmatpush1.bf16.msra.mxu0 0
        %879 = vmatprep.subr.bf16.mxu0 0
        %880 = vmatpush1.bf16.msra.mxu0 0
        %881 = vmatprep.subr.bf16.mxu0 0
        %882 = vmatpush1.bf16.msra.mxu0 0
        %883 = vmatprep.subr.bf16.mxu0 0
        %884 = vmatpush1.bf16.msra.mxu0 0
        %885 = vmatprep.subr.bf16.mxu0 0
        %886 = vmatpush1.bf16.msra.mxu0 0
        %887 = vmatprep.subr.bf16.mxu0 0
        %888 = vmatpush1.bf16.msra.mxu0 0
        %889 = vmatprep.subr.bf16.mxu0 0
        %890 = vmatpush1.bf16.msra.mxu0 0
        %891 = vmatprep.subr.bf16.mxu0 0
        %892 = vmatpush1.bf16.msra.mxu0 0
        %893 = vmatprep.subr.bf16.mxu0 0
        %894 = vmatpush1.bf16.msra.mxu0 0
        %895 = vmatprep.subr.bf16.mxu0 0
        %896 = vmatpush1.bf16.msra.mxu0 0
        %897 = vmatprep.subr.bf16.mxu0 0
        %898 = vmatpush1.bf16.msra.mxu0 0
        %899 = vmatprep.subr.bf16.mxu0 0
        %900 = vmatpush1.bf16.msra.mxu0 0
        %901 = vmatprep.subr.bf16.mxu0 0
        %902 = vmatpush1.bf16.msra.mxu0 0
        %903 = vmatprep.subr.bf16.mxu0 0
        %904 = vmatpush1.bf16.msra.mxu0 0
        %905 = vmatprep.mubr.bf16.mxu0 0
        %906 = vmatmul.mubr.bf16.gmra.mrb[0].mxu0 %v808
        %v907 = vpop.f32.mrb[0].mxu0
        %v908 = vadd.f32 0.0, %v907
        %v909 = vpop.f32.mrb[0].mxu0
        %v910 = vpop.f32.mrb[0].mxu0
        %v911 = vadd.f32 0.0, %v910
        %v912 = vpop.f32.mrb[0].mxu0
        %913 = vmatprep.mubr.bf16.mxu0 0
        %914 = vmatmul.mubr.bf16.gmra.mrb[0].mxu0 %v811
        %v915 = vpop.f32.mrb[0].mxu0
        %v916 = vadd.f32 0.0, %v915
        %v917 = vpop.f32.mrb[0].mxu0
        %v918 = vpop.f32.mrb[0].mxu0
        %v919 = vpop.f32.mrb[0].mxu0
        %920 = vdwg.mxu0
        %v925 = vunpack.c.l.b16 %v787
        %v926 = vunpack.c.l.b16 %v788
        %v927 = vunpack.c.l.b16 %v789
        %v928 = vunpack.c.l.b16 %v790
        %v929 = vpack.c.b16 %v926, %v925
        %v930 = vpack.c.b16 %v928, %v927
        %933 = vmatprep.subr.bf16.mxu0 0
        %934 = vmatpush1.bf16.msra.mxu0 %v929
        %935 = vmatprep.subr.bf16.mxu0 0
        %936 = vmatpush1.bf16.msra.mxu0 %v930
        %937 = vmatprep.subr.bf16.mxu0 0
        %938 = vmatpush1.bf16.msra.mxu0 0
        %939 = vmatprep.subr.bf16.mxu0 0
        %940 = vmatpush1.bf16.msra.mxu0 0
        %941 = vmatprep.subr.bf16.mxu0 0
        %942 = vmatpush1.bf16.msra.mxu0 0
        %943 = vmatprep.subr.bf16.mxu0 0
        %944 = vmatpush1.bf16.msra.mxu0 0
        %945 = vmatprep.subr.bf16.mxu0 0
        %946 = vmatpush1.bf16.msra.mxu0 0
        %947 = vmatprep.subr.bf16.mxu0 0
        %948 = vmatpush1.bf16.msra.mxu0 0
        %949 = vmatprep.subr.bf16.mxu0 0
        %950 = vmatpush1.bf16.msra.mxu0 0
        %951 = vmatprep.subr.bf16.mxu0 0
        %952 = vmatpush1.bf16.msra.mxu0 0
        %953 = vmatprep.subr.bf16.mxu0 0
        %954 = vmatpush1.bf16.msra.mxu0 0
        %955 = vmatprep.subr.bf16.mxu0 0
        %956 = vmatpush1.bf16.msra.mxu0 0
        %957 = vmatprep.subr.bf16.mxu0 0
        %958 = vmatpush1.bf16.msra.mxu0 0
        %959 = vmatprep.subr.bf16.mxu0 0
        %960 = vmatpush1.bf16.msra.mxu0 0
        %961 = vmatprep.subr.bf16.mxu0 0
        %962 = vmatpush1.bf16.msra.mxu0 0
        %963 = vmatprep.subr.bf16.mxu0 0
        %964 = vmatpush1.bf16.msra.mxu0 0
        %965 = vmatprep.mubr.bf16.mxu0 0
        %966 = vmatmul.mubr.bf16.gmra.mrb[0].mxu0 %v808
        %v967 = vpop.f32.mrb[0].mxu0
        %v968 = vadd.f32 0.0, %v967
        %v969 = vpop.f32.mrb[0].mxu0
        %v970 = vpop.f32.mrb[0].mxu0
        %v971 = vadd.f32 0.0, %v970
        %v972 = vpop.f32.mrb[0].mxu0
        %973 = vmatprep.mubr.bf16.mxu0 0
        %974 = vmatmul.mubr.bf16.gmra.mrb[0].mxu0 %v811
        %v975 = vpop.f32.mrb[0].mxu0
        %v976 = vadd.f32 0.0, %v975
        %v977 = vpop.f32.mrb[0].mxu0
        %v978 = vpop.f32.mrb[0].mxu0
        %v979 = vpop.f32.mrb[0].mxu0
        %980 = vdwg.mxu0
        %v985 = vunpack.c.l.b16 %v791
        %v986 = vunpack.c.l.b16 %v792
        %v987 = vunpack.c.l.b16 %v793
        %v988 = vunpack.c.l.b16 %v794
        %v989 = vpack.c.b16 %v986, %v985
        %v990 = vpack.c.b16 %v988, %v987
        %993 = vmatprep.subr.bf16.mxu0 0
        %994 = vmatpush1.bf16.msra.mxu0 %v989
        %995 = vmatprep.subr.bf16.mxu0 0
        %996 = vmatpush1.bf16.msra.mxu0 %v990
        %997 = vmatprep.subr.bf16.mxu0 0
        %998 = vmatpush1.bf16.msra.mxu0 0
        %999 = vmatprep.subr.bf16.mxu0 0
        %1000 = vmatpush1.bf16.msra.mxu0 0
        %1001 = vmatprep.subr.bf16.mxu0 0
        %1002 = vmatpush1.bf16.msra.mxu0 0
        %1003 = vmatprep.subr.bf16.mxu0 0
        %1004 = vmatpush1.bf16.msra.mxu0 0
        %1005 = vmatprep.subr.bf16.mxu0 0
        %1006 = vmatpush1.bf16.msra.mxu0 0
        %1007 = vmatprep.subr.bf16.mxu0 0
        %1008 = vmatpush1.bf16.msra.mxu0 0
        %1009 = vmatprep.subr.bf16.mxu0 0
        %1010 = vmatpush1.bf16.msra.mxu0 0
        %1011 = vmatprep.subr.bf16.mxu0 0
        %1012 = vmatpush1.bf16.msra.mxu0 0
        %1013 = vmatprep.subr.bf16.mxu0 0
        %1014 = vmatpush1.bf16.msra.mxu0 0
        %1015 = vmatprep.subr.bf16.mxu0 0
        %1016 = vmatpush1.bf16.msra.mxu0 0
        %1017 = vmatprep.subr.bf16.mxu0 0
        %1018 = vmatpush1.bf16.msra.mxu0 0
        %1019 = vmatprep.subr.bf16.mxu0 0
        %1020 = vmatpush1.bf16.msra.mxu0 0
        %1021 = vmatprep.subr.bf16.mxu0 0
        %1022 = vmatpush1.bf16.msra.mxu0 0
        %1023 = vmatprep.subr.bf16.mxu0 0
        %1024 = vmatpush1.bf16.msra.mxu0 0
        %1025 = vmatprep.mubr.bf16.mxu0 0
        %1026 = vmatmul.mubr.bf16.gmra.mrb[0].mxu0 %v808
        %v1027 = vpop.f32.mrb[0].mxu0
        %v1028 = vadd.f32 0.0, %v1027
        %v1029 = vpop.f32.mrb[0].mxu0
        %v1030 = vpop.f32.mrb[0].mxu0
        %v1031 = vadd.f32 0.0, %v1030
        %v1032 = vpop.f32.mrb[0].mxu0
        %1033 = vmatprep.mubr.bf16.mxu0 0
        %1034 = vmatmul.mubr.bf16.gmra.mrb[0].mxu0 %v811
        %v1035 = vpop.f32.mrb[0].mxu0
        %v1036 = vadd.f32 0.0, %v1035
        %v1037 = vpop.f32.mrb[0].mxu0
        %v1038 = vpop.f32.mrb[0].mxu0
        %v1039 = vpop.f32.mrb[0].mxu0
        %1040 = vdwg.mxu0
        %v1041 = vld [vmem:[%s6] sm:$0xf]
        %v1042 = vld [vmem:[%s6 + $0x4] sm:$0xf]
        %v1043 = vld [vmem:[%s6 + $0x8] sm:$0xf]
        %v1044 = vld [vmem:[%s6 + $0xc] sm:$0xf]
        %v1045 = vld [vmem:[%s6 + $0x10] sm:$0xf]
        %v1046 = vld [vmem:[%s6 + $0x14] sm:$0xf]
        %v1047 = vld [vmem:[%s6 + $0x18] sm:$0xf]
        %v1048 = vld [vmem:[%s6 + $0x1c] sm:$0xf]
        %v1049 = vld [vmem:[%s6 + $0x20] sm:$0xf]
        %v1050 = vld [vmem:[%s6 + $0x24] sm:$0xf]
        %v1051 = vld [vmem:[%s6 + $0x28] sm:$0xf]
        %v1052 = vld [vmem:[%s6 + $0x2c] sm:$0xf]
        %v1053 = vld [vmem:[%s6 + $0x30] sm:$0xf]
        %v1054 = vld [vmem:[%s6 + $0x34] sm:$0xf]
        %v1055 = vld [vmem:[%s6 + $0x38] sm:$0xf]
        %v1056 = vld [vmem:[%s6 + $0x3c] sm:$0xf]
        %v1061 = vunpack.c.l.b16 %v1041
        %v1062 = vunpack.c.l.b16 %v1042
        %v1063 = vunpack.c.l.b16 %v1043
        %v1064 = vunpack.c.l.b16 %v1044
        %v1065 = vpack.c.b16 %v1062, %v1061
        %v1066 = vpack.c.b16 %v1064, %v1063
        %1069 = vmatprep.subr.bf16.mxu0 0
        %1070 = vmatpush1.bf16.msra.mxu0 %v1065
        %1071 = vmatprep.subr.bf16.mxu0 0
        %1072 = vmatpush1.bf16.msra.mxu0 %v1066
        %1073 = vmatprep.subr.bf16.mxu0 0
        %1074 = vmatpush1.bf16.msra.mxu0 0
        %1075 = vmatprep.subr.bf16.mxu0 0
        %1076 = vmatpush1.bf16.msra.mxu0 0
        %1077 = vmatprep.subr.bf16.mxu0 0
        %1078 = vmatpush1.bf16.msra.mxu0 0
        %1079 = vmatprep.subr.bf16.mxu0 0
        %1080 = vmatpush1.bf16.msra.mxu0 0
        %1081 = vmatprep.subr.bf16.mxu0 0
        %1082 = vmatpush1.bf16.msra.mxu0 0
        %1083 = vmatprep.subr.bf16.mxu0 0
        %1084 = vmatpush1.bf16.msra.mxu0 0
        %1085 = vmatprep.subr.bf16.mxu0 0
        %1086 = vmatpush1.bf16.msra.mxu0 0
        %1087 = vmatprep.subr.bf16.mxu0 0
        %1088 = vmatpush1.bf16.msra.mxu0 0
        %1089 = vmatprep.subr.bf16.mxu0 0
        %1090 = vmatpush1.bf16.msra.mxu0 0
        %1091 = vmatprep.subr.bf16.mxu0 0
        %1092 = vmatpush1.bf16.msra.mxu0 0
        %1093 = vmatprep.subr.bf16.mxu0 0
        %1094 = vmatpush1.bf16.msra.mxu0 0
        %1095 = vmatprep.subr.bf16.mxu0 0
        %1096 = vmatpush1.bf16.msra.mxu0 0
        %1097 = vmatprep.subr.bf16.mxu0 0
        %1098 = vmatpush1.bf16.msra.mxu0 0
        %1099 = vmatprep.subr.bf16.mxu0 0
        %1100 = vmatpush1.bf16.msra.mxu0 0
        %1101 = vmatprep.mubr.bf16.mxu0 0
        %1102 = vmatmul.mubr.bf16.gmra.mrb[0].mxu0 %v808
        %v1103 = vpop.f32.mrb[0].mxu0
        %v1104 = vadd.f32 0.0, %v1103
        %v1105 = vpop.f32.mrb[0].mxu0
        %v1106 = vpop.f32.mrb[0].mxu0
        %v1107 = vadd.f32 0.0, %v1106
        %v1108 = vpop.f32.mrb[0].mxu0
        %1109 = vmatprep.mubr.bf16.mxu0 0
        %1110 = vmatmul.mubr.bf16.gmra.mrb[0].mxu0 %v811
        %v1111 = vpop.f32.mrb[0].mxu0
        %v1112 = vadd.f32 0.0, %v1111
        %v1113 = vpop.f32.mrb[0].mxu0
        %v1114 = vpop.f32.mrb[0].mxu0
        %v1115 = vpop.f32.mrb[0].mxu0
        %1116 = vdwg.mxu0
        %v1121 = vunpack.c.l.b16 %v1045
        %v1122 = vunpack.c.l.b16 %v1046
        %v1123 = vunpack.c.l.b16 %v1047
        %v1124 = vunpack.c.l.b16 %v1048
        %v1125 = vpack.c.b16 %v1122, %v1121
        %v1126 = vpack.c.b16 %v1124, %v1123
        %1129 = vmatprep.subr.bf16.mxu0 0
        %1130 = vmatpush1.bf16.msra.mxu0 %v1125
        %1131 = vmatprep.subr.bf16.mxu0 0
        %1132 = vmatpush1.bf16.msra.mxu0 %v1126
        %1133 = vmatprep.subr.bf16.mxu0 0
        %1134 = vmatpush1.bf16.msra.mxu0 0
        %1135 = vmatprep.subr.bf16.mxu0 0
        %1136 = vmatpush1.bf16.msra.mxu0 0
        %1137 = vmatprep.subr.bf16.mxu0 0
        %1138 = vmatpush1.bf16.msra.mxu0 0
        %1139 = vmatprep.subr.bf16.mxu0 0
        %1140 = vmatpush1.bf16.msra.mxu0 0
        %1141 = vmatprep.subr.bf16.mxu0 0
        %1142 = vmatpush1.bf16.msra.mxu0 0
        %1143 = vmatprep.subr.bf16.mxu0 0
        %1144 = vmatpush1.bf16.msra.mxu0 0
        %1145 = vmatprep.subr.bf16.mxu0 0
        %1146 = vmatpush1.bf16.msra.mxu0 0
        %1147 = vmatprep.subr.bf16.mxu0 0
        %1148 = vmatpush1.bf16.msra.mxu0 0
        %1149 = vmatprep.subr.bf16.mxu0 0
        %1150 = vmatpush1.bf16.msra.mxu0 0
        %1151 = vmatprep.subr.bf16.mxu0 0
        %1152 = vmatpush1.bf16.msra.mxu0 0
        %1153 = vmatprep.subr.bf16.mxu0 0
        %1154 = vmatpush1.bf16.msra.mxu0 0
        %1155 = vmatprep.subr.bf16.mxu0 0
        %1156 = vmatpush1.bf16.msra.mxu0 0
        %1157 = vmatprep.subr.bf16.mxu0 0
        %1158 = vmatpush1.bf16.msra.mxu0 0
        %1159 = vmatprep.subr.bf16.mxu0 0
        %1160 = vmatpush1.bf16.msra.mxu0 0
        %1161 = vmatprep.mubr.bf16.mxu0 0
        %1162 = vmatmul.mubr.bf16.gmra.mrb[0].mxu0 %v808
        %v1163 = vpop.f32.mrb[0].mxu0
        %v1164 = vadd.f32 0.0, %v1163
        %v1165 = vpop.f32.mrb[0].mxu0
        %v1166 = vpop.f32.mrb[0].mxu0
        %v1167 = vadd.f32 0.0, %v1166
        %v1168 = vpop.f32.mrb[0].mxu0
        %1169 = vmatprep.mubr.bf16.mxu0 0
        %1170 = vmatmul.mubr.bf16.gmra.mrb[0].mxu0 %v811
        %v1171 = vpop.f32.mrb[0].mxu0
        %v1172 = vadd.f32 0.0, %v1171
        %v1173 = vpop.f32.mrb[0].mxu0
        %v1174 = vpop.f32.mrb[0].mxu0
        %v1175 = vpop.f32.mrb[0].mxu0
        %1176 = vdwg.mxu0
        %v1181 = vunpack.c.l.b16 %v1049
        %v1182 = vunpack.c.l.b16 %v1050
        %v1183 = vunpack.c.l.b16 %v1051
        %v1184 = vunpack.c.l.b16 %v1052
        %v1185 = vpack.c.b16 %v1182, %v1181
        %v1186 = vpack.c.b16 %v1184, %v1183
        %1189 = vmatprep.subr.bf16.mxu0 0
        %1190 = vmatpush1.bf16.msra.mxu0 %v1185
        %1191 = vmatprep.subr.bf16.mxu0 0
        %1192 = vmatpush1.bf16.msra.mxu0 %v1186
        %1193 = vmatprep.subr.bf16.mxu0 0
        %1194 = vmatpush1.bf16.msra.mxu0 0
        %1195 = vmatprep.subr.bf16.mxu0 0
        %1196 = vmatpush1.bf16.msra.mxu0 0
        %1197 = vmatprep.subr.bf16.mxu0 0
        %1198 = vmatpush1.bf16.msra.mxu0 0
        %1199 = vmatprep.subr.bf16.mxu0 0
        %1200 = vmatpush1.bf16.msra.mxu0 0
        %1201 = vmatprep.subr.bf16.mxu0 0
        %1202 = vmatpush1.bf16.msra.mxu0 0
        %1203 = vmatprep.subr.bf16.mxu0 0
        %1204 = vmatpush1.bf16.msra.mxu0 0
        %1205 = vmatprep.subr.bf16.mxu0 0
        %1206 = vmatpush1.bf16.msra.mxu0 0
        %1207 = vmatprep.subr.bf16.mxu0 0
        %1208 = vmatpush1.bf16.msra.mxu0 0
        %1209 = vmatprep.subr.bf16.mxu0 0
        %1210 = vmatpush1.bf16.msra.mxu0 0
        %1211 = vmatprep.subr.bf16.mxu0 0
        %1212 = vmatpush1.bf16.msra.mxu0 0
        %1213 = vmatprep.subr.bf16.mxu0 0
        %1214 = vmatpush1.bf16.msra.mxu0 0
        %1215 = vmatprep.subr.bf16.mxu0 0
        %1216 = vmatpush1.bf16.msra.mxu0 0
        %1217 = vmatprep.subr.bf16.mxu0 0
        %1218 = vmatpush1.bf16.msra.mxu0 0
        %1219 = vmatprep.subr.bf16.mxu0 0
        %1220 = vmatpush1.bf16.msra.mxu0 0
        %1221 = vmatprep.mubr.bf16.mxu0 0
        %1222 = vmatmul.mubr.bf16.gmra.mrb[0].mxu0 %v808
        %v1223 = vpop.f32.mrb[0].mxu0
        %v1224 = vadd.f32 0.0, %v1223
        %v1225 = vpop.f32.mrb[0].mxu0
        %v1226 = vpop.f32.mrb[0].mxu0
        %v1227 = vadd.f32 0.0, %v1226
        %v1228 = vpop.f32.mrb[0].mxu0
        %1229 = vmatprep.mubr.bf16.mxu0 0
        %1230 = vmatmul.mubr.bf16.gmra.mrb[0].mxu0 %v811
        %v1231 = vpop.f32.mrb[0].mxu0
        %v1232 = vadd.f32 0.0, %v1231
        %v1233 = vpop.f32.mrb[0].mxu0
        %v1234 = vpop.f32.mrb[0].mxu0
        %v1235 = vpop.f32.mrb[0].mxu0
        %1236 = vdwg.mxu0
        %v1241 = vunpack.c.l.b16 %v1053
        %v1242 = vunpack.c.l.b16 %v1054
        %v1243 = vunpack.c.l.b16 %v1055
        %v1244 = vunpack.c.l.b16 %v1056
        %v1245 = vpack.c.b16 %v1242, %v1241
        %v1246 = vpack.c.b16 %v1244, %v1243
        %1249 = vmatprep.subr.bf16.mxu0 0
        %1250 = vmatpush1.bf16.msra.mxu0 %v1245
        %1251 = vmatprep.subr.bf16.mxu0 0
        %1252 = vmatpush1.bf16.msra.mxu0 %v1246
        %1253 = vmatprep.subr.bf16.mxu0 0
        %1254 = vmatpush1.bf16.msra.mxu0 0
        %1255 = vmatprep.subr.bf16.mxu0 0
        %1256 = vmatpush1.bf16.msra.mxu0 0
        %1257 = vmatprep.subr.bf16.mxu0 0
        %1258 = vmatpush1.bf16.msra.mxu0 0
        %1259 = vmatprep.subr.bf16.mxu0 0
        %1260 = vmatpush1.bf16.msra.mxu0 0
        %1261 = vmatprep.subr.bf16.mxu0 0
        %1262 = vmatpush1.bf16.msra.mxu0 0
        %1263 = vmatprep.subr.bf16.mxu0 0
        %1264 = vmatpush1.bf16.msra.mxu0 0
        %1265 = vmatprep.subr.bf16.mxu0 0
        %1266 = vmatpush1.bf16.msra.mxu0 0
        %1267 = vmatprep.subr.bf16.mxu0 0
        %1268 = vmatpush1.bf16.msra.mxu0 0
        %1269 = vmatprep.subr.bf16.mxu0 0
        %1270 = vmatpush1.bf16.msra.mxu0 0
        %1271 = vmatprep.subr.bf16.mxu0 0
        %1272 = vmatpush1.bf16.msra.mxu0 0
        %1273 = vmatprep.subr.bf16.mxu0 0
        %1274 = vmatpush1.bf16.msra.mxu0 0
        %1275 = vmatprep.subr.bf16.mxu0 0
        %1276 = vmatpush1.bf16.msra.mxu0 0
        %1277 = vmatprep.subr.bf16.mxu0 0
        %1278 = vmatpush1.bf16.msra.mxu0 0
        %1279 = vmatprep.subr.bf16.mxu0 0
        %1280 = vmatpush1.bf16.msra.mxu0 0
        %1281 = vmatprep.mubr.bf16.mxu0 0
        %1282 = vmatmul.mubr.bf16.gmra.mrb[0].mxu0 %v808
        %v1283 = vpop.f32.mrb[0].mxu0
        %v1284 = vadd.f32 0.0, %v1283
        %v1285 = vpop.f32.mrb[0].mxu0
        %v1286 = vpop.f32.mrb[0].mxu0
        %v1287 = vadd.f32 0.0, %v1286
        %v1288 = vpop.f32.mrb[0].mxu0
        %1289 = vmatprep.mubr.bf16.mxu0 0
        %1290 = vmatmul.mubr.bf16.gmra.mrb[0].mxu0 %v811
        %v1291 = vpop.f32.mrb[0].mxu0
        %v1292 = vadd.f32 0.0, %v1291
        %v1293 = vpop.f32.mrb[0].mxu0
        %v1294 = vpop.f32.mrb[0].mxu0
        %v1295 = vpop.f32.mrb[0].mxu0
        %1296 = vdwg.mxu0
        %v1297 = vld [vmem:[%s7] sm:$0xf]
        %v1298 = vld [vmem:[%s7 + $0x4] sm:$0xf]
        %v1299 = vld [vmem:[%s7 + $0x8] sm:$0xf]
        %v1300 = vld [vmem:[%s7 + $0xc] sm:$0xf]
        %v1301 = vld [vmem:[%s7 + $0x10] sm:$0xf]
        %v1302 = vld [vmem:[%s7 + $0x14] sm:$0xf]
        %v1303 = vld [vmem:[%s7 + $0x18] sm:$0xf]
        %v1304 = vld [vmem:[%s7 + $0x1c] sm:$0xf]
        %v1305 = vld [vmem:[%s7 + $0x20] sm:$0xf]
        %v1306 = vld [vmem:[%s7 + $0x24] sm:$0xf]
        %v1307 = vld [vmem:[%s7 + $0x28] sm:$0xf]
        %v1308 = vld [vmem:[%s7 + $0x2c] sm:$0xf]
        %v1309 = vld [vmem:[%s7 + $0x30] sm:$0xf]
        %v1310 = vld [vmem:[%s7 + $0x34] sm:$0xf]
        %v1311 = vld [vmem:[%s7 + $0x38] sm:$0xf]
        %v1312 = vld [vmem:[%s7 + $0x3c] sm:$0xf]
        %v1317 = vunpack.c.l.b16 %v1297
        %v1318 = vunpack.c.l.b16 %v1298
        %v1319 = vunpack.c.l.b16 %v1299
        %v1320 = vunpack.c.l.b16 %v1300
        %v1321 = vpack.c.b16 %v1318, %v1317
        %v1322 = vpack.c.b16 %v1320, %v1319
        %1325 = vmatprep.subr.bf16.mxu0 0
        %1326 = vmatpush1.bf16.msra.mxu0 %v1321
        %1327 = vmatprep.subr.bf16.mxu0 0
        %1328 = vmatpush1.bf16.msra.mxu0 %v1322
        %1329 = vmatprep.subr.bf16.mxu0 0
        %1330 = vmatpush1.bf16.msra.mxu0 0
        %1331 = vmatprep.subr.bf16.mxu0 0
        %1332 = vmatpush1.bf16.msra.mxu0 0
        %1333 = vmatprep.subr.bf16.mxu0 0
        %1334 = vmatpush1.bf16.msra.mxu0 0
        %1335 = vmatprep.subr.bf16.mxu0 0
        %1336 = vmatpush1.bf16.msra.mxu0 0
        %1337 = vmatprep.subr.bf16.mxu0 0
        %1338 = vmatpush1.bf16.msra.mxu0 0
        %1339 = vmatprep.subr.bf16.mxu0 0
        %1340 = vmatpush1.bf16.msra.mxu0 0
        %1341 = vmatprep.subr.bf16.mxu0 0
        %1342 = vmatpush1.bf16.msra.mxu0 0
        %1343 = vmatprep.subr.bf16.mxu0 0
        %1344 = vmatpush1.bf16.msra.mxu0 0
        %1345 = vmatprep.subr.bf16.mxu0 0
        %1346 = vmatpush1.bf16.msra.mxu0 0
        %1347 = vmatprep.subr.bf16.mxu0 0
        %1348 = vmatpush1.bf16.msra.mxu0 0
        %1349 = vmatprep.subr.bf16.mxu0 0
        %1350 = vmatpush1.bf16.msra.mxu0 0
        %1351 = vmatprep.subr.bf16.mxu0 0
        %1352 = vmatpush1.bf16.msra.mxu0 0
        %1353 = vmatprep.subr.bf16.mxu0 0
        %1354 = vmatpush1.bf16.msra.mxu0 0
        %1355 = vmatprep.subr.bf16.mxu0 0
        %1356 = vmatpush1.bf16.msra.mxu0 0
        %1357 = vmatprep.mubr.bf16.mxu0 0
        %1358 = vmatmul.mubr.bf16.gmra.mrb[0].mxu0 %v808
        %v1359 = vpop.f32.mrb[0].mxu0
        %v1360 = vadd.f32 0.0, %v1359
        %v1361 = vpop.f32.mrb[0].mxu0
        %v1362 = vpop.f32.mrb[0].mxu0
        %v1363 = vadd.f32 0.0, %v1362
        %v1364 = vpop.f32.mrb[0].mxu0
        %1365 = vmatprep.mubr.bf16.mxu0 0
        %1366 = vmatmul.mubr.bf16.gmra.mrb[0].mxu0 %v811
        %v1367 = vpop.f32.mrb[0].mxu0
        %v1368 = vadd.f32 0.0, %v1367
        %v1369 = vpop.f32.mrb[0].mxu0
        %v1370 = vpop.f32.mrb[0].mxu0
        %v1371 = vpop.f32.mrb[0].mxu0
        %1372 = vdwg.mxu0
        %v1377 = vunpack.c.l.b16 %v1301
        %v1378 = vunpack.c.l.b16 %v1302
        %v1379 = vunpack.c.l.b16 %v1303
        %v1380 = vunpack.c.l.b16 %v1304
        %v1381 = vpack.c.b16 %v1378, %v1377
        %v1382 = vpack.c.b16 %v1380, %v1379
        %1385 = vmatprep.subr.bf16.mxu0 0
        %1386 = vmatpush1.bf16.msra.mxu0 %v1381
        %1387 = vmatprep.subr.bf16.mxu0 0
        %1388 = vmatpush1.bf16.msra.mxu0 %v1382
        %1389 = vmatprep.subr.bf16.mxu0 0
        %1390 = vmatpush1.bf16.msra.mxu0 0
        %1391 = vmatprep.subr.bf16.mxu0 0
        %1392 = vmatpush1.bf16.msra.mxu0 0
        %1393 = vmatprep.subr.bf16.mxu0 0
        %1394 = vmatpush1.bf16.msra.mxu0 0
        %1395 = vmatprep.subr.bf16.mxu0 0
        %1396 = vmatpush1.bf16.msra.mxu0 0
        %1397 = vmatprep.subr.bf16.mxu0 0
        %1398 = vmatpush1.bf16.msra.mxu0 0
        %1399 = vmatprep.subr.bf16.mxu0 0
        %1400 = vmatpush1.bf16.msra.mxu0 0
        %1401 = vmatprep.subr.bf16.mxu0 0
        %1402 = vmatpush1.bf16.msra.mxu0 0
        %1403 = vmatprep.subr.bf16.mxu0 0
        %1404 = vmatpush1.bf16.msra.mxu0 0
        %1405 = vmatprep.subr.bf16.mxu0 0
        %1406 = vmatpush1.bf16.msra.mxu0 0
        %1407 = vmatprep.subr.bf16.mxu0 0
        %1408 = vmatpush1.bf16.msra.mxu0 0
        %1409 = vmatprep.subr.bf16.mxu0 0
        %1410 = vmatpush1.bf16.msra.mxu0 0
        %1411 = vmatprep.subr.bf16.mxu0 0
        %1412 = vmatpush1.bf16.msra.mxu0 0
        %1413 = vmatprep.subr.bf16.mxu0 0
        %1414 = vmatpush1.bf16.msra.mxu0 0
        %1415 = vmatprep.subr.bf16.mxu0 0
        %1416 = vmatpush1.bf16.msra.mxu0 0
        %1417 = vmatprep.mubr.bf16.mxu0 0
        %1418 = vmatmul.mubr.bf16.gmra.mrb[0].mxu0 %v808
        %v1419 = vpop.f32.mrb[0].mxu0
        %v1420 = vadd.f32 0.0, %v1419
        %v1421 = vpop.f32.mrb[0].mxu0
        %v1422 = vpop.f32.mrb[0].mxu0
        %v1423 = vadd.f32 0.0, %v1422
        %v1424 = vpop.f32.mrb[0].mxu0
        %1425 = vmatprep.mubr.bf16.mxu0 0
        %1426 = vmatmul.mubr.bf16.gmra.mrb[0].mxu0 %v811
        %v1427 = vpop.f32.mrb[0].mxu0
        %v1428 = vadd.f32 0.0, %v1427
        %v1429 = vpop.f32.mrb[0].mxu0
        %v1430 = vpop.f32.mrb[0].mxu0
        %v1431 = vpop.f32.mrb[0].mxu0
        %1432 = vdwg.mxu0
        %v1437 = vunpack.c.l.b16 %v1305
        %v1438 = vunpack.c.l.b16 %v1306
        %v1439 = vunpack.c.l.b16 %v1307
        %v1440 = vunpack.c.l.b16 %v1308
        %v1441 = vpack.c.b16 %v1438, %v1437
        %v1442 = vpack.c.b16 %v1440, %v1439
        %1445 = vmatprep.subr.bf16.mxu0 0
        %1446 = vmatpush1.bf16.msra.mxu0 %v1441
        %1447 = vmatprep.subr.bf16.mxu0 0
        %1448 = vmatpush1.bf16.msra.mxu0 %v1442
        %1449 = vmatprep.subr.bf16.mxu0 0
        %1450 = vmatpush1.bf16.msra.mxu0 0
        %1451 = vmatprep.subr.bf16.mxu0 0
        %1452 = vmatpush1.bf16.msra.mxu0 0
        %1453 = vmatprep.subr.bf16.mxu0 0
        %1454 = vmatpush1.bf16.msra.mxu0 0
        %1455 = vmatprep.subr.bf16.mxu0 0
        %1456 = vmatpush1.bf16.msra.mxu0 0
        %1457 = vmatprep.subr.bf16.mxu0 0
        %1458 = vmatpush1.bf16.msra.mxu0 0
        %1459 = vmatprep.subr.bf16.mxu0 0
        %1460 = vmatpush1.bf16.msra.mxu0 0
        %1461 = vmatprep.subr.bf16.mxu0 0
        %1462 = vmatpush1.bf16.msra.mxu0 0
        %1463 = vmatprep.subr.bf16.mxu0 0
        %1464 = vmatpush1.bf16.msra.mxu0 0
        %1465 = vmatprep.subr.bf16.mxu0 0
        %1466 = vmatpush1.bf16.msra.mxu0 0
        %1467 = vmatprep.subr.bf16.mxu0 0
        %1468 = vmatpush1.bf16.msra.mxu0 0
        %1469 = vmatprep.subr.bf16.mxu0 0
        %1470 = vmatpush1.bf16.msra.mxu0 0
        %1471 = vmatprep.subr.bf16.mxu0 0
        %1472 = vmatpush1.bf16.msra.mxu0 0
        %1473 = vmatprep.subr.bf16.mxu0 0
        %1474 = vmatpush1.bf16.msra.mxu0 0
        %1475 = vmatprep.subr.bf16.mxu0 0
        %1476 = vmatpush1.bf16.msra.mxu0 0
        %1477 = vmatprep.mubr.bf16.mxu0 0
        %1478 = vmatmul.mubr.bf16.gmra.mrb[0].mxu0 %v808
        %v1479 = vpop.f32.mrb[0].mxu0
        %v1480 = vadd.f32 0.0, %v1479
        %v1481 = vpop.f32.mrb[0].mxu0
        %v1482 = vpop.f32.mrb[0].mxu0
        %v1483 = vadd.f32 0.0, %v1482
        %v1484 = vpop.f32.mrb[0].mxu0
        %1485 = vmatprep.mubr.bf16.mxu0 0
        %1486 = vmatmul.mubr.bf16.gmra.mrb[0].mxu0 %v811
        %v1487 = vpop.f32.mrb[0].mxu0
        %v1488 = vadd.f32 0.0, %v1487
        %v1489 = vpop.f32.mrb[0].mxu0
        %v1490 = vpop.f32.mrb[0].mxu0
        %v1491 = vpop.f32.mrb[0].mxu0
        %1492 = vdwg.mxu0
        %v1497 = vunpack.c.l.b16 %v1309
        %v1498 = vunpack.c.l.b16 %v1310
        %v1499 = vunpack.c.l.b16 %v1311
        %v1500 = vunpack.c.l.b16 %v1312
        %v1501 = vpack.c.b16 %v1498, %v1497
        %v1502 = vpack.c.b16 %v1500, %v1499
        %1505 = vmatprep.subr.bf16.mxu0 0
        %1506 = vmatpush1.bf16.msra.mxu0 %v1501
        %1507 = vmatprep.subr.bf16.mxu0 0
        %1508 = vmatpush1.bf16.msra.mxu0 %v1502
        %1509 = vmatprep.subr.bf16.mxu0 0
        %1510 = vmatpush1.bf16.msra.mxu0 0
        %1511 = vmatprep.subr.bf16.mxu0 0
        %1512 = vmatpush1.bf16.msra.mxu0 0
        %1513 = vmatprep.subr.bf16.mxu0 0
        %1514 = vmatpush1.bf16.msra.mxu0 0
        %1515 = vmatprep.subr.bf16.mxu0 0
        %1516 = vmatpush1.bf16.msra.mxu0 0
        %1517 = vmatprep.subr.bf16.mxu0 0
        %1518 = vmatpush1.bf16.msra.mxu0 0
        %1519 = vmatprep.subr.bf16.mxu0 0
        %1520 = vmatpush1.bf16.msra.mxu0 0
        %1521 = vmatprep.subr.bf16.mxu0 0
        %1522 = vmatpush1.bf16.msra.mxu0 0
        %1523 = vmatprep.subr.bf16.mxu0 0
        %1524 = vmatpush1.bf16.msra.mxu0 0
        %1525 = vmatprep.subr.bf16.mxu0 0
        %1526 = vmatpush1.bf16.msra.mxu0 0
        %1527 = vmatprep.subr.bf16.mxu0 0
        %1528 = vmatpush1.bf16.msra.mxu0 0
        %1529 = vmatprep.subr.bf16.mxu0 0
        %1530 = vmatpush1.bf16.msra.mxu0 0
        %1531 = vmatprep.subr.bf16.mxu0 0
        %1532 = vmatpush1.bf16.msra.mxu0 0
        %1533 = vmatprep.subr.bf16.mxu0 0
        %1534 = vmatpush1.bf16.msra.mxu0 0
        %1535 = vmatprep.subr.bf16.mxu0 0
        %1536 = vmatpush1.bf16.msra.mxu0 0
        %1537 = vmatprep.mubr.bf16.mxu0 0
        %1538 = vmatmul.mubr.bf16.gmra.mrb[0].mxu0 %v808
        %v1539 = vpop.f32.mrb[0].mxu0
        %v1540 = vadd.f32 0.0, %v1539
        %v1541 = vpop.f32.mrb[0].mxu0
        %v1542 = vpop.f32.mrb[0].mxu0
        %v1543 = vadd.f32 0.0, %v1542
        %v1544 = vpop.f32.mrb[0].mxu0
        %1545 = vmatprep.mubr.bf16.mxu0 0
        %1546 = vmatmul.mubr.bf16.gmra.mrb[0].mxu0 %v811
        %v1547 = vpop.f32.mrb[0].mxu0
        %v1548 = vadd.f32 0.0, %v1547
        %v1549 = vpop.f32.mrb[0].mxu0
        %v1550 = vpop.f32.mrb[0].mxu0
        %v1551 = vpop.f32.mrb[0].mxu0
        %1552 = vdwg.mxu0
        %v1553 = vpack.c.bf16 %v851, %v848
        %v1554 = vpack.c.bf16 %v856, %v856
        %v1555 = vpack.c.bf16 %v911, %v908
        %v1556 = vpack.c.bf16 %v916, %v916
        %v1557 = vpack.c.bf16 %v971, %v968
        %v1558 = vpack.c.bf16 %v976, %v976
        %v1559 = vpack.c.bf16 %v1031, %v1028
        %v1560 = vpack.c.bf16 %v1036, %v1036
        %v1561 = vpack.c.bf16 %v1107, %v1104
        %v1562 = vpack.c.bf16 %v1112, %v1112
        %v1563 = vpack.c.bf16 %v1167, %v1164
        %v1564 = vpack.c.bf16 %v1172, %v1172
        %v1565 = vpack.c.bf16 %v1227, %v1224
        %v1566 = vpack.c.bf16 %v1232, %v1232
        %v1567 = vpack.c.bf16 %v1287, %v1284
        %v1568 = vpack.c.bf16 %v1292, %v1292
        %vm1569 = vcmask 64512
        %v1571 = vsel %vm1569, %v1553, 0
        %v1574 = vsel %vm1569, %v1554, 0
        %v1577 = vsel %vm1569, %v1561, 0
        %v1580 = vsel %vm1569, %v1562, 0
        %1582 = vmatprep.subr.bf16.mxu0 0
        %1583 = vmatpush1.bf16.xpose.msra.mxu0 %v1577
        %1584 = vmatprep.subr.bf16.mxu0 0
        %1585 = vmatpush1.bf16.xpose.msra.mxu0 %v1580
        %1586 = vmatprep.subr.bf16.mxu0 0
        %1587 = vmatpush1.bf16.xpose.msra.mxu0 0
        %1588 = vmatprep.subr.bf16.mxu0 0
        %1589 = vmatpush1.bf16.xpose.msra.mxu0 0
        %1590 = vmatprep.subr.bf16.mxu0 0
        %1591 = vmatpush1.bf16.xpose.msra.mxu0 0
        %1592 = vmatprep.subr.bf16.mxu0 0
        %1593 = vmatpush1.bf16.xpose.msra.mxu0 0
        %1594 = vmatprep.subr.bf16.mxu0 0
        %1595 = vmatpush1.bf16.xpose.msra.mxu0 0
        %1596 = vmatprep.subr.bf16.mxu0 0
        %1597 = vmatpush1.bf16.xpose.msra.mxu0 0
        %1598 = vmatprep.subr.bf16.mxu0 0
        %1599 = vmatpush1.bf16.xpose.msra.mxu0 0
        %1600 = vmatprep.subr.bf16.mxu0 0
        %1601 = vmatpush1.bf16.xpose.msra.mxu0 0
        %1602 = vmatprep.subr.bf16.mxu0 0
        %1603 = vmatpush1.bf16.xpose.msra.mxu0 0
        %1604 = vmatprep.subr.bf16.mxu0 0
        %1605 = vmatpush1.bf16.xpose.msra.mxu0 0
        %1606 = vmatprep.subr.bf16.mxu0 0
        %1607 = vmatpush1.bf16.xpose.msra.mxu0 0
        %1608 = vmatprep.subr.bf16.mxu0 0
        %1609 = vmatpush1.bf16.xpose.msra.mxu0 0
        %1610 = vmatprep.subr.bf16.mxu0 0
        %1611 = vmatpush1.bf16.xpose.msra.mxu0 0
        %1612 = vmatprep.subr.bf16.mxu0 0
        %1613 = vmatpush1.bf16.xpose.msra.mxu0 0
        %1614 = vmatprep.mubr.bf16.mxu0 0
        %1615 = vmatmul.mubr.bf16.gmra.mrb[0].mxu0 %v1571
        %v1616 = vpop.f32.mrb[0].mxu0
        %v1617 = vadd.f32 0.0, %v1616
        %v1618 = vpop.f32.mrb[0].mxu0
        %v1619 = vpop.f32.mrb[0].mxu0
        %v1620 = vadd.f32 0.0, %v1619
        %v1621 = vpop.f32.mrb[0].mxu0
        %1622 = vmatprep.mubr.bf16.mxu0 0
        %1623 = vmatmul.mubr.bf16.gmra.mrb[0].mxu0 %v1574
        %v1624 = vpop.f32.mrb[0].mxu0
        %v1625 = vadd.f32 0.0, %v1624
        %v1626 = vpop.f32.mrb[0].mxu0
        %v1627 = vpop.f32.mrb[0].mxu0
        %v1628 = vpop.f32.mrb[0].mxu0
        %1629 = vdwg.mxu0
        %v1631 = vsel %vm1569, %v1555, 0
        %v1634 = vsel %vm1569, %v1556, 0
        %v1637 = vsel %vm1569, %v1563, 0
        %v1640 = vsel %vm1569, %v1564, 0
        %1642 = vmatprep.subr.bf16.mxu0 0
        %1643 = vmatpush1.bf16.xpose.msra.mxu0 %v1637
        %1644 = vmatprep.subr.bf16.mxu0 0
        %1645 = vmatpush1.bf16.xpose.msra.mxu0 %v1640
        %1646 = vmatprep.subr.bf16.mxu0 0
        %1647 = vmatpush1.bf16.xpose.msra.mxu0 0
        %1648 = vmatprep.subr.bf16.mxu0 0
        %1649 = vmatpush1.bf16.xpose.msra.mxu0 0
        %1650 = vmatprep.subr.bf16.mxu0 0
        %1651 = vmatpush1.bf16.xpose.msra.mxu0 0
        %1652 = vmatprep.subr.bf16.mxu0 0
        %1653 = vmatpush1.bf16.xpose.msra.mxu0 0
        %1654 = vmatprep.subr.bf16.mxu0 0
        %1655 = vmatpush1.bf16.xpose.msra.mxu0 0
        %1656 = vmatprep.subr.bf16.mxu0 0
        %1657 = vmatpush1.bf16.xpose.msra.mxu0 0
        %1658 = vmatprep.subr.bf16.mxu0 0
        %1659 = vmatpush1.bf16.xpose.msra.mxu0 0
        %1660 = vmatprep.subr.bf16.mxu0 0
        %1661 = vmatpush1.bf16.xpose.msra.mxu0 0
        %1662 = vmatprep.subr.bf16.mxu0 0
        %1663 = vmatpush1.bf16.xpose.msra.mxu0 0
        %1664 = vmatprep.subr.bf16.mxu0 0
        %1665 = vmatpush1.bf16.xpose.msra.mxu0 0
        %1666 = vmatprep.subr.bf16.mxu0 0
        %1667 = vmatpush1.bf16.xpose.msra.mxu0 0
        %1668 = vmatprep.subr.bf16.mxu0 0
        %1669 = vmatpush1.bf16.xpose.msra.mxu0 0
        %1670 = vmatprep.subr.bf16.mxu0 0
        %1671 = vmatpush1.bf16.xpose.msra.mxu0 0
        %1672 = vmatprep.subr.bf16.mxu0 0
        %1673 = vmatpush1.bf16.xpose.msra.mxu0 0
        %1674 = vmatprep.mubr.bf16.mxu0 0
        %1675 = vmatmul.mubr.bf16.gmra.mrb[0].mxu0 %v1631
        %v1676 = vpop.f32.mrb[0].mxu0
        %v1677 = vadd.f32 0.0, %v1676
        %v1678 = vpop.f32.mrb[0].mxu0
        %v1679 = vpop.f32.mrb[0].mxu0
        %v1680 = vadd.f32 0.0, %v1679
        %v1681 = vpop.f32.mrb[0].mxu0
        %1682 = vmatprep.mubr.bf16.mxu0 0
        %1683 = vmatmul.mubr.bf16.gmra.mrb[0].mxu0 %v1634
        %v1684 = vpop.f32.mrb[0].mxu0
        %v1685 = vadd.f32 0.0, %v1684
        %v1686 = vpop.f32.mrb[0].mxu0
        %v1687 = vpop.f32.mrb[0].mxu0
        %v1688 = vpop.f32.mrb[0].mxu0
        %1689 = vdwg.mxu0
        %v1691 = vsel %vm1569, %v1557, 0
        %v1694 = vsel %vm1569, %v1558, 0
        %v1697 = vsel %vm1569, %v1565, 0
        %v1700 = vsel %vm1569, %v1566, 0
        %1702 = vmatprep.subr.bf16.mxu0 0
        %1703 = vmatpush1.bf16.xpose.msra.mxu0 %v1697
        %1704 = vmatprep.subr.bf16.mxu0 0
        %1705 = vmatpush1.bf16.xpose.msra.mxu0 %v1700
        %1706 = vmatprep.subr.bf16.mxu0 0
        %1707 = vmatpush1.bf16.xpose.msra.mxu0 0
        %1708 = vmatprep.subr.bf16.mxu0 0
        %1709 = vmatpush1.bf16.xpose.msra.mxu0 0
        %1710 = vmatprep.subr.bf16.mxu0 0
        %1711 = vmatpush1.bf16.xpose.msra.mxu0 0
        %1712 = vmatprep.subr.bf16.mxu0 0
        %1713 = vmatpush1.bf16.xpose.msra.mxu0 0
        %1714 = vmatprep.subr.bf16.mxu0 0
        %1715 = vmatpush1.bf16.xpose.msra.mxu0 0
        %1716 = vmatprep.subr.bf16.mxu0 0
        %1717 = vmatpush1.bf16.xpose.msra.mxu0 0
        %1718 = vmatprep.subr.bf16.mxu0 0
        %1719 = vmatpush1.bf16.xpose.msra.mxu0 0
        %1720 = vmatprep.subr.bf16.mxu0 0
        %1721 = vmatpush1.bf16.xpose.msra.mxu0 0
        %1722 = vmatprep.subr.bf16.mxu0 0
        %1723 = vmatpush1.bf16.xpose.msra.mxu0 0
        %1724 = vmatprep.subr.bf16.mxu0 0
        %1725 = vmatpush1.bf16.xpose.msra.mxu0 0
        %1726 = vmatprep.subr.bf16.mxu0 0
        %1727 = vmatpush1.bf16.xpose.msra.mxu0 0
        %1728 = vmatprep.subr.bf16.mxu0 0
        %1729 = vmatpush1.bf16.xpose.msra.mxu0 0
        %1730 = vmatprep.subr.bf16.mxu0 0
        %1731 = vmatpush1.bf16.xpose.msra.mxu0 0
        %1732 = vmatprep.subr.bf16.mxu0 0
        %1733 = vmatpush1.bf16.xpose.msra.mxu0 0
        %1734 = vmatprep.mubr.bf16.mxu0 0
        %1735 = vmatmul.mubr.bf16.gmra.mrb[0].mxu0 %v1691
        %v1736 = vpop.f32.mrb[0].mxu0
        %v1737 = vadd.f32 0.0, %v1736
        %v1738 = vpop.f32.mrb[0].mxu0
        %v1739 = vpop.f32.mrb[0].mxu0
        %v1740 = vadd.f32 0.0, %v1739
        %v1741 = vpop.f32.mrb[0].mxu0
        %1742 = vmatprep.mubr.bf16.mxu0 0
        %1743 = vmatmul.mubr.bf16.gmra.mrb[0].mxu0 %v1694
        %v1744 = vpop.f32.mrb[0].mxu0
        %v1745 = vadd.f32 0.0, %v1744
        %v1746 = vpop.f32.mrb[0].mxu0
        %v1747 = vpop.f32.mrb[0].mxu0
        %v1748 = vpop.f32.mrb[0].mxu0
        %1749 = vdwg.mxu0
        %v1751 = vsel %vm1569, %v1559, 0
        %v1754 = vsel %vm1569, %v1560, 0
        %v1757 = vsel %vm1569, %v1567, 0
        %v1760 = vsel %vm1569, %v1568, 0
        %1762 = vmatprep.subr.bf16.mxu0 0
        %1763 = vmatpush1.bf16.xpose.msra.mxu0 %v1757
        %1764 = vmatprep.subr.bf16.mxu0 0
        %1765 = vmatpush1.bf16.xpose.msra.mxu0 %v1760
        %1766 = vmatprep.subr.bf16.mxu0 0
        %1767 = vmatpush1.bf16.xpose.msra.mxu0 0
        %1768 = vmatprep.subr.bf16.mxu0 0
        %1769 = vmatpush1.bf16.xpose.msra.mxu0 0
        %1770 = vmatprep.subr.bf16.mxu0 0
        %1771 = vmatpush1.bf16.xpose.msra.mxu0 0
        %1772 = vmatprep.subr.bf16.mxu0 0
        %1773 = vmatpush1.bf16.xpose.msra.mxu0 0
        %1774 = vmatprep.subr.bf16.mxu0 0
        %1775 = vmatpush1.bf16.xpose.msra.mxu0 0
        %1776 = vmatprep.subr.bf16.mxu0 0
        %1777 = vmatpush1.bf16.xpose.msra.mxu0 0
        %1778 = vmatprep.subr.bf16.mxu0 0
        %1779 = vmatpush1.bf16.xpose.msra.mxu0 0
        %1780 = vmatprep.subr.bf16.mxu0 0
        %1781 = vmatpush1.bf16.xpose.msra.mxu0 0
        %1782 = vmatprep.subr.bf16.mxu0 0
        %1783 = vmatpush1.bf16.xpose.msra.mxu0 0
        %1784 = vmatprep.subr.bf16.mxu0 0
        %1785 = vmatpush1.bf16.xpose.msra.mxu0 0
        %1786 = vmatprep.subr.bf16.mxu0 0
        %1787 = vmatpush1.bf16.xpose.msra.mxu0 0
        %1788 = vmatprep.subr.bf16.mxu0 0
        %1789 = vmatpush1.bf16.xpose.msra.mxu0 0
        %1790 = vmatprep.subr.bf16.mxu0 0
        %1791 = vmatpush1.bf16.xpose.msra.mxu0 0
        %1792 = vmatprep.subr.bf16.mxu0 0
        %1793 = vmatpush1.bf16.xpose.msra.mxu0 0
        %1794 = vmatprep.mubr.bf16.mxu0 0
        %1795 = vmatmul.mubr.bf16.gmra.mrb[0].mxu0 %v1751
        %v1796 = vpop.f32.mrb[0].mxu0
        %v1797 = vadd.f32 0.0, %v1796
        %v1798 = vpop.f32.mrb[0].mxu0
        %v1799 = vpop.f32.mrb[0].mxu0
        %v1800 = vadd.f32 0.0, %v1799
        %v1801 = vpop.f32.mrb[0].mxu0
        %1802 = vmatprep.mubr.bf16.mxu0 0
        %1803 = vmatmul.mubr.bf16.gmra.mrb[0].mxu0 %v1754
        %v1804 = vpop.f32.mrb[0].mxu0
        %v1805 = vadd.f32 0.0, %v1804
        %v1806 = vpop.f32.mrb[0].mxu0
        %v1807 = vpop.f32.mrb[0].mxu0
        %v1808 = vpop.f32.mrb[0].mxu0
        %1809 = vdwg.mxu0
        %v1810 = vmul.f32 %v1617, 0.35355338
        %v1811 = vmul.f32 %v1620, 0.35355338
        %v1812 = vmul.f32 %v1625, 0.35355338
        %v1813 = vmul.f32 %v1677, 0.35355338
        %v1814 = vmul.f32 %v1680, 0.35355338
        %v1815 = vmul.f32 %v1685, 0.35355338
        %v1816 = vmul.f32 %v1737, 0.35355338
        %v1817 = vmul.f32 %v1740, 0.35355338
        %v1818 = vmul.f32 %v1745, 0.35355338
        %v1819 = vmul.f32 %v1797, 0.35355338
        %v1820 = vmul.f32 %v1800, 0.35355338
        %v1821 = vmul.f32 %v1805, 0.35355338
        %vm1822 = vcmask 138240
        %v1823 = vsel %vm1822, %v1810, -inf
        %1824 = vmax.xlane.f32.xlu0 %v1823
        %v1825 = vpop.xlane.xlu0 %1824
        %v1826 = vsel %vm1822, %v1811, -inf
        %1827 = vmax.xlane.f32.xlu0 %v1826
        %v1828 = vpop.xlane.xlu0 %1827
        %vm1829 = vcmask 131072
        %v1830 = vsel %vm1829, %v1812, -inf
        %1831 = vmax.xlane.f32.xlu0 %v1830
        %v1832 = vpop.xlane.xlu0 %1831
        %v1833 = vsel %vm1822, %v1813, -inf
        %1834 = vmax.xlane.f32.xlu0 %v1833
        %v1835 = vpop.xlane.xlu0 %1834
        %v1836 = vsel %vm1822, %v1814, -inf
        %1837 = vmax.xlane.f32.xlu0 %v1836
        %v1838 = vpop.xlane.xlu0 %1837
        %v1839 = vsel %vm1829, %v1815, -inf
        %1840 = vmax.xlane.f32.xlu0 %v1839
        %v1841 = vpop.xlane.xlu0 %1840
        %v1842 = vsel %vm1822, %v1816, -inf
        %1843 = vmax.xlane.f32.xlu0 %v1842
        %v1844 = vpop.xlane.xlu0 %1843
        %v1845 = vsel %vm1822, %v1817, -inf
        %1846 = vmax.xlane.f32.xlu0 %v1845
        %v1847 = vpop.xlane.xlu0 %1846
        %v1848 = vsel %vm1829, %v1818, -inf
        %1849 = vmax.xlane.f32.xlu0 %v1848
        %v1850 = vpop.xlane.xlu0 %1849
        %v1851 = vsel %vm1822, %v1819, -inf
        %1852 = vmax.xlane.f32.xlu0 %v1851
        %v1853 = vpop.xlane.xlu0 %1852
        %v1854 = vsel %vm1822, %v1820, -inf
        %1855 = vmax.xlane.f32.xlu0 %v1854
        %v1856 = vpop.xlane.xlu0 %1855
        %v1857 = vsel %vm1829, %v1821, -inf
        %1858 = vmax.xlane.f32.xlu0 %v1857
        %v1859 = vpop.xlane.xlu0 %1858
        %v1860 = vsub.f32 %v1810, %v1825
        %v1861 = vsub.f32 %v1811, %v1828
        %v1862 = vsub.f32 %v1812, %v1832
        %v1863 = vsub.f32 %v1813, %v1835
        %v1864 = vsub.f32 %v1814, %v1838
        %v1865 = vsub.f32 %v1815, %v1841
        %v1866 = vsub.f32 %v1816, %v1844
        %v1867 = vsub.f32 %v1817, %v1847
        %v1868 = vsub.f32 %v1818, %v1850
        %v1869 = vsub.f32 %v1819, %v1853
        %v1870 = vsub.f32 %v1820, %v1856
        %v1871 = vsub.f32 %v1821, %v1859
        %v1872 = vmul.f32 %v1860, 1.442695
        %v1873 = vpow.pop %v1872
        %v1874 = vmul.f32 %v1861, 1.442695
        %v1875 = vpow.pop %v1874
        %v1876 = vmul.f32 %v1862, 1.442695
        %v1877 = vpow.pop %v1876
        %v1878 = vmul.f32 %v1863, 1.442695
        %v1879 = vpow.pop %v1878
        %v1880 = vmul.f32 %v1864, 1.442695
        %v1881 = vpow.pop %v1880
        %v1882 = vmul.f32 %v1865, 1.442695
        %v1883 = vpow.pop %v1882
        %v1884 = vmul.f32 %v1866, 1.442695
        %v1885 = vpow.pop %v1884
        %v1886 = vmul.f32 %v1867, 1.442695
        %v1887 = vpow.pop %v1886
        %v1888 = vmul.f32 %v1868, 1.442695
        %v1889 = vpow.pop %v1888
        %v1890 = vmul.f32 %v1869, 1.442695
        %v1891 = vpow.pop %v1890
        %v1892 = vmul.f32 %v1870, 1.442695
        %v1893 = vpow.pop %v1892
        %v1894 = vmul.f32 %v1871, 1.442695
        %v1895 = vpow.pop %v1894
        %v1896 = vsel %vm1822, %v1873, 0.0
        %1897 = vadd.xlane.f32.xlu0 %v1896
        %v1898 = vpop.xlane.xlu0 %1897
        %v1899 = vsel %vm1822, %v1875, 0.0
        %1900 = vadd.xlane.f32.xlu0 %v1899
        %v1901 = vpop.xlane.xlu0 %1900
        %v1902 = vsel %vm1829, %v1877, 0.0
        %1903 = vadd.xlane.f32.xlu0 %v1902
        %v1904 = vpop.xlane.xlu0 %1903
        %v1905 = vsel %vm1822, %v1879, 0.0
        %1906 = vadd.xlane.f32.xlu0 %v1905
        %v1907 = vpop.xlane.xlu0 %1906
        %v1908 = vsel %vm1822, %v1881, 0.0
        %1909 = vadd.xlane.f32.xlu0 %v1908
        %v1910 = vpop.xlane.xlu0 %1909
        %v1911 = vsel %vm1829, %v1883, 0.0
        %1912 = vadd.xlane.f32.xlu0 %v1911
        %v1913 = vpop.xlane.xlu0 %1912
        %v1914 = vsel %vm1822, %v1885, 0.0
        %1915 = vadd.xlane.f32.xlu0 %v1914
        %v1916 = vpop.xlane.xlu0 %1915
        %v1917 = vsel %vm1822, %v1887, 0.0
        %1918 = vadd.xlane.f32.xlu0 %v1917
        %v1919 = vpop.xlane.xlu0 %1918
        %v1920 = vsel %vm1829, %v1889, 0.0
        %1921 = vadd.xlane.f32.xlu0 %v1920
        %v1922 = vpop.xlane.xlu0 %1921
        %v1923 = vsel %vm1822, %v1891, 0.0
        %1924 = vadd.xlane.f32.xlu0 %v1923
        %v1925 = vpop.xlane.xlu0 %1924
        %v1926 = vsel %vm1822, %v1893, 0.0
        %1927 = vadd.xlane.f32.xlu0 %v1926
        %v1928 = vpop.xlane.xlu0 %1927
        %v1929 = vsel %vm1829, %v1895, 0.0
        %1930 = vadd.xlane.f32.xlu0 %v1929
        %v1931 = vpop.xlane.xlu0 %1930
        %v1932 = vrcp.pop %v1898
        %v1933 = vrcp.pop %v1901
        %v1934 = vrcp.pop %v1904
        %v1935 = vrcp.pop %v1907
        %v1936 = vrcp.pop %v1910
        %v1937 = vrcp.pop %v1913
        %v1938 = vrcp.pop %v1916
        %v1939 = vrcp.pop %v1919
        %v1940 = vrcp.pop %v1922
        %v1941 = vrcp.pop %v1925
        %v1942 = vrcp.pop %v1928
        %v1943 = vrcp.pop %v1931
        %v1944 = vmul.f32 %v1873, %v1932
        %v1945 = vmul.f32 %v1875, %v1933
        %v1946 = vmul.f32 %v1877, %v1934
        %v1947 = vmul.f32 %v1879, %v1935
        %v1948 = vmul.f32 %v1881, %v1936
        %v1949 = vmul.f32 %v1883, %v1937
        %v1950 = vmul.f32 %v1885, %v1938
        %v1951 = vmul.f32 %v1887, %v1939
        %v1952 = vmul.f32 %v1889, %v1940
        %v1953 = vmul.f32 %v1891, %v1941
        %v1954 = vmul.f32 %v1893, %v1942
        %v1955 = vmul.f32 %v1895, %v1943
        %v1956 = vpack.c.bf16 %v1945, %v1944
        %v1957 = vpack.c.bf16 %v1946, %v1946
        %v1958 = vpack.c.bf16 %v1948, %v1947
        %v1959 = vpack.c.bf16 %v1949, %v1949
        %v1960 = vpack.c.bf16 %v1951, %v1950
        %v1961 = vpack.c.bf16 %v1952, %v1952
        %v1962 = vpack.c.bf16 %v1954, %v1953
        %v1963 = vpack.c.bf16 %v1955, %v1955
        %v1964 = vpack.c.bf16 %v1363, %v1360
        %v1965 = vpack.c.bf16 %v1368, %v1368
        %v1966 = vpack.c.bf16 %v1423, %v1420
        %v1967 = vpack.c.bf16 %v1428, %v1428
        %v1968 = vpack.c.bf16 %v1483, %v1480
        %v1969 = vpack.c.bf16 %v1488, %v1488
        %v1970 = vpack.c.bf16 %v1543, %v1540
        %v1971 = vpack.c.bf16 %v1548, %v1548
        %v1973 = vsel %vm1822, %v1956, 0
        %v1976 = vsel %vm1822, %v1957, 0
        %vm1978 = vcmask 1040384
        %v1979 = vsel 0, 4294967295, 65535
        %v1980 = vsel %vm1978, %v1979, 0
        %v1982 = vand.u32 %v1965, %v1980
        %1984 = vmatprep.subr.bf16.mxu0 0
        %1985 = vmatpush1.bf16.msra.mxu0 %v1964
        %1986 = vmatprep.subr.bf16.mxu0 0
        %1987 = vmatpush1.bf16.msra.mxu0 %v1982
        %1988 = vmatprep.subr.bf16.mxu0 0
        %1989 = vmatpush1.bf16.msra.mxu0 0
        %1990 = vmatprep.subr.bf16.mxu0 0
        %1991 = vmatpush1.bf16.msra.mxu0 0
        %1992 = vmatprep.subr.bf16.mxu0 0
        %1993 = vmatpush1.bf16.msra.mxu0 0
        %1994 = vmatprep.subr.bf16.mxu0 0
        %1995 = vmatpush1.bf16.msra.mxu0 0
        %1996 = vmatprep.subr.bf16.mxu0 0
        %1997 = vmatpush1.bf16.msra.mxu0 0
        %1998 = vmatprep.subr.bf16.mxu0 0
        %1999 = vmatpush1.bf16.msra.mxu0 0
        %2000 = vmatprep.subr.bf16.mxu0 0
        %2001 = vmatpush1.bf16.msra.mxu0 0
        %2002 = vmatprep.subr.bf16.mxu0 0
        %2003 = vmatpush1.bf16.msra.mxu0 0
        %2004 = vmatprep.subr.bf16.mxu0 0
        %2005 = vmatpush1.bf16.msra.mxu0 0
        %2006 = vmatprep.subr.bf16.mxu0 0
        %2007 = vmatpush1.bf16.msra.mxu0 0
        %2008 = vmatprep.subr.bf16.mxu0 0
        %2009 = vmatpush1.bf16.msra.mxu0 0
        %2010 = vmatprep.subr.bf16.mxu0 0
        %2011 = vmatpush1.bf16.msra.mxu0 0
        %2012 = vmatprep.subr.bf16.mxu0 0
        %2013 = vmatpush1.bf16.msra.mxu0 0
        %2014 = vmatprep.subr.bf16.mxu0 0
        %2015 = vmatpush1.bf16.msra.mxu0 0
        %2016 = vmatprep.mubr.bf16.mxu0 0
        %2017 = vmatmul.mubr.bf16.gmra.mrb[0].mxu0 %v1973
        %v2018 = vpop.f32.mrb[0].mxu0
        %v2019 = vadd.f32 0.0, %v2018
        %v2020 = vpop.f32.mrb[0].mxu0
        %v2021 = vpop.f32.mrb[0].mxu0
        %v2022 = vadd.f32 0.0, %v2021
        %v2023 = vpop.f32.mrb[0].mxu0
        %2024 = vmatprep.mubr.bf16.mxu0 0
        %2025 = vmatmul.mubr.bf16.gmra.mrb[0].mxu0 %v1976
        %v2026 = vpop.f32.mrb[0].mxu0
        %v2027 = vadd.f32 0.0, %v2026
        %v2028 = vpop.f32.mrb[0].mxu0
        %v2029 = vpop.f32.mrb[0].mxu0
        %v2030 = vpop.f32.mrb[0].mxu0
        %2031 = vdwg.mxu0
        %v2033 = vsel %vm1822, %v1958, 0
        %v2036 = vsel %vm1822, %v1959, 0
        %v2039 = vand.u32 %v1967, %v1980
        %2041 = vmatprep.subr.bf16.mxu0 0
        %2042 = vmatpush1.bf16.msra.mxu0 %v1966
        %2043 = vmatprep.subr.bf16.mxu0 0
        %2044 = vmatpush1.bf16.msra.mxu0 %v2039
        %2045 = vmatprep.subr.bf16.mxu0 0
        %2046 = vmatpush1.bf16.msra.mxu0 0
        %2047 = vmatprep.subr.bf16.mxu0 0
        %2048 = vmatpush1.bf16.msra.mxu0 0
        %2049 = vmatprep.subr.bf16.mxu0 0
        %2050 = vmatpush1.bf16.msra.mxu0 0
        %2051 = vmatprep.subr.bf16.mxu0 0
        %2052 = vmatpush1.bf16.msra.mxu0 0
        %2053 = vmatprep.subr.bf16.mxu0 0
        %2054 = vmatpush1.bf16.msra.mxu0 0
        %2055 = vmatprep.subr.bf16.mxu0 0
        %2056 = vmatpush1.bf16.msra.mxu0 0
        %2057 = vmatprep.subr.bf16.mxu0 0
        %2058 = vmatpush1.bf16.msra.mxu0 0
        %2059 = vmatprep.subr.bf16.mxu0 0
        %2060 = vmatpush1.bf16.msra.mxu0 0
        %2061 = vmatprep.subr.bf16.mxu0 0
        %2062 = vmatpush1.bf16.msra.mxu0 0
        %2063 = vmatprep.subr.bf16.mxu0 0
        %2064 = vmatpush1.bf16.msra.mxu0 0
        %2065 = vmatprep.subr.bf16.mxu0 0
        %2066 = vmatpush1.bf16.msra.mxu0 0
        %2067 = vmatprep.subr.bf16.mxu0 0
        %2068 = vmatpush1.bf16.msra.mxu0 0
        %2069 = vmatprep.subr.bf16.mxu0 0
        %2070 = vmatpush1.bf16.msra.mxu0 0
        %2071 = vmatprep.subr.bf16.mxu0 0
        %2072 = vmatpush1.bf16.msra.mxu0 0
        %2073 = vmatprep.mubr.bf16.mxu0 0
        %2074 = vmatmul.mubr.bf16.gmra.mrb[0].mxu0 %v2033
        %v2075 = vpop.f32.mrb[0].mxu0
        %v2076 = vadd.f32 0.0, %v2075
        %v2077 = vpop.f32.mrb[0].mxu0
        %v2078 = vpop.f32.mrb[0].mxu0
        %v2079 = vadd.f32 0.0, %v2078
        %v2080 = vpop.f32.mrb[0].mxu0
        %2081 = vmatprep.mubr.bf16.mxu0 0
        %2082 = vmatmul.mubr.bf16.gmra.mrb[0].mxu0 %v2036
        %v2083 = vpop.f32.mrb[0].mxu0
        %v2084 = vadd.f32 0.0, %v2083
        %v2085 = vpop.f32.mrb[0].mxu0
        %v2086 = vpop.f32.mrb[0].mxu0
        %v2087 = vpop.f32.mrb[0].mxu0
        %2088 = vdwg.mxu0
        %v2090 = vsel %vm1822, %v1960, 0
        %v2093 = vsel %vm1822, %v1961, 0
        %v2096 = vand.u32 %v1969, %v1980
        %2098 = vmatprep.subr.bf16.mxu0 0
        %2099 = vmatpush1.bf16.msra.mxu0 %v1968
        %2100 = vmatprep.subr.bf16.mxu0 0
        %2101 = vmatpush1.bf16.msra.mxu0 %v2096
        %2102 = vmatprep.subr.bf16.mxu0 0
        %2103 = vmatpush1.bf16.msra.mxu0 0
        %2104 = vmatprep.subr.bf16.mxu0 0
        %2105 = vmatpush1.bf16.msra.mxu0 0
        %2106 = vmatprep.subr.bf16.mxu0 0
        %2107 = vmatpush1.bf16.msra.mxu0 0
        %2108 = vmatprep.subr.bf16.mxu0 0
        %2109 = vmatpush1.bf16.msra.mxu0 0
        %2110 = vmatprep.subr.bf16.mxu0 0
        %2111 = vmatpush1.bf16.msra.mxu0 0
        %2112 = vmatprep.subr.bf16.mxu0 0
        %2113 = vmatpush1.bf16.msra.mxu0 0
        %2114 = vmatprep.subr.bf16.mxu0 0
        %2115 = vmatpush1.bf16.msra.mxu0 0
        %2116 = vmatprep.subr.bf16.mxu0 0
        %2117 = vmatpush1.bf16.msra.mxu0 0
        %2118 = vmatprep.subr.bf16.mxu0 0
        %2119 = vmatpush1.bf16.msra.mxu0 0
        %2120 = vmatprep.subr.bf16.mxu0 0
        %2121 = vmatpush1.bf16.msra.mxu0 0
        %2122 = vmatprep.subr.bf16.mxu0 0
        %2123 = vmatpush1.bf16.msra.mxu0 0
        %2124 = vmatprep.subr.bf16.mxu0 0
        %2125 = vmatpush1.bf16.msra.mxu0 0
        %2126 = vmatprep.subr.bf16.mxu0 0
        %2127 = vmatpush1.bf16.msra.mxu0 0
        %2128 = vmatprep.subr.bf16.mxu0 0
        %2129 = vmatpush1.bf16.msra.mxu0 0
        %2130 = vmatprep.mubr.bf16.mxu0 0
        %2131 = vmatmul.mubr.bf16.gmra.mrb[0].mxu0 %v2090
        %v2132 = vpop.f32.mrb[0].mxu0
        %v2133 = vadd.f32 0.0, %v2132
        %v2134 = vpop.f32.mrb[0].mxu0
        %v2135 = vpop.f32.mrb[0].mxu0
        %v2136 = vadd.f32 0.0, %v2135
        %v2137 = vpop.f32.mrb[0].mxu0
        %2138 = vmatprep.mubr.bf16.mxu0 0
        %2139 = vmatmul.mubr.bf16.gmra.mrb[0].mxu0 %v2093
        %v2140 = vpop.f32.mrb[0].mxu0
        %v2141 = vadd.f32 0.0, %v2140
        %v2142 = vpop.f32.mrb[0].mxu0
        %v2143 = vpop.f32.mrb[0].mxu0
        %v2144 = vpop.f32.mrb[0].mxu0
        %2145 = vdwg.mxu0
        %v2147 = vsel %vm1822, %v1962, 0
        %v2150 = vsel %vm1822, %v1963, 0
        %v2153 = vand.u32 %v1971, %v1980
        %2155 = vmatprep.subr.bf16.mxu0 0
        %2156 = vmatpush1.bf16.msra.mxu0 %v1970
        %2157 = vmatprep.subr.bf16.mxu0 0
        %2158 = vmatpush1.bf16.msra.mxu0 %v2153
        %2159 = vmatprep.subr.bf16.mxu0 0
        %2160 = vmatpush1.bf16.msra.mxu0 0
        %2161 = vmatprep.subr.bf16.mxu0 0
        %2162 = vmatpush1.bf16.msra.mxu0 0
        %2163 = vmatprep.subr.bf16.mxu0 0
        %2164 = vmatpush1.bf16.msra.mxu0 0
        %2165 = vmatprep.subr.bf16.mxu0 0
        %2166 = vmatpush1.bf16.msra.mxu0 0
        %2167 = vmatprep.subr.bf16.mxu0 0
        %2168 = vmatpush1.bf16.msra.mxu0 0
        %2169 = vmatprep.subr.bf16.mxu0 0
        %2170 = vmatpush1.bf16.msra.mxu0 0
        %2171 = vmatprep.subr.bf16.mxu0 0
        %2172 = vmatpush1.bf16.msra.mxu0 0
        %2173 = vmatprep.subr.bf16.mxu0 0
        %2174 = vmatpush1.bf16.msra.mxu0 0
        %2175 = vmatprep.subr.bf16.mxu0 0
        %2176 = vmatpush1.bf16.msra.mxu0 0
        %2177 = vmatprep.subr.bf16.mxu0 0
        %2178 = vmatpush1.bf16.msra.mxu0 0
        %2179 = vmatprep.subr.bf16.mxu0 0
        %2180 = vmatpush1.bf16.msra.mxu0 0
        %2181 = vmatprep.subr.bf16.mxu0 0
        %2182 = vmatpush1.bf16.msra.mxu0 0
        %2183 = vmatprep.subr.bf16.mxu0 0
        %2184 = vmatpush1.bf16.msra.mxu0 0
        %2185 = vmatprep.subr.bf16.mxu0 0
        %2186 = vmatpush1.bf16.msra.mxu0 0
        %2187 = vmatprep.mubr.bf16.mxu0 0
        %2188 = vmatmul.mubr.bf16.gmra.mrb[0].mxu0 %v2147
        %v2189 = vpop.f32.mrb[0].mxu0
        %v2190 = vadd.f32 0.0, %v2189
        %v2191 = vpop.f32.mrb[0].mxu0
        %v2192 = vpop.f32.mrb[0].mxu0
        %v2193 = vadd.f32 0.0, %v2192
        %v2194 = vpop.f32.mrb[0].mxu0
        %2195 = vmatprep.mubr.bf16.mxu0 0
        %2196 = vmatmul.mubr.bf16.gmra.mrb[0].mxu0 %v2150
        %v2197 = vpop.f32.mrb[0].mxu0
        %v2198 = vadd.f32 0.0, %v2197
        %v2199 = vpop.f32.mrb[0].mxu0
        %v2200 = vpop.f32.mrb[0].mxu0
        %v2201 = vpop.f32.mrb[0].mxu0
        %2202 = vdwg.mxu0
        %v2203 = vpack.c.bf16 %v2022, %v2019
        %v2204 = vpack.c.bf16 %v2027, %v2027
        %v2205 = vpack.c.bf16 %v2079, %v2076
        %v2206 = vpack.c.bf16 %v2084, %v2084
        %v2207 = vpack.c.bf16 %v2136, %v2133
        %v2208 = vpack.c.bf16 %v2141, %v2141
        %v2209 = vpack.c.bf16 %v2193, %v2190
        %v2210 = vpack.c.bf16 %v2198, %v2198
        %v2211 = vld [vmem:[%s8] sm:$0xf]
        %v2212 = vld [vmem:[%s8 + $0x4] sm:$0xf]
        %v2213 = vld [vmem:[%s8 + $0x8] sm:$0xf]
        %v2214 = vld [vmem:[%s8 + $0xc] sm:$0xf]
        %v2216 = vsel %vm1569, %v2203, 0
        %v2219 = vsel %vm1569, %v2204, 0
        %vm2221 = vcmask 1043456
        %v2223 = vsel %vm2221, %v2211, 0
        %2225 = vmatprep.subr.bf16.mxu0 0
        %2226 = vmatpush1.bf16.msra.mxu0 %v2223
        %2227 = vmatprep.subr.bf16.mxu0 0
        %2228 = vmatpush1.bf16.msra.mxu0 0
        %2229 = vmatprep.subr.bf16.mxu0 0
        %2230 = vmatpush1.bf16.msra.mxu0 0
        %2231 = vmatprep.subr.bf16.mxu0 0
        %2232 = vmatpush1.bf16.msra.mxu0 0
        %2233 = vmatprep.subr.bf16.mxu0 0
        %2234 = vmatpush1.bf16.msra.mxu0 0
        %2235 = vmatprep.subr.bf16.mxu0 0
        %2236 = vmatpush1.bf16.msra.mxu0 0
        %2237 = vmatprep.subr.bf16.mxu0 0
        %2238 = vmatpush1.bf16.msra.mxu0 0
        %2239 = vmatprep.subr.bf16.mxu0 0
        %2240 = vmatpush1.bf16.msra.mxu0 0
        %2241 = vmatprep.subr.bf16.mxu0 0
        %2242 = vmatpush1.bf16.msra.mxu0 0
        %2243 = vmatprep.subr.bf16.mxu0 0
        %2244 = vmatpush1.bf16.msra.mxu0 0
        %2245 = vmatprep.subr.bf16.mxu0 0
        %2246 = vmatpush1.bf16.msra.mxu0 0
        %2247 = vmatprep.subr.bf16.mxu0 0
        %2248 = vmatpush1.bf16.msra.mxu0 0
        %2249 = vmatprep.subr.bf16.mxu0 0
        %2250 = vmatpush1.bf16.msra.mxu0 0
        %2251 = vmatprep.subr.bf16.mxu0 0
        %2252 = vmatpush1.bf16.msra.mxu0 0
        %2253 = vmatprep.subr.bf16.mxu0 0
        %2254 = vmatpush1.bf16.msra.mxu0 0
        %2255 = vmatprep.subr.bf16.mxu0 0
        %2256 = vmatpush1.bf16.msra.mxu0 0
        %2257 = vmatprep.mubr.bf16.mxu0 0
        %2258 = vmatmul.mubr.bf16.gmra.mrb[0].mxu0 %v2216
        %v2259 = vpop.f32.mrb[0].mxu0
        %v2260 = vadd.f32 0.0, %v2259
        %v2261 = vpop.f32.mrb[0].mxu0
        %v2262 = vpop.f32.mrb[0].mxu0
        %v2263 = vadd.f32 0.0, %v2262
        %v2264 = vpop.f32.mrb[0].mxu0
        %2265 = vmatprep.mubr.bf16.mxu0 0
        %2266 = vmatmul.mubr.bf16.gmra.mrb[0].mxu0 %v2219
        %v2267 = vpop.f32.mrb[0].mxu0
        %v2268 = vadd.f32 0.0, %v2267
        %v2269 = vpop.f32.mrb[0].mxu0
        %v2270 = vpop.f32.mrb[0].mxu0
        %v2271 = vpop.f32.mrb[0].mxu0
        %2272 = vdwg.mxu0
        %v2274 = vsel %vm1569, %v2205, 0
        %v2277 = vsel %vm1569, %v2206, 0
        %v2280 = vsel %vm2221, %v2212, 0
        %2282 = vmatprep.subr.bf16.mxu0 0
        %2283 = vmatpush1.bf16.msra.mxu0 %v2280
        %2284 = vmatprep.subr.bf16.mxu0 0
        %2285 = vmatpush1.bf16.msra.mxu0 0
        %2286 = vmatprep.subr.bf16.mxu0 0
        %2287 = vmatpush1.bf16.msra.mxu0 0
        %2288 = vmatprep.subr.bf16.mxu0 0
        %2289 = vmatpush1.bf16.msra.mxu0 0
        %2290 = vmatprep.subr.bf16.mxu0 0
        %2291 = vmatpush1.bf16.msra.mxu0 0
        %2292 = vmatprep.subr.bf16.mxu0 0
        %2293 = vmatpush1.bf16.msra.mxu0 0
        %2294 = vmatprep.subr.bf16.mxu0 0
        %2295 = vmatpush1.bf16.msra.mxu0 0
        %2296 = vmatprep.subr.bf16.mxu0 0
        %2297 = vmatpush1.bf16.msra.mxu0 0
        %2298 = vmatprep.subr.bf16.mxu0 0
        %2299 = vmatpush1.bf16.msra.mxu0 0
        %2300 = vmatprep.subr.bf16.mxu0 0
        %2301 = vmatpush1.bf16.msra.mxu0 0
        %2302 = vmatprep.subr.bf16.mxu0 0
        %2303 = vmatpush1.bf16.msra.mxu0 0
        %2304 = vmatprep.subr.bf16.mxu0 0
        %2305 = vmatpush1.bf16.msra.mxu0 0
        %2306 = vmatprep.subr.bf16.mxu0 0
        %2307 = vmatpush1.bf16.msra.mxu0 0
        %2308 = vmatprep.subr.bf16.mxu0 0
        %2309 = vmatpush1.bf16.msra.mxu0 0
        %2310 = vmatprep.subr.bf16.mxu0 0
        %2311 = vmatpush1.bf16.msra.mxu0 0
        %2312 = vmatprep.subr.bf16.mxu0 0
        %2313 = vmatpush1.bf16.msra.mxu0 0
        %2314 = vmatprep.mubr.bf16.mxu0 0
        %2315 = vmatmul.mubr.bf16.gmra.mrb[0].mxu0 %v2274
        %v2316 = vpop.f32.mrb[0].mxu0
        %v2317 = vadd.f32 0.0, %v2316
        %v2318 = vpop.f32.mrb[0].mxu0
        %v2319 = vpop.f32.mrb[0].mxu0
        %v2320 = vadd.f32 0.0, %v2319
        %v2321 = vpop.f32.mrb[0].mxu0
        %2322 = vmatprep.mubr.bf16.mxu0 0
        %2323 = vmatmul.mubr.bf16.gmra.mrb[0].mxu0 %v2277
        %v2324 = vpop.f32.mrb[0].mxu0
        %v2325 = vadd.f32 0.0, %v2324
        %v2326 = vpop.f32.mrb[0].mxu0
        %v2327 = vpop.f32.mrb[0].mxu0
        %v2328 = vpop.f32.mrb[0].mxu0
        %2329 = vdwg.mxu0
        %v2331 = vsel %vm1569, %v2207, 0
        %v2334 = vsel %vm1569, %v2208, 0
        %v2337 = vsel %vm2221, %v2213, 0
        %2339 = vmatprep.subr.bf16.mxu0 0
        %2340 = vmatpush1.bf16.msra.mxu0 %v2337
        %2341 = vmatprep.subr.bf16.mxu0 0
        %2342 = vmatpush1.bf16.msra.mxu0 0
        %2343 = vmatprep.subr.bf16.mxu0 0
        %2344 = vmatpush1.bf16.msra.mxu0 0
        %2345 = vmatprep.subr.bf16.mxu0 0
        %2346 = vmatpush1.bf16.msra.mxu0 0
        %2347 = vmatprep.subr.bf16.mxu0 0
        %2348 = vmatpush1.bf16.msra.mxu0 0
        %2349 = vmatprep.subr.bf16.mxu0 0
        %2350 = vmatpush1.bf16.msra.mxu0 0
        %2351 = vmatprep.subr.bf16.mxu0 0
        %2352 = vmatpush1.bf16.msra.mxu0 0
        %2353 = vmatprep.subr.bf16.mxu0 0
        %2354 = vmatpush1.bf16.msra.mxu0 0
        %2355 = vmatprep.subr.bf16.mxu0 0
        %2356 = vmatpush1.bf16.msra.mxu0 0
        %2357 = vmatprep.subr.bf16.mxu0 0
        %2358 = vmatpush1.bf16.msra.mxu0 0
        %2359 = vmatprep.subr.bf16.mxu0 0
        %2360 = vmatpush1.bf16.msra.mxu0 0
        %2361 = vmatprep.subr.bf16.mxu0 0
        %2362 = vmatpush1.bf16.msra.mxu0 0
        %2363 = vmatprep.subr.bf16.mxu0 0
        %2364 = vmatpush1.bf16.msra.mxu0 0
        %2365 = vmatprep.subr.bf16.mxu0 0
        %2366 = vmatpush1.bf16.msra.mxu0 0
        %2367 = vmatprep.subr.bf16.mxu0 0
        %2368 = vmatpush1.bf16.msra.mxu0 0
        %2369 = vmatprep.subr.bf16.mxu0 0
        %2370 = vmatpush1.bf16.msra.mxu0 0
        %2371 = vmatprep.mubr.bf16.mxu0 0
        %2372 = vmatmul.mubr.bf16.gmra.mrb[0].mxu0 %v2331
        %v2373 = vpop.f32.mrb[0].mxu0
        %v2374 = vadd.f32 0.0, %v2373
        %v2375 = vpop.f32.mrb[0].mxu0
        %v2376 = vpop.f32.mrb[0].mxu0
        %v2377 = vadd.f32 0.0, %v2376
        %v2378 = vpop.f32.mrb[0].mxu0
        %2379 = vmatprep.mubr.bf16.mxu0 0
        %2380 = vmatmul.mubr.bf16.gmra.mrb[0].mxu0 %v2334
        %v2381 = vpop.f32.mrb[0].mxu0
        %v2382 = vadd.f32 0.0, %v2381
        %v2383 = vpop.f32.mrb[0].mxu0
        %v2384 = vpop.f32.mrb[0].mxu0
        %v2385 = vpop.f32.mrb[0].mxu0
        %2386 = vdwg.mxu0
        %v2388 = vsel %vm1569, %v2209, 0
        %v2391 = vsel %vm1569, %v2210, 0
        %v2394 = vsel %vm2221, %v2214, 0
        %2396 = vmatprep.subr.bf16.mxu0 0
        %2397 = vmatpush1.bf16.msra.mxu0 %v2394
        %2398 = vmatprep.subr.bf16.mxu0 0
        %2399 = vmatpush1.bf16.msra.mxu0 0
        %2400 = vmatprep.subr.bf16.mxu0 0
        %2401 = vmatpush1.bf16.msra.mxu0 0
        %2402 = vmatprep.subr.bf16.mxu0 0
        %2403 = vmatpush1.bf16.msra.mxu0 0
        %2404 = vmatprep.subr.bf16.mxu0 0
        %2405 = vmatpush1.bf16.msra.mxu0 0
        %2406 = vmatprep.subr.bf16.mxu0 0
        %2407 = vmatpush1.bf16.msra.mxu0 0
        %2408 = vmatprep.subr.bf16.mxu0 0
        %2409 = vmatpush1.bf16.msra.mxu0 0
        %2410 = vmatprep.subr.bf16.mxu0 0
        %2411 = vmatpush1.bf16.msra.mxu0 0
        %2412 = vmatprep.subr.bf16.mxu0 0
        %2413 = vmatpush1.bf16.msra.mxu0 0
        %2414 = vmatprep.subr.bf16.mxu0 0
        %2415 = vmatpush1.bf16.msra.mxu0 0
        %2416 = vmatprep.subr.bf16.mxu0 0
        %2417 = vmatpush1.bf16.msra.mxu0 0
        %2418 = vmatprep.subr.bf16.mxu0 0
        %2419 = vmatpush1.bf16.msra.mxu0 0
        %2420 = vmatprep.subr.bf16.mxu0 0
        %2421 = vmatpush1.bf16.msra.mxu0 0
        %2422 = vmatprep.subr.bf16.mxu0 0
        %2423 = vmatpush1.bf16.msra.mxu0 0
        %2424 = vmatprep.subr.bf16.mxu0 0
        %2425 = vmatpush1.bf16.msra.mxu0 0
        %2426 = vmatprep.subr.bf16.mxu0 0
        %2427 = vmatpush1.bf16.msra.mxu0 0
        %2428 = vmatprep.mubr.bf16.mxu0 0
        %2429 = vmatmul.mubr.bf16.gmra.mrb[0].mxu0 %v2388
        %v2430 = vpop.f32.mrb[0].mxu0
        %v2431 = vadd.f32 0.0, %v2430
        %v2432 = vpop.f32.mrb[0].mxu0
        %v2433 = vpop.f32.mrb[0].mxu0
        %v2434 = vadd.f32 0.0, %v2433
        %v2435 = vpop.f32.mrb[0].mxu0
        %2436 = vmatprep.mubr.bf16.mxu0 0
        %2437 = vmatmul.mubr.bf16.gmra.mrb[0].mxu0 %v2391
        %v2438 = vpop.f32.mrb[0].mxu0
        %v2439 = vadd.f32 0.0, %v2438
        %v2440 = vpop.f32.mrb[0].mxu0
        %v2441 = vpop.f32.mrb[0].mxu0
        %v2442 = vpop.f32.mrb[0].mxu0
        %2443 = vdwg.mxu0
        %v2444 = vsel %vm717, %v2260, 0.0
        %v2445 = vsel %vm717, %v2317, 0.0
        %v2446 = vadd.f32 %v2444, %v2445
        %v2447 = vsel %vm717, %v2374, 0.0
        %v2448 = vadd.f32 %v2446, %v2447
        %v2449 = vsel %vm717, %v2431, 0.0
        %v2450 = vadd.f32 %v2448, %v2449
        %v2451 = vsel %vm717, %v2263, 0.0
        %v2452 = vsel %vm717, %v2320, 0.0
        %v2453 = vadd.f32 %v2451, %v2452
        %v2454 = vsel %vm717, %v2377, 0.0
        %v2455 = vadd.f32 %v2453, %v2454
        %v2456 = vsel %vm717, %v2434, 0.0
        %v2457 = vadd.f32 %v2455, %v2456
        %v2458 = vsel %vm724, %v2268, 0.0
        %v2459 = vsel %vm724, %v2325, 0.0
        %v2460 = vadd.f32 %v2458, %v2459
        %v2461 = vsel %vm724, %v2382, 0.0
        %v2462 = vadd.f32 %v2460, %v2461
        %v2463 = vsel %vm724, %v2439, 0.0
        %v2464 = vadd.f32 %v2462, %v2463
        %v2465 = vadd.f32 %v702, %v2450
        %v2466 = vadd.f32 %v705, %v2457
        %v2467 = vadd.f32 %v710, %v2464
        %v2468 = vld [vmem:[%s9] sm:$0x1]
        %v2470 = vlaneseq
        %v2471 = vshrl.u32 %v2470, 7
        %v2472 = vsub.s32 0, %v2471
        %v2473 = vrot.slane %v2468, %v2472
        %v2475 = vadd.f32 %v2465, %v2473
        %v2476 = vadd.f32 %v2466, %v2473
        %v2477 = vadd.f32 %v2467, %v2473
        %v2478 = vld [vmem:[%s10] sm:$0x1]
        %v2479 = vld [vmem:[%s11] sm:$0x1]
        %v2480 = vsel %vm717, %v2475, 0.0
        %2481 = vadd.xlane.f32.xlu0 %v2480
        %v2482 = vpop.xlane.xlu0 %2481
        %v2483 = vsel %vm717, %v2476, 0.0
        %2484 = vadd.xlane.f32.xlu0 %v2483
        %v2485 = vpop.xlane.xlu0 %2484
        %v2486 = vsel %vm724, %v2477, 0.0
        %2487 = vadd.xlane.f32.xlu0 %v2486
        %v2488 = vpop.xlane.xlu0 %2487
        %v2489 = vmul.f32 %v2482, %v728
        %v2490 = vmul.f32 %v2485, %v728
        %v2491 = vmul.f32 %v2488, %v728
        %v2492 = vsub.f32 %v2475, %v2489
        %v2493 = vsub.f32 %v2476, %v2490
        %v2494 = vsub.f32 %v2477, %v2491
        %v2495 = vmul.f32 %v2492, %v2492
        %v2496 = vmul.f32 %v2493, %v2493
        %v2497 = vmul.f32 %v2494, %v2494
        %v2498 = vsel %vm717, %v2495, 0.0
        %2499 = vadd.xlane.f32.xlu0 %v2498
        %v2500 = vpop.xlane.xlu0 %2499
        %v2501 = vsel %vm717, %v2496, 0.0
        %2502 = vadd.xlane.f32.xlu0 %v2501
        %v2503 = vpop.xlane.xlu0 %2502
        %v2504 = vsel %vm724, %v2497, 0.0
        %2505 = vadd.xlane.f32.xlu0 %v2504
        %v2506 = vpop.xlane.xlu0 %2505
        %v2507 = vmul.f32 %v2500, %v728
        %v2508 = vmul.f32 %v2503, %v728
        %v2509 = vmul.f32 %v2506, %v728
        %v2510 = vadd.f32 %v2507, 1e-05
        %v2511 = vadd.f32 %v2508, 1e-05
        %v2512 = vadd.f32 %v2509, 1e-05
        %v2513 = vrsqrt.pop %v2510
        %v2514 = vrsqrt.pop %v2511
        %v2515 = vrsqrt.pop %v2512
        %v2516 = vmul.f32 %v2492, %v2513
        %v2517 = vmul.f32 %v2493, %v2514
        %v2518 = vmul.f32 %v2494, %v2515
        %v2520 = vlaneseq
        %v2521 = vshrl.u32 %v2520, 7
        %v2522 = vsub.s32 0, %v2521
        %v2523 = vrot.slane %v2478, %v2522
        %v2525 = vmul.f32 %v2516, %v2523
        %v2526 = vmul.f32 %v2517, %v2523
        %v2527 = vmul.f32 %v2518, %v2523
        %v2529 = vlaneseq
        %v2530 = vshrl.u32 %v2529, 7
        %v2531 = vsub.s32 0, %v2530
        %v2532 = vrot.slane %v2479, %v2531
        %v2534 = vadd.f32 %v2525, %v2532
        %v2535 = vadd.f32 %v2526, %v2532
        %v2536 = vadd.f32 %v2527, %v2532
        %v2537 = vpack.c.bf16 %v2535, %v2534
        %v2538 = vpack.c.bf16 %v2536, %v2536
        %v2539 = vld [vmem:[%s12] sm:$0xf]
        %v2540 = vld [vmem:[%s12 + $0x4] sm:$0xf]
        %v2541 = vld [vmem:[%s12 + $0x8] sm:$0xf]
        %v2542 = vld [vmem:[%s12 + $0xc] sm:$0xf]
        %v2543 = vld [vmem:[%s13] sm:$0x1]
        %v2545 = vlaneseq
        %v2546 = vshrl.u32 %v2545, 7
        %v2547 = vsub.s32 0, %v2546
        %v2548 = vrot.slane %v2543, %v2547
        %v2554 = vunpack.c.l.b16 %v2539
        %v2555 = vunpack.c.l.b16 %v2540
        %v2556 = vunpack.c.l.b16 %v2541
        %v2557 = vunpack.c.l.b16 %v2542
        %v2558 = vpack.c.b16 %v2555, %v2554
        %v2559 = vpack.c.b16 %v2557, %v2556
        %v2563 = vsel %vm717, %v2537, 0
        %v2566 = vsel %vm717, %v2538, 0
        %2568 = vmatprep.subr.bf16.mxu0 0
        %2569 = vmatpush1.bf16.msra.mxu0 %v2558
        %2570 = vmatprep.subr.bf16.mxu0 0
        %2571 = vmatpush1.bf16.msra.mxu0 %v2559
        %2572 = vmatprep.subr.bf16.mxu0 0
        %2573 = vmatpush1.bf16.msra.mxu0 0
        %2574 = vmatprep.subr.bf16.mxu0 0
        %2575 = vmatpush1.bf16.msra.mxu0 0
        %2576 = vmatprep.subr.bf16.mxu0 0
        %2577 = vmatpush1.bf16.msra.mxu0 0
        %2578 = vmatprep.subr.bf16.mxu0 0
        %2579 = vmatpush1.bf16.msra.mxu0 0
        %2580 = vmatprep.subr.bf16.mxu0 0
        %2581 = vmatpush1.bf16.msra.mxu0 0
        %2582 = vmatprep.subr.bf16.mxu0 0
        %2583 = vmatpush1.bf16.msra.mxu0 0
        %2584 = vmatprep.subr.bf16.mxu0 0
        %2585 = vmatpush1.bf16.msra.mxu0 0
        %2586 = vmatprep.subr.bf16.mxu0 0
        %2587 = vmatpush1.bf16.msra.mxu0 0
        %2588 = vmatprep.subr.bf16.mxu0 0
        %2589 = vmatpush1.bf16.msra.mxu0 0
        %2590 = vmatprep.subr.bf16.mxu0 0
        %2591 = vmatpush1.bf16.msra.mxu0 0
        %2592 = vmatprep.subr.bf16.mxu0 0
        %2593 = vmatpush1.bf16.msra.mxu0 0
        %2594 = vmatprep.subr.bf16.mxu0 0
        %2595 = vmatpush1.bf16.msra.mxu0 0
        %2596 = vmatprep.subr.bf16.mxu0 0
        %2597 = vmatpush1.bf16.msra.mxu0 0
        %2598 = vmatprep.subr.bf16.mxu0 0
        %2599 = vmatpush1.bf16.msra.mxu0 0
        %2600 = vmatprep.mubr.bf16.mxu0 0
        %2601 = vmatmul.mubr.bf16.gmra.mrb[0].mxu0 %v2563
        %v2602 = vpop.f32.mrb[0].mxu0
        %v2603 = vadd.f32 %v2548, %v2602
        %v2604 = vpop.f32.mrb[0].mxu0
        %v2605 = vpop.f32.mrb[0].mxu0
        %v2606 = vadd.f32 %v2548, %v2605
        %v2607 = vpop.f32.mrb[0].mxu0
        %2608 = vmatprep.mubr.bf16.mxu0 0
        %2609 = vmatmul.mubr.bf16.gmra.mrb[0].mxu0 %v2566
        %v2610 = vpop.f32.mrb[0].mxu0
        %v2611 = vadd.f32 %v2548, %v2610
        %v2612 = vpop.f32.mrb[0].mxu0
        %v2613 = vpop.f32.mrb[0].mxu0
        %v2614 = vpop.f32.mrb[0].mxu0
        %2615 = vdwg.mxu0
        %v2616 = vmul.f32 %v2603, 0.5
        %v2617 = vmul.f32 %v2606, 0.5
        %v2618 = vmul.f32 %v2611, 0.5
        %v2619 = vmul.f32 %v2603, 0.70710677
        %v2620 = vmul.f32 %v2606, 0.70710677
        %v2621 = vmul.f32 %v2611, 0.70710677
        %v2622 = vmax.f32 %v2619, -4.0
        %v2623 = vmax.f32 %v2620, -4.0
        %v2624 = vmax.f32 %v2621, -4.0
        %v2625 = vmin.f32 %v2622, 4.0
        %v2626 = vmin.f32 %v2623, 4.0
        %v2627 = vmin.f32 %v2624, 4.0
        %v2628 = vmul.f32 %v2625, %v2625
        %v2629 = vmul.f32 %v2626, %v2626
        %v2630 = vmul.f32 %v2627, %v2627
        %v2631 = vmul.f32 %v2628, 0.00022905065
        %v2632 = vmul.f32 %v2629, 0.00022905065
        %v2633 = vmul.f32 %v2630, 0.00022905065
        %v2634 = vadd.f32 %v2631, 0.003408291
        %v2635 = vadd.f32 %v2632, 0.003408291
        %v2636 = vadd.f32 %v2633, 0.003408291
        %v2637 = vmul.f32 %v2634, %v2628
        %v2638 = vmul.f32 %v2635, %v2629
        %v2639 = vmul.f32 %v2636, %v2630
        %v2640 = vadd.f32 %v2637, 0.050955694
        %v2641 = vadd.f32 %v2638, 0.050955694
        %v2642 = vadd.f32 %v2639, 0.050955694
        %v2643 = vmul.f32 %v2640, %v2628
        %v2644 = vmul.f32 %v2641, %v2629
        %v2645 = vmul.f32 %v2642, %v2630
        %v2646 = vadd.f32 %v2643, 0.18520832
        %v2647 = vadd.f32 %v2644, 0.18520832
        %v2648 = vadd.f32 %v2645, 0.18520832
        %v2649 = vmul.f32 %v2646, %v2628
        %v2650 = vmul.f32 %v2647, %v2629
        %v2651 = vmul.f32 %v2648, %v2630
        %v2652 = vadd.f32 %v2649, 1.1283791
        %v2653 = vadd.f32 %v2650, 1.1283791
        %v2654 = vadd.f32 %v2651, 1.1283791
        %v2655 = vmul.f32 %v2628, -1.1791603e-07
        %v2656 = vmul.f32 %v2629, -1.1791603e-07
        %v2657 = vmul.f32 %v2630, -1.1791603e-07
        %v2658 = vadd.f32 %v2655, 2.3547966e-05
        %v2659 = vadd.f32 %v2656, 2.3547966e-05
        %v2660 = vadd.f32 %v2657, 2.3547966e-05
        %v2661 = vmul.f32 %v2658, %v2628
        %v2662 = vmul.f32 %v2659, %v2629
        %v2663 = vmul.f32 %v2660, %v2630
        %v2664 = vadd.f32 %v2661, 0.0010179626
        %v2665 = vadd.f32 %v2662, 0.0010179626
        %v2666 = vadd.f32 %v2663, 0.0010179626
        %v2667 = vmul.f32 %v2664, %v2628
        %v2668 = vmul.f32 %v2665, %v2629
        %v2669 = vmul.f32 %v2666, %v2630
        %v2670 = vadd.f32 %v2667, 0.01407047
        %v2671 = vadd.f32 %v2668, 0.01407047
        %v2672 = vadd.f32 %v2669, 0.01407047
        %v2673 = vmul.f32 %v2670, %v2628
        %v2674 = vmul.f32 %v2671, %v2629
        %v2675 = vmul.f32 %v2672, %v2630
        %v2676 = vadd.f32 %v2673, 0.11098505
        %v2677 = vadd.f32 %v2674, 0.11098505
        %v2678 = vadd.f32 %v2675, 0.11098505
        %v2679 = vmul.f32 %v2676, %v2628
        %v2680 = vmul.f32 %v2677, %v2629
        %v2681 = vmul.f32 %v2678, %v2630
        %v2682 = vadd.f32 %v2679, 0.49746925
        %v2683 = vadd.f32 %v2680, 0.49746925
        %v2684 = vadd.f32 %v2681, 0.49746925
        %v2685 = vmul.f32 %v2682, %v2628
        %v2686 = vmul.f32 %v2683, %v2629
        %v2687 = vmul.f32 %v2684, %v2630
        %v2688 = vadd.f32 %v2685, 1.0
        %v2689 = vadd.f32 %v2686, 1.0
        %v2690 = vadd.f32 %v2687, 1.0
        %v2691 = vmul.f32 %v2625, %v2652
        %v2692 = vmul.f32 %v2626, %v2653
        %v2693 = vmul.f32 %v2627, %v2654
        %v2694 = vrcp.pop %v2688
        %v2695 = vrcp.pop %v2689
        %v2696 = vrcp.pop %v2690
        %v2697 = vmul.f32 %v2691, %v2694
        %v2698 = vmul.f32 %v2692, %v2695
        %v2699 = vmul.f32 %v2693, %v2696
        %v2700 = vadd.f32 %v2697, 1.0
        %v2701 = vadd.f32 %v2698, 1.0
        %v2702 = vadd.f32 %v2699, 1.0
        %v2703 = vmul.f32 %v2616, %v2700
        %v2704 = vmul.f32 %v2617, %v2701
        %v2705 = vmul.f32 %v2618, %v2702
        %v2706 = vpack.c.bf16 %v2704, %v2703
        %v2707 = vpack.c.bf16 %v2705, %v2705
        %v2708 = vld [vmem:[%s14] sm:$0xf]
        %v2709 = vld [vmem:[%s14 + $0x4] sm:$0xf]
        %v2710 = vld [vmem:[%s14 + $0x8] sm:$0xf]
        %v2711 = vld [vmem:[%s14 + $0xc] sm:$0xf]
        %v2712 = vld [vmem:[%s14 + $0x10] sm:$0xf]
        %v2713 = vld [vmem:[%s14 + $0x14] sm:$0xf]
        %v2714 = vld [vmem:[%s14 + $0x18] sm:$0xf]
        %v2715 = vld [vmem:[%s14 + $0x1c] sm:$0xf]
        %v2716 = vld [vmem:[%s15] sm:$0x1]
        %v2718 = vlaneseq
        %v2719 = vshrl.u32 %v2718, 7
        %v2720 = vsub.s32 0, %v2719
        %v2721 = vrot.slane %v2716, %v2720
        %v2731 = vunpack.c.l.b16 %v2708
        %v2732 = vunpack.c.l.b16 %v2709
        %v2733 = vunpack.c.l.b16 %v2710
        %v2734 = vunpack.c.l.b16 %v2711
        %v2735 = vunpack.c.l.b16 %v2712
        %v2736 = vunpack.c.l.b16 %v2713
        %v2737 = vunpack.c.l.b16 %v2714
        %v2738 = vunpack.c.l.b16 %v2715
        %v2739 = vpack.c.b16 %v2732, %v2731
        %v2740 = vpack.c.b16 %v2734, %v2733
        %v2741 = vpack.c.b16 %v2736, %v2735
        %v2742 = vpack.c.b16 %v2738, %v2737
        %vm2747 = vcmask 523264
        %v2749 = vsel %vm2747, %v2706, 0
        %v2752 = vsel %vm2747, %v2707, 0
        %2754 = vmatprep.subr.bf16.mxu0 0
        %2755 = vmatpush1.bf16.msra.mxu0 %v2739
        %2756 = vmatprep.subr.bf16.mxu0 0
        %2757 = vmatpush1.bf16.msra.mxu0 %v2740
        %2758 = vmatprep.subr.bf16.mxu0 0
        %2759 = vmatpush1.bf16.msra.mxu0 %v2741
        %2760 = vmatprep.subr.bf16.mxu0 0
        %2761 = vmatpush1.bf16.msra.mxu0 %v2742
        %2762 = vmatprep.subr.bf16.mxu0 0
        %2763 = vmatpush1.bf16.msra.mxu0 0
        %2764 = vmatprep.subr.bf16.mxu0 0
        %2765 = vmatpush1.bf16.msra.mxu0 0
        %2766 = vmatprep.subr.bf16.mxu0 0
        %2767 = vmatpush1.bf16.msra.mxu0 0
        %2768 = vmatprep.subr.bf16.mxu0 0
        %2769 = vmatpush1.bf16.msra.mxu0 0
        %2770 = vmatprep.subr.bf16.mxu0 0
        %2771 = vmatpush1.bf16.msra.mxu0 0
        %2772 = vmatprep.subr.bf16.mxu0 0
        %2773 = vmatpush1.bf16.msra.mxu0 0
        %2774 = vmatprep.subr.bf16.mxu0 0
        %2775 = vmatpush1.bf16.msra.mxu0 0
        %2776 = vmatprep.subr.bf16.mxu0 0
        %2777 = vmatpush1.bf16.msra.mxu0 0
        %2778 = vmatprep.subr.bf16.mxu0 0
        %2779 = vmatpush1.bf16.msra.mxu0 0
        %2780 = vmatprep.subr.bf16.mxu0 0
        %2781 = vmatpush1.bf16.msra.mxu0 0
        %2782 = vmatprep.subr.bf16.mxu0 0
        %2783 = vmatpush1.bf16.msra.mxu0 0
        %2784 = vmatprep.subr.bf16.mxu0 0
        %2785 = vmatpush1.bf16.msra.mxu0 0
        %2786 = vmatprep.mubr.bf16.mxu0 0
        %2787 = vmatmul.mubr.bf16.gmra.mrb[0].mxu0 %v2749
        %v2788 = vpop.f32.mrb[0].mxu0
        %v2789 = vadd.f32 %v2721, %v2788
        %v2790 = vpop.f32.mrb[0].mxu0
        %v2791 = vpop.f32.mrb[0].mxu0
        %v2792 = vadd.f32 %v2721, %v2791
        %v2793 = vpop.f32.mrb[0].mxu0
        %2794 = vmatprep.mubr.bf16.mxu0 0
        %2795 = vmatmul.mubr.bf16.gmra.mrb[0].mxu0 %v2752
        %v2796 = vpop.f32.mrb[0].mxu0
        %v2797 = vadd.f32 %v2721, %v2796
        %v2798 = vpop.f32.mrb[0].mxu0
        %v2799 = vpop.f32.mrb[0].mxu0
        %v2800 = vpop.f32.mrb[0].mxu0
        %2801 = vdwg.mxu0
        %v2802 = vadd.f32 %v2475, %v2789
        %v2803 = vadd.f32 %v2476, %v2792
        %v2804 = vadd.f32 %v2477, %v2797
        %s2805 = scalar_lea.vmem %s3, 1
        %v2806 = vld [vmem:[%s2805] sm:$0x1]
        %s2807 = scalar_lea.vmem %s4, 1
        %v2808 = vld [vmem:[%s2807] sm:$0x1]
        %v2809 = vsel %vm717, %v2802, 0.0
        %2810 = vadd.xlane.f32.xlu0 %v2809
        %v2811 = vpop.xlane.xlu0 %2810
        %v2812 = vsel %vm717, %v2803, 0.0
        %2813 = vadd.xlane.f32.xlu0 %v2812
        %v2814 = vpop.xlane.xlu0 %2813
        %v2815 = vsel %vm724, %v2804, 0.0
        %2816 = vadd.xlane.f32.xlu0 %v2815
        %v2817 = vpop.xlane.xlu0 %2816
        %v2818 = vmul.f32 %v2811, %v728
        %v2819 = vmul.f32 %v2814, %v728
        %v2820 = vmul.f32 %v2817, %v728
        %v2821 = vsub.f32 %v2802, %v2818
        %v2822 = vsub.f32 %v2803, %v2819
        %v2823 = vsub.f32 %v2804, %v2820
        %v2824 = vmul.f32 %v2821, %v2821
        %v2825 = vmul.f32 %v2822, %v2822
        %v2826 = vmul.f32 %v2823, %v2823
        %v2827 = vsel %vm717, %v2824, 0.0
        %2828 = vadd.xlane.f32.xlu0 %v2827
        %v2829 = vpop.xlane.xlu0 %2828
        %v2830 = vsel %vm717, %v2825, 0.0
        %2831 = vadd.xlane.f32.xlu0 %v2830
        %v2832 = vpop.xlane.xlu0 %2831
        %v2833 = vsel %vm724, %v2826, 0.0
        %2834 = vadd.xlane.f32.xlu0 %v2833
        %v2835 = vpop.xlane.xlu0 %2834
        %v2836 = vmul.f32 %v2829, %v728
        %v2837 = vmul.f32 %v2832, %v728
        %v2838 = vmul.f32 %v2835, %v728
        %v2839 = vadd.f32 %v2836, 1e-05
        %v2840 = vadd.f32 %v2837, 1e-05
        %v2841 = vadd.f32 %v2838, 1e-05
        %v2842 = vrsqrt.pop %v2839
        %v2843 = vrsqrt.pop %v2840
        %v2844 = vrsqrt.pop %v2841
        %v2845 = vmul.f32 %v2821, %v2842
        %v2846 = vmul.f32 %v2822, %v2843
        %v2847 = vmul.f32 %v2823, %v2844
        %v2849 = vlaneseq
        %v2850 = vshrl.u32 %v2849, 7
        %v2851 = vsub.s32 0, %v2850
        %v2852 = vrot.slane %v2806, %v2851
        %v2854 = vmul.f32 %v2845, %v2852
        %v2855 = vmul.f32 %v2846, %v2852
        %v2856 = vmul.f32 %v2847, %v2852
        %v2858 = vlaneseq
        %v2859 = vshrl.u32 %v2858, 7
        %v2860 = vsub.s32 0, %v2859
        %v2861 = vrot.slane %v2808, %v2860
        %v2863 = vadd.f32 %v2854, %v2861
        %v2864 = vadd.f32 %v2855, %v2861
        %v2865 = vadd.f32 %v2856, %v2861
        %v2866 = vpack.c.bf16 %v2864, %v2863
        %v2867 = vpack.c.bf16 %v2865, %v2865
        %s2868 = scalar_lea.vmem %s5, 64
        %v2869 = vld [vmem:[%s2868] sm:$0xf]
        %v2870 = vld [vmem:[%s2868 + $0x4] sm:$0xf]
        %v2871 = vld [vmem:[%s2868 + $0x8] sm:$0xf]
        %v2872 = vld [vmem:[%s2868 + $0xc] sm:$0xf]
        %v2873 = vld [vmem:[%s2868 + $0x10] sm:$0xf]
        %v2874 = vld [vmem:[%s2868 + $0x14] sm:$0xf]
        %v2875 = vld [vmem:[%s2868 + $0x18] sm:$0xf]
        %v2876 = vld [vmem:[%s2868 + $0x1c] sm:$0xf]
        %v2877 = vld [vmem:[%s2868 + $0x20] sm:$0xf]
        %v2878 = vld [vmem:[%s2868 + $0x24] sm:$0xf]
        %v2879 = vld [vmem:[%s2868 + $0x28] sm:$0xf]
        %v2880 = vld [vmem:[%s2868 + $0x2c] sm:$0xf]
        %v2881 = vld [vmem:[%s2868 + $0x30] sm:$0xf]
        %v2882 = vld [vmem:[%s2868 + $0x34] sm:$0xf]
        %v2883 = vld [vmem:[%s2868 + $0x38] sm:$0xf]
        %v2884 = vld [vmem:[%s2868 + $0x3c] sm:$0xf]
        %v2889 = vunpack.c.l.b16 %v2869
        %v2890 = vunpack.c.l.b16 %v2870
        %v2891 = vunpack.c.l.b16 %v2871
        %v2892 = vunpack.c.l.b16 %v2872
        %v2893 = vpack.c.b16 %v2890, %v2889
        %v2894 = vpack.c.b16 %v2892, %v2891
        %v2898 = vsel %vm717, %v2866, 0
        %v2901 = vsel %vm717, %v2867, 0
        %2903 = vmatprep.subr.bf16.mxu0 0
        %2904 = vmatpush1.bf16.msra.mxu0 %v2893
        %2905 = vmatprep.subr.bf16.mxu0 0
        %2906 = vmatpush1.bf16.msra.mxu0 %v2894
        %2907 = vmatprep.subr.bf16.mxu0 0
        %2908 = vmatpush1.bf16.msra.mxu0 0
        %2909 = vmatprep.subr.bf16.mxu0 0
        %2910 = vmatpush1.bf16.msra.mxu0 0
        %2911 = vmatprep.subr.bf16.mxu0 0
        %2912 = vmatpush1.bf16.msra.mxu0 0
        %2913 = vmatprep.subr.bf16.mxu0 0
        %2914 = vmatpush1.bf16.msra.mxu0 0
        %2915 = vmatprep.subr.bf16.mxu0 0
        %2916 = vmatpush1.bf16.msra.mxu0 0
        %2917 = vmatprep.subr.bf16.mxu0 0
        %2918 = vmatpush1.bf16.msra.mxu0 0
        %2919 = vmatprep.subr.bf16.mxu0 0
        %2920 = vmatpush1.bf16.msra.mxu0 0
        %2921 = vmatprep.subr.bf16.mxu0 0
        %2922 = vmatpush1.bf16.msra.mxu0 0
        %2923 = vmatprep.subr.bf16.mxu0 0
        %2924 = vmatpush1.bf16.msra.mxu0 0
        %2925 = vmatprep.subr.bf16.mxu0 0
        %2926 = vmatpush1.bf16.msra.mxu0 0
        %2927 = vmatprep.subr.bf16.mxu0 0
        %2928 = vmatpush1.bf16.msra.mxu0 0
        %2929 = vmatprep.subr.bf16.mxu0 0
        %2930 = vmatpush1.bf16.msra.mxu0 0
        %2931 = vmatprep.subr.bf16.mxu0 0
        %2932 = vmatpush1.bf16.msra.mxu0 0
        %2933 = vmatprep.subr.bf16.mxu0 0
        %2934 = vmatpush1.bf16.msra.mxu0 0
        %2935 = vmatprep.mubr.bf16.mxu0 0
        %2936 = vmatmul.mubr.bf16.gmra.mrb[0].mxu0 %v2898
        %v2937 = vpop.f32.mrb[0].mxu0
        %v2938 = vadd.f32 0.0, %v2937
        %v2939 = vpop.f32.mrb[0].mxu0
        %v2940 = vpop.f32.mrb[0].mxu0
        %v2941 = vadd.f32 0.0, %v2940
        %v2942 = vpop.f32.mrb[0].mxu0
        %2943 = vmatprep.mubr.bf16.mxu0 0
        %2944 = vmatmul.mubr.bf16.gmra.mrb[0].mxu0 %v2901
        %v2945 = vpop.f32.mrb[0].mxu0
        %v2946 = vadd.f32 0.0, %v2945
        %v2947 = vpop.f32.mrb[0].mxu0
        %v2948 = vpop.f32.mrb[0].mxu0
        %v2949 = vpop.f32.mrb[0].mxu0
        %2950 = vdwg.mxu0
        %v2955 = vunpack.c.l.b16 %v2873
        %v2956 = vunpack.c.l.b16 %v2874
        %v2957 = vunpack.c.l.b16 %v2875
        %v2958 = vunpack.c.l.b16 %v2876
        %v2959 = vpack.c.b16 %v2956, %v2955
        %v2960 = vpack.c.b16 %v2958, %v2957
        %2963 = vmatprep.subr.bf16.mxu0 0
        %2964 = vmatpush1.bf16.msra.mxu0 %v2959
        %2965 = vmatprep.subr.bf16.mxu0 0
        %2966 = vmatpush1.bf16.msra.mxu0 %v2960
        %2967 = vmatprep.subr.bf16.mxu0 0
        %2968 = vmatpush1.bf16.msra.mxu0 0
        %2969 = vmatprep.subr.bf16.mxu0 0
        %2970 = vmatpush1.bf16.msra.mxu0 0
        %2971 = vmatprep.subr.bf16.mxu0 0
        %2972 = vmatpush1.bf16.msra.mxu0 0
        %2973 = vmatprep.subr.bf16.mxu0 0
        %2974 = vmatpush1.bf16.msra.mxu0 0
        %2975 = vmatprep.subr.bf16.mxu0 0
        %2976 = vmatpush1.bf16.msra.mxu0 0
        %2977 = vmatprep.subr.bf16.mxu0 0
        %2978 = vmatpush1.bf16.msra.mxu0 0
        %2979 = vmatprep.subr.bf16.mxu0 0
        %2980 = vmatpush1.bf16.msra.mxu0 0
        %2981 = vmatprep.subr.bf16.mxu0 0
        %2982 = vmatpush1.bf16.msra.mxu0 0
        %2983 = vmatprep.subr.bf16.mxu0 0
        %2984 = vmatpush1.bf16.msra.mxu0 0
        %2985 = vmatprep.subr.bf16.mxu0 0
        %2986 = vmatpush1.bf16.msra.mxu0 0
        %2987 = vmatprep.subr.bf16.mxu0 0
        %2988 = vmatpush1.bf16.msra.mxu0 0
        %2989 = vmatprep.subr.bf16.mxu0 0
        %2990 = vmatpush1.bf16.msra.mxu0 0
        %2991 = vmatprep.subr.bf16.mxu0 0
        %2992 = vmatpush1.bf16.msra.mxu0 0
        %2993 = vmatprep.subr.bf16.mxu0 0
        %2994 = vmatpush1.bf16.msra.mxu0 0
        %2995 = vmatprep.mubr.bf16.mxu0 0
        %2996 = vmatmul.mubr.bf16.gmra.mrb[0].mxu0 %v2898
        %v2997 = vpop.f32.mrb[0].mxu0
        %v2998 = vadd.f32 0.0, %v2997
        %v2999 = vpop.f32.mrb[0].mxu0
        %v3000 = vpop.f32.mrb[0].mxu0
        %v3001 = vadd.f32 0.0, %v3000
        %v3002 = vpop.f32.mrb[0].mxu0
        %3003 = vmatprep.mubr.bf16.mxu0 0
        %3004 = vmatmul.mubr.bf16.gmra.mrb[0].mxu0 %v2901
        %v3005 = vpop.f32.mrb[0].mxu0
        %v3006 = vadd.f32 0.0, %v3005
        %v3007 = vpop.f32.mrb[0].mxu0
        %v3008 = vpop.f32.mrb[0].mxu0
        %v3009 = vpop.f32.mrb[0].mxu0
        %3010 = vdwg.mxu0
        %v3015 = vunpack.c.l.b16 %v2877
        %v3016 = vunpack.c.l.b16 %v2878
        %v3017 = vunpack.c.l.b16 %v2879
        %v3018 = vunpack.c.l.b16 %v2880
        %v3019 = vpack.c.b16 %v3016, %v3015
        %v3020 = vpack.c.b16 %v3018, %v3017
        %3023 = vmatprep.subr.bf16.mxu0 0
        %3024 = vmatpush1.bf16.msra.mxu0 %v3019
        %3025 = vmatprep.subr.bf16.mxu0 0
        %3026 = vmatpush1.bf16.msra.mxu0 %v3020
        %3027 = vmatprep.subr.bf16.mxu0 0
        %3028 = vmatpush1.bf16.msra.mxu0 0
        %3029 = vmatprep.subr.bf16.mxu0 0
        %3030 = vmatpush1.bf16.msra.mxu0 0
        %3031 = vmatprep.subr.bf16.mxu0 0
        %3032 = vmatpush1.bf16.msra.mxu0 0
        %3033 = vmatprep.subr.bf16.mxu0 0
        %3034 = vmatpush1.bf16.msra.mxu0 0
        %3035 = vmatprep.subr.bf16.mxu0 0
        %3036 = vmatpush1.bf16.msra.mxu0 0
        %3037 = vmatprep.subr.bf16.mxu0 0
        %3038 = vmatpush1.bf16.msra.mxu0 0
        %3039 = vmatprep.subr.bf16.mxu0 0
        %3040 = vmatpush1.bf16.msra.mxu0 0
        %3041 = vmatprep.subr.bf16.mxu0 0
        %3042 = vmatpush1.bf16.msra.mxu0 0
        %3043 = vmatprep.subr.bf16.mxu0 0
        %3044 = vmatpush1.bf16.msra.mxu0 0
        %3045 = vmatprep.subr.bf16.mxu0 0
        %3046 = vmatpush1.bf16.msra.mxu0 0
        %3047 = vmatprep.subr.bf16.mxu0 0
        %3048 = vmatpush1.bf16.msra.mxu0 0
        %3049 = vmatprep.subr.bf16.mxu0 0
        %3050 = vmatpush1.bf16.msra.mxu0 0
        %3051 = vmatprep.subr.bf16.mxu0 0
        %3052 = vmatpush1.bf16.msra.mxu0 0
        %3053 = vmatprep.subr.bf16.mxu0 0
        %3054 = vmatpush1.bf16.msra.mxu0 0
        %3055 = vmatprep.mubr.bf16.mxu0 0
        %3056 = vmatmul.mubr.bf16.gmra.mrb[0].mxu0 %v2898
        %v3057 = vpop.f32.mrb[0].mxu0
        %v3058 = vadd.f32 0.0, %v3057
        %v3059 = vpop.f32.mrb[0].mxu0
        %v3060 = vpop.f32.mrb[0].mxu0
        %v3061 = vadd.f32 0.0, %v3060
        %v3062 = vpop.f32.mrb[0].mxu0
        %3063 = vmatprep.mubr.bf16.mxu0 0
        %3064 = vmatmul.mubr.bf16.gmra.mrb[0].mxu0 %v2901
        %v3065 = vpop.f32.mrb[0].mxu0
        %v3066 = vadd.f32 0.0, %v3065
        %v3067 = vpop.f32.mrb[0].mxu0
        %v3068 = vpop.f32.mrb[0].mxu0
        %v3069 = vpop.f32.mrb[0].mxu0
        %3070 = vdwg.mxu0
        %v3075 = vunpack.c.l.b16 %v2881
        %v3076 = vunpack.c.l.b16 %v2882
        %v3077 = vunpack.c.l.b16 %v2883
        %v3078 = vunpack.c.l.b16 %v2884
        %v3079 = vpack.c.b16 %v3076, %v3075
        %v3080 = vpack.c.b16 %v3078, %v3077
        %3083 = vmatprep.subr.bf16.mxu0 0
        %3084 = vmatpush1.bf16.msra.mxu0 %v3079
        %3085 = vmatprep.subr.bf16.mxu0 0
        %3086 = vmatpush1.bf16.msra.mxu0 %v3080
        %3087 = vmatprep.subr.bf16.mxu0 0
        %3088 = vmatpush1.bf16.msra.mxu0 0
        %3089 = vmatprep.subr.bf16.mxu0 0
        %3090 = vmatpush1.bf16.msra.mxu0 0
        %3091 = vmatprep.subr.bf16.mxu0 0
        %3092 = vmatpush1.bf16.msra.mxu0 0
        %3093 = vmatprep.subr.bf16.mxu0 0
        %3094 = vmatpush1.bf16.msra.mxu0 0
        %3095 = vmatprep.subr.bf16.mxu0 0
        %3096 = vmatpush1.bf16.msra.mxu0 0
        %3097 = vmatprep.subr.bf16.mxu0 0
        %3098 = vmatpush1.bf16.msra.mxu0 0
        %3099 = vmatprep.subr.bf16.mxu0 0
        %3100 = vmatpush1.bf16.msra.mxu0 0
        %3101 = vmatprep.subr.bf16.mxu0 0
        %3102 = vmatpush1.bf16.msra.mxu0 0
        %3103 = vmatprep.subr.bf16.mxu0 0
        %3104 = vmatpush1.bf16.msra.mxu0 0
        %3105 = vmatprep.subr.bf16.mxu0 0
        %3106 = vmatpush1.bf16.msra.mxu0 0
        %3107 = vmatprep.subr.bf16.mxu0 0
        %3108 = vmatpush1.bf16.msra.mxu0 0
        %3109 = vmatprep.subr.bf16.mxu0 0
        %3110 = vmatpush1.bf16.msra.mxu0 0
        %3111 = vmatprep.subr.bf16.mxu0 0
        %3112 = vmatpush1.bf16.msra.mxu0 0
        %3113 = vmatprep.subr.bf16.mxu0 0
        %3114 = vmatpush1.bf16.msra.mxu0 0
        %3115 = vmatprep.mubr.bf16.mxu0 0
        %3116 = vmatmul.mubr.bf16.gmra.mrb[0].mxu0 %v2898
        %v3117 = vpop.f32.mrb[0].mxu0
        %v3118 = vadd.f32 0.0, %v3117
        %v3119 = vpop.f32.mrb[0].mxu0
        %v3120 = vpop.f32.mrb[0].mxu0
        %v3121 = vadd.f32 0.0, %v3120
        %v3122 = vpop.f32.mrb[0].mxu0
        %3123 = vmatprep.mubr.bf16.mxu0 0
        %3124 = vmatmul.mubr.bf16.gmra.mrb[0].mxu0 %v2901
        %v3125 = vpop.f32.mrb[0].mxu0
        %v3126 = vadd.f32 0.0, %v3125
        %v3127 = vpop.f32.mrb[0].mxu0
        %v3128 = vpop.f32.mrb[0].mxu0
        %v3129 = vpop.f32.mrb[0].mxu0
        %3130 = vdwg.mxu0
        %s3131 = scalar_lea.vmem %s6, 64
        %v3132 = vld [vmem:[%s3131] sm:$0xf]
        %v3133 = vld [vmem:[%s3131 + $0x4] sm:$0xf]
        %v3134 = vld [vmem:[%s3131 + $0x8] sm:$0xf]
        %v3135 = vld [vmem:[%s3131 + $0xc] sm:$0xf]
        %v3136 = vld [vmem:[%s3131 + $0x10] sm:$0xf]
        %v3137 = vld [vmem:[%s3131 + $0x14] sm:$0xf]
        %v3138 = vld [vmem:[%s3131 + $0x18] sm:$0xf]
        %v3139 = vld [vmem:[%s3131 + $0x1c] sm:$0xf]
        %v3140 = vld [vmem:[%s3131 + $0x20] sm:$0xf]
        %v3141 = vld [vmem:[%s3131 + $0x24] sm:$0xf]
        %v3142 = vld [vmem:[%s3131 + $0x28] sm:$0xf]
        %v3143 = vld [vmem:[%s3131 + $0x2c] sm:$0xf]
        %v3144 = vld [vmem:[%s3131 + $0x30] sm:$0xf]
        %v3145 = vld [vmem:[%s3131 + $0x34] sm:$0xf]
        %v3146 = vld [vmem:[%s3131 + $0x38] sm:$0xf]
        %v3147 = vld [vmem:[%s3131 + $0x3c] sm:$0xf]
        %v3152 = vunpack.c.l.b16 %v3132
        %v3153 = vunpack.c.l.b16 %v3133
        %v3154 = vunpack.c.l.b16 %v3134
        %v3155 = vunpack.c.l.b16 %v3135
        %v3156 = vpack.c.b16 %v3153, %v3152
        %v3157 = vpack.c.b16 %v3155, %v3154
        %3160 = vmatprep.subr.bf16.mxu0 0
        %3161 = vmatpush1.bf16.msra.mxu0 %v3156
        %3162 = vmatprep.subr.bf16.mxu0 0
        %3163 = vmatpush1.bf16.msra.mxu0 %v3157
        %3164 = vmatprep.subr.bf16.mxu0 0
        %3165 = vmatpush1.bf16.msra.mxu0 0
        %3166 = vmatprep.subr.bf16.mxu0 0
        %3167 = vmatpush1.bf16.msra.mxu0 0
        %3168 = vmatprep.subr.bf16.mxu0 0
        %3169 = vmatpush1.bf16.msra.mxu0 0
        %3170 = vmatprep.subr.bf16.mxu0 0
        %3171 = vmatpush1.bf16.msra.mxu0 0
        %3172 = vmatprep.subr.bf16.mxu0 0
        %3173 = vmatpush1.bf16.msra.mxu0 0
        %3174 = vmatprep.subr.bf16.mxu0 0
        %3175 = vmatpush1.bf16.msra.mxu0 0
        %3176 = vmatprep.subr.bf16.mxu0 0
        %3177 = vmatpush1.bf16.msra.mxu0 0
        %3178 = vmatprep.subr.bf16.mxu0 0
        %3179 = vmatpush1.bf16.msra.mxu0 0
        %3180 = vmatprep.subr.bf16.mxu0 0
        %3181 = vmatpush1.bf16.msra.mxu0 0
        %3182 = vmatprep.subr.bf16.mxu0 0
        %3183 = vmatpush1.bf16.msra.mxu0 0
        %3184 = vmatprep.subr.bf16.mxu0 0
        %3185 = vmatpush1.bf16.msra.mxu0 0
        %3186 = vmatprep.subr.bf16.mxu0 0
        %3187 = vmatpush1.bf16.msra.mxu0 0
        %3188 = vmatprep.subr.bf16.mxu0 0
        %3189 = vmatpush1.bf16.msra.mxu0 0
        %3190 = vmatprep.subr.bf16.mxu0 0
        %3191 = vmatpush1.bf16.msra.mxu0 0
        %3192 = vmatprep.mubr.bf16.mxu0 0
        %3193 = vmatmul.mubr.bf16.gmra.mrb[0].mxu0 %v2898
        %v3194 = vpop.f32.mrb[0].mxu0
        %v3195 = vadd.f32 0.0, %v3194
        %v3196 = vpop.f32.mrb[0].mxu0
        %v3197 = vpop.f32.mrb[0].mxu0
        %v3198 = vadd.f32 0.0, %v3197
        %v3199 = vpop.f32.mrb[0].mxu0
        %3200 = vmatprep.mubr.bf16.mxu0 0
        %3201 = vmatmul.mubr.bf16.gmra.mrb[0].mxu0 %v2901
        %v3202 = vpop.f32.mrb[0].mxu0
        %v3203 = vadd.f32 0.0, %v3202
        %v3204 = vpop.f32.mrb[0].mxu0
        %v3205 = vpop.f32.mrb[0].mxu0
        %v3206 = vpop.f32.mrb[0].mxu0
        %3207 = vdwg.mxu0
        %v3212 = vunpack.c.l.b16 %v3136
        %v3213 = vunpack.c.l.b16 %v3137
        %v3214 = vunpack.c.l.b16 %v3138
        %v3215 = vunpack.c.l.b16 %v3139
        %v3216 = vpack.c.b16 %v3213, %v3212
        %v3217 = vpack.c.b16 %v3215, %v3214
        %3220 = vmatprep.subr.bf16.mxu0 0
        %3221 = vmatpush1.bf16.msra.mxu0 %v3216
        %3222 = vmatprep.subr.bf16.mxu0 0
        %3223 = vmatpush1.bf16.msra.mxu0 %v3217
        %3224 = vmatprep.subr.bf16.mxu0 0
        %3225 = vmatpush1.bf16.msra.mxu0 0
        %3226 = vmatprep.subr.bf16.mxu0 0
        %3227 = vmatpush1.bf16.msra.mxu0 0
        %3228 = vmatprep.subr.bf16.mxu0 0
        %3229 = vmatpush1.bf16.msra.mxu0 0
        %3230 = vmatprep.subr.bf16.mxu0 0
        %3231 = vmatpush1.bf16.msra.mxu0 0
        %3232 = vmatprep.subr.bf16.mxu0 0
        %3233 = vmatpush1.bf16.msra.mxu0 0
        %3234 = vmatprep.subr.bf16.mxu0 0
        %3235 = vmatpush1.bf16.msra.mxu0 0
        %3236 = vmatprep.subr.bf16.mxu0 0
        %3237 = vmatpush1.bf16.msra.mxu0 0
        %3238 = vmatprep.subr.bf16.mxu0 0
        %3239 = vmatpush1.bf16.msra.mxu0 0
        %3240 = vmatprep.subr.bf16.mxu0 0
        %3241 = vmatpush1.bf16.msra.mxu0 0
        %3242 = vmatprep.subr.bf16.mxu0 0
        %3243 = vmatpush1.bf16.msra.mxu0 0
        %3244 = vmatprep.subr.bf16.mxu0 0
        %3245 = vmatpush1.bf16.msra.mxu0 0
        %3246 = vmatprep.subr.bf16.mxu0 0
        %3247 = vmatpush1.bf16.msra.mxu0 0
        %3248 = vmatprep.subr.bf16.mxu0 0
        %3249 = vmatpush1.bf16.msra.mxu0 0
        %3250 = vmatprep.subr.bf16.mxu0 0
        %3251 = vmatpush1.bf16.msra.mxu0 0
        %3252 = vmatprep.mubr.bf16.mxu0 0
        %3253 = vmatmul.mubr.bf16.gmra.mrb[0].mxu0 %v2898
        %v3254 = vpop.f32.mrb[0].mxu0
        %v3255 = vadd.f32 0.0, %v3254
        %v3256 = vpop.f32.mrb[0].mxu0
        %v3257 = vpop.f32.mrb[0].mxu0
        %v3258 = vadd.f32 0.0, %v3257
        %v3259 = vpop.f32.mrb[0].mxu0
        %3260 = vmatprep.mubr.bf16.mxu0 0
        %3261 = vmatmul.mubr.bf16.gmra.mrb[0].mxu0 %v2901
        %v3262 = vpop.f32.mrb[0].mxu0
        %v3263 = vadd.f32 0.0, %v3262
        %v3264 = vpop.f32.mrb[0].mxu0
        %v3265 = vpop.f32.mrb[0].mxu0
        %v3266 = vpop.f32.mrb[0].mxu0
        %3267 = vdwg.mxu0
        %v3272 = vunpack.c.l.b16 %v3140
        %v3273 = vunpack.c.l.b16 %v3141
        %v3274 = vunpack.c.l.b16 %v3142
        %v3275 = vunpack.c.l.b16 %v3143
        %v3276 = vpack.c.b16 %v3273, %v3272
        %v3277 = vpack.c.b16 %v3275, %v3274
        %3280 = vmatprep.subr.bf16.mxu0 0
        %3281 = vmatpush1.bf16.msra.mxu0 %v3276
        %3282 = vmatprep.subr.bf16.mxu0 0
        %3283 = vmatpush1.bf16.msra.mxu0 %v3277
        %3284 = vmatprep.subr.bf16.mxu0 0
        %3285 = vmatpush1.bf16.msra.mxu0 0
        %3286 = vmatprep.subr.bf16.mxu0 0
        %3287 = vmatpush1.bf16.msra.mxu0 0
        %3288 = vmatprep.subr.bf16.mxu0 0
        %3289 = vmatpush1.bf16.msra.mxu0 0
        %3290 = vmatprep.subr.bf16.mxu0 0
        %3291 = vmatpush1.bf16.msra.mxu0 0
        %3292 = vmatprep.subr.bf16.mxu0 0
        %3293 = vmatpush1.bf16.msra.mxu0 0
        %3294 = vmatprep.subr.bf16.mxu0 0
        %3295 = vmatpush1.bf16.msra.mxu0 0
        %3296 = vmatprep.subr.bf16.mxu0 0
        %3297 = vmatpush1.bf16.msra.mxu0 0
        %3298 = vmatprep.subr.bf16.mxu0 0
        %3299 = vmatpush1.bf16.msra.mxu0 0
        %3300 = vmatprep.subr.bf16.mxu0 0
        %3301 = vmatpush1.bf16.msra.mxu0 0
        %3302 = vmatprep.subr.bf16.mxu0 0
        %3303 = vmatpush1.bf16.msra.mxu0 0
        %3304 = vmatprep.subr.bf16.mxu0 0
        %3305 = vmatpush1.bf16.msra.mxu0 0
        %3306 = vmatprep.subr.bf16.mxu0 0
        %3307 = vmatpush1.bf16.msra.mxu0 0
        %3308 = vmatprep.subr.bf16.mxu0 0
        %3309 = vmatpush1.bf16.msra.mxu0 0
        %3310 = vmatprep.subr.bf16.mxu0 0
        %3311 = vmatpush1.bf16.msra.mxu0 0
        %3312 = vmatprep.mubr.bf16.mxu0 0
        %3313 = vmatmul.mubr.bf16.gmra.mrb[0].mxu0 %v2898
        %v3314 = vpop.f32.mrb[0].mxu0
        %v3315 = vadd.f32 0.0, %v3314
        %v3316 = vpop.f32.mrb[0].mxu0
        %v3317 = vpop.f32.mrb[0].mxu0
        %v3318 = vadd.f32 0.0, %v3317
        %v3319 = vpop.f32.mrb[0].mxu0
        %3320 = vmatprep.mubr.bf16.mxu0 0
        %3321 = vmatmul.mubr.bf16.gmra.mrb[0].mxu0 %v2901
        %v3322 = vpop.f32.mrb[0].mxu0
        %v3323 = vadd.f32 0.0, %v3322
        %v3324 = vpop.f32.mrb[0].mxu0
        %v3325 = vpop.f32.mrb[0].mxu0
        %v3326 = vpop.f32.mrb[0].mxu0
        %3327 = vdwg.mxu0
        %v3332 = vunpack.c.l.b16 %v3144
        %v3333 = vunpack.c.l.b16 %v3145
        %v3334 = vunpack.c.l.b16 %v3146
        %v3335 = vunpack.c.l.b16 %v3147
        %v3336 = vpack.c.b16 %v3333, %v3332
        %v3337 = vpack.c.b16 %v3335, %v3334
        %3340 = vmatprep.subr.bf16.mxu0 0
        %3341 = vmatpush1.bf16.msra.mxu0 %v3336
        %3342 = vmatprep.subr.bf16.mxu0 0
        %3343 = vmatpush1.bf16.msra.mxu0 %v3337
        %3344 = vmatprep.subr.bf16.mxu0 0
        %3345 = vmatpush1.bf16.msra.mxu0 0
        %3346 = vmatprep.subr.bf16.mxu0 0
        %3347 = vmatpush1.bf16.msra.mxu0 0
        %3348 = vmatprep.subr.bf16.mxu0 0
        %3349 = vmatpush1.bf16.msra.mxu0 0
        %3350 = vmatprep.subr.bf16.mxu0 0
        %3351 = vmatpush1.bf16.msra.mxu0 0
        %3352 = vmatprep.subr.bf16.mxu0 0
        %3353 = vmatpush1.bf16.msra.mxu0 0
        %3354 = vmatprep.subr.bf16.mxu0 0
        %3355 = vmatpush1.bf16.msra.mxu0 0
        %3356 = vmatprep.subr.bf16.mxu0 0
        %3357 = vmatpush1.bf16.msra.mxu0 0
        %3358 = vmatprep.subr.bf16.mxu0 0
        %3359 = vmatpush1.bf16.msra.mxu0 0
        %3360 = vmatprep.subr.bf16.mxu0 0
        %3361 = vmatpush1.bf16.msra.mxu0 0
        %3362 = vmatprep.subr.bf16.mxu0 0
        %3363 = vmatpush1.bf16.msra.mxu0 0
        %3364 = vmatprep.subr.bf16.mxu0 0
        %3365 = vmatpush1.bf16.msra.mxu0 0
        %3366 = vmatprep.subr.bf16.mxu0 0
        %3367 = vmatpush1.bf16.msra.mxu0 0
        %3368 = vmatprep.subr.bf16.mxu0 0
        %3369 = vmatpush1.bf16.msra.mxu0 0
        %3370 = vmatprep.subr.bf16.mxu0 0
        %3371 = vmatpush1.bf16.msra.mxu0 0
        %3372 = vmatprep.mubr.bf16.mxu0 0
        %3373 = vmatmul.mubr.bf16.gmra.mrb[0].mxu0 %v2898
        %v3374 = vpop.f32.mrb[0].mxu0
        %v3375 = vadd.f32 0.0, %v3374
        %v3376 = vpop.f32.mrb[0].mxu0
        %v3377 = vpop.f32.mrb[0].mxu0
        %v3378 = vadd.f32 0.0, %v3377
        %v3379 = vpop.f32.mrb[0].mxu0
        %3380 = vmatprep.mubr.bf16.mxu0 0
        %3381 = vmatmul.mubr.bf16.gmra.mrb[0].mxu0 %v2901
        %v3382 = vpop.f32.mrb[0].mxu0
        %v3383 = vadd.f32 0.0, %v3382
        %v3384 = vpop.f32.mrb[0].mxu0
        %v3385 = vpop.f32.mrb[0].mxu0
        %v3386 = vpop.f32.mrb[0].mxu0
        %3387 = vdwg.mxu0
        %s3388 = scalar_lea.vmem %s7, 64
        %v3389 = vld [vmem:[%s3388] sm:$0xf]
        %v3390 = vld [vmem:[%s3388 + $0x4] sm:$0xf]
        %v3391 = vld [vmem:[%s3388 + $0x8] sm:$0xf]
        %v3392 = vld [vmem:[%s3388 + $0xc] sm:$0xf]
        %v3393 = vld [vmem:[%s3388 + $0x10] sm:$0xf]
        %v3394 = vld [vmem:[%s3388 + $0x14] sm:$0xf]
        %v3395 = vld [vmem:[%s3388 + $0x18] sm:$0xf]
        %v3396 = vld [vmem:[%s3388 + $0x1c] sm:$0xf]
        %v3397 = vld [vmem:[%s3388 + $0x20] sm:$0xf]
        %v3398 = vld [vmem:[%s3388 + $0x24] sm:$0xf]
        %v3399 = vld [vmem:[%s3388 + $0x28] sm:$0xf]
        %v3400 = vld [vmem:[%s3388 + $0x2c] sm:$0xf]
        %v3401 = vld [vmem:[%s3388 + $0x30] sm:$0xf]
        %v3402 = vld [vmem:[%s3388 + $0x34] sm:$0xf]
        %v3403 = vld [vmem:[%s3388 + $0x38] sm:$0xf]
        %v3404 = vld [vmem:[%s3388 + $0x3c] sm:$0xf]
        %v3409 = vunpack.c.l.b16 %v3389
        %v3410 = vunpack.c.l.b16 %v3390
        %v3411 = vunpack.c.l.b16 %v3391
        %v3412 = vunpack.c.l.b16 %v3392
        %v3413 = vpack.c.b16 %v3410, %v3409
        %v3414 = vpack.c.b16 %v3412, %v3411
        %3417 = vmatprep.subr.bf16.mxu0 0
        %3418 = vmatpush1.bf16.msra.mxu0 %v3413
        %3419 = vmatprep.subr.bf16.mxu0 0
        %3420 = vmatpush1.bf16.msra.mxu0 %v3414
        %3421 = vmatprep.subr.bf16.mxu0 0
        %3422 = vmatpush1.bf16.msra.mxu0 0
        %3423 = vmatprep.subr.bf16.mxu0 0
        %3424 = vmatpush1.bf16.msra.mxu0 0
        %3425 = vmatprep.subr.bf16.mxu0 0
        %3426 = vmatpush1.bf16.msra.mxu0 0
        %3427 = vmatprep.subr.bf16.mxu0 0
        %3428 = vmatpush1.bf16.msra.mxu0 0
        %3429 = vmatprep.subr.bf16.mxu0 0
        %3430 = vmatpush1.bf16.msra.mxu0 0
        %3431 = vmatprep.subr.bf16.mxu0 0
        %3432 = vmatpush1.bf16.msra.mxu0 0
        %3433 = vmatprep.subr.bf16.mxu0 0
        %3434 = vmatpush1.bf16.msra.mxu0 0
        %3435 = vmatprep.subr.bf16.mxu0 0
        %3436 = vmatpush1.bf16.msra.mxu0 0
        %3437 = vmatprep.subr.bf16.mxu0 0
        %3438 = vmatpush1.bf16.msra.mxu0 0
        %3439 = vmatprep.subr.bf16.mxu0 0
        %3440 = vmatpush1.bf16.msra.mxu0 0
        %3441 = vmatprep.subr.bf16.mxu0 0
        %3442 = vmatpush1.bf16.msra.mxu0 0
        %3443 = vmatprep.subr.bf16.mxu0 0
        %3444 = vmatpush1.bf16.msra.mxu0 0
        %3445 = vmatprep.subr.bf16.mxu0 0
        %3446 = vmatpush1.bf16.msra.mxu0 0
        %3447 = vmatprep.subr.bf16.mxu0 0
        %3448 = vmatpush1.bf16.msra.mxu0 0
        %3449 = vmatprep.mubr.bf16.mxu0 0
        %3450 = vmatmul.mubr.bf16.gmra.mrb[0].mxu0 %v2898
        %v3451 = vpop.f32.mrb[0].mxu0
        %v3452 = vadd.f32 0.0, %v3451
        %v3453 = vpop.f32.mrb[0].mxu0
        %v3454 = vpop.f32.mrb[0].mxu0
        %v3455 = vadd.f32 0.0, %v3454
        %v3456 = vpop.f32.mrb[0].mxu0
        %3457 = vmatprep.mubr.bf16.mxu0 0
        %3458 = vmatmul.mubr.bf16.gmra.mrb[0].mxu0 %v2901
        %v3459 = vpop.f32.mrb[0].mxu0
        %v3460 = vadd.f32 0.0, %v3459
        %v3461 = vpop.f32.mrb[0].mxu0
        %v3462 = vpop.f32.mrb[0].mxu0
        %v3463 = vpop.f32.mrb[0].mxu0
        %3464 = vdwg.mxu0
        %v3469 = vunpack.c.l.b16 %v3393
        %v3470 = vunpack.c.l.b16 %v3394
        %v3471 = vunpack.c.l.b16 %v3395
        %v3472 = vunpack.c.l.b16 %v3396
        %v3473 = vpack.c.b16 %v3470, %v3469
        %v3474 = vpack.c.b16 %v3472, %v3471
        %3477 = vmatprep.subr.bf16.mxu0 0
        %3478 = vmatpush1.bf16.msra.mxu0 %v3473
        %3479 = vmatprep.subr.bf16.mxu0 0
        %3480 = vmatpush1.bf16.msra.mxu0 %v3474
        %3481 = vmatprep.subr.bf16.mxu0 0
        %3482 = vmatpush1.bf16.msra.mxu0 0
        %3483 = vmatprep.subr.bf16.mxu0 0
        %3484 = vmatpush1.bf16.msra.mxu0 0
        %3485 = vmatprep.subr.bf16.mxu0 0
        %3486 = vmatpush1.bf16.msra.mxu0 0
        %3487 = vmatprep.subr.bf16.mxu0 0
        %3488 = vmatpush1.bf16.msra.mxu0 0
        %3489 = vmatprep.subr.bf16.mxu0 0
        %3490 = vmatpush1.bf16.msra.mxu0 0
        %3491 = vmatprep.subr.bf16.mxu0 0
        %3492 = vmatpush1.bf16.msra.mxu0 0
        %3493 = vmatprep.subr.bf16.mxu0 0
        %3494 = vmatpush1.bf16.msra.mxu0 0
        %3495 = vmatprep.subr.bf16.mxu0 0
        %3496 = vmatpush1.bf16.msra.mxu0 0
        %3497 = vmatprep.subr.bf16.mxu0 0
        %3498 = vmatpush1.bf16.msra.mxu0 0
        %3499 = vmatprep.subr.bf16.mxu0 0
        %3500 = vmatpush1.bf16.msra.mxu0 0
        %3501 = vmatprep.subr.bf16.mxu0 0
        %3502 = vmatpush1.bf16.msra.mxu0 0
        %3503 = vmatprep.subr.bf16.mxu0 0
        %3504 = vmatpush1.bf16.msra.mxu0 0
        %3505 = vmatprep.subr.bf16.mxu0 0
        %3506 = vmatpush1.bf16.msra.mxu0 0
        %3507 = vmatprep.subr.bf16.mxu0 0
        %3508 = vmatpush1.bf16.msra.mxu0 0
        %3509 = vmatprep.mubr.bf16.mxu0 0
        %3510 = vmatmul.mubr.bf16.gmra.mrb[0].mxu0 %v2898
        %v3511 = vpop.f32.mrb[0].mxu0
        %v3512 = vadd.f32 0.0, %v3511
        %v3513 = vpop.f32.mrb[0].mxu0
        %v3514 = vpop.f32.mrb[0].mxu0
        %v3515 = vadd.f32 0.0, %v3514
        %v3516 = vpop.f32.mrb[0].mxu0
        %3517 = vmatprep.mubr.bf16.mxu0 0
        %3518 = vmatmul.mubr.bf16.gmra.mrb[0].mxu0 %v2901
        %v3519 = vpop.f32.mrb[0].mxu0
        %v3520 = vadd.f32 0.0, %v3519
        %v3521 = vpop.f32.mrb[0].mxu0
        %v3522 = vpop.f32.mrb[0].mxu0
        %v3523 = vpop.f32.mrb[0].mxu0
        %3524 = vdwg.mxu0
        %v3529 = vunpack.c.l.b16 %v3397
        %v3530 = vunpack.c.l.b16 %v3398
        %v3531 = vunpack.c.l.b16 %v3399
        %v3532 = vunpack.c.l.b16 %v3400
        %v3533 = vpack.c.b16 %v3530, %v3529
        %v3534 = vpack.c.b16 %v3532, %v3531
        %3537 = vmatprep.subr.bf16.mxu0 0
        %3538 = vmatpush1.bf16.msra.mxu0 %v3533
        %3539 = vmatprep.subr.bf16.mxu0 0
        %3540 = vmatpush1.bf16.msra.mxu0 %v3534
        %3541 = vmatprep.subr.bf16.mxu0 0
        %3542 = vmatpush1.bf16.msra.mxu0 0
        %3543 = vmatprep.subr.bf16.mxu0 0
        %3544 = vmatpush1.bf16.msra.mxu0 0
        %3545 = vmatprep.subr.bf16.mxu0 0
        %3546 = vmatpush1.bf16.msra.mxu0 0
        %3547 = vmatprep.subr.bf16.mxu0 0
        %3548 = vmatpush1.bf16.msra.mxu0 0
        %3549 = vmatprep.subr.bf16.mxu0 0
        %3550 = vmatpush1.bf16.msra.mxu0 0
        %3551 = vmatprep.subr.bf16.mxu0 0
        %3552 = vmatpush1.bf16.msra.mxu0 0
        %3553 = vmatprep.subr.bf16.mxu0 0
        %3554 = vmatpush1.bf16.msra.mxu0 0
        %3555 = vmatprep.subr.bf16.mxu0 0
        %3556 = vmatpush1.bf16.msra.mxu0 0
        %3557 = vmatprep.subr.bf16.mxu0 0
        %3558 = vmatpush1.bf16.msra.mxu0 0
        %3559 = vmatprep.subr.bf16.mxu0 0
        %3560 = vmatpush1.bf16.msra.mxu0 0
        %3561 = vmatprep.subr.bf16.mxu0 0
        %3562 = vmatpush1.bf16.msra.mxu0 0
        %3563 = vmatprep.subr.bf16.mxu0 0
        %3564 = vmatpush1.bf16.msra.mxu0 0
        %3565 = vmatprep.subr.bf16.mxu0 0
        %3566 = vmatpush1.bf16.msra.mxu0 0
        %3567 = vmatprep.subr.bf16.mxu0 0
        %3568 = vmatpush1.bf16.msra.mxu0 0
        %3569 = vmatprep.mubr.bf16.mxu0 0
        %3570 = vmatmul.mubr.bf16.gmra.mrb[0].mxu0 %v2898
        %v3571 = vpop.f32.mrb[0].mxu0
        %v3572 = vadd.f32 0.0, %v3571
        %v3573 = vpop.f32.mrb[0].mxu0
        %v3574 = vpop.f32.mrb[0].mxu0
        %v3575 = vadd.f32 0.0, %v3574
        %v3576 = vpop.f32.mrb[0].mxu0
        %3577 = vmatprep.mubr.bf16.mxu0 0
        %3578 = vmatmul.mubr.bf16.gmra.mrb[0].mxu0 %v2901
        %v3579 = vpop.f32.mrb[0].mxu0
        %v3580 = vadd.f32 0.0, %v3579
        %v3581 = vpop.f32.mrb[0].mxu0
        %v3582 = vpop.f32.mrb[0].mxu0
        %v3583 = vpop.f32.mrb[0].mxu0
        %3584 = vdwg.mxu0
        %v3589 = vunpack.c.l.b16 %v3401
        %v3590 = vunpack.c.l.b16 %v3402
        %v3591 = vunpack.c.l.b16 %v3403
        %v3592 = vunpack.c.l.b16 %v3404
        %v3593 = vpack.c.b16 %v3590, %v3589
        %v3594 = vpack.c.b16 %v3592, %v3591
        %3597 = vmatprep.subr.bf16.mxu0 0
        %3598 = vmatpush1.bf16.msra.mxu0 %v3593
        %3599 = vmatprep.subr.bf16.mxu0 0
        %3600 = vmatpush1.bf16.msra.mxu0 %v3594
        %3601 = vmatprep.subr.bf16.mxu0 0
        %3602 = vmatpush1.bf16.msra.mxu0 0
        %3603 = vmatprep.subr.bf16.mxu0 0
        %3604 = vmatpush1.bf16.msra.mxu0 0
        %3605 = vmatprep.subr.bf16.mxu0 0
        %3606 = vmatpush1.bf16.msra.mxu0 0
        %3607 = vmatprep.subr.bf16.mxu0 0
        %3608 = vmatpush1.bf16.msra.mxu0 0
        %3609 = vmatprep.subr.bf16.mxu0 0
        %3610 = vmatpush1.bf16.msra.mxu0 0
        %3611 = vmatprep.subr.bf16.mxu0 0
        %3612 = vmatpush1.bf16.msra.mxu0 0
        %3613 = vmatprep.subr.bf16.mxu0 0
        %3614 = vmatpush1.bf16.msra.mxu0 0
        %3615 = vmatprep.subr.bf16.mxu0 0
        %3616 = vmatpush1.bf16.msra.mxu0 0
        %3617 = vmatprep.subr.bf16.mxu0 0
        %3618 = vmatpush1.bf16.msra.mxu0 0
        %3619 = vmatprep.subr.bf16.mxu0 0
        %3620 = vmatpush1.bf16.msra.mxu0 0
        %3621 = vmatprep.subr.bf16.mxu0 0
        %3622 = vmatpush1.bf16.msra.mxu0 0
        %3623 = vmatprep.subr.bf16.mxu0 0
        %3624 = vmatpush1.bf16.msra.mxu0 0
        %3625 = vmatprep.subr.bf16.mxu0 0
        %3626 = vmatpush1.bf16.msra.mxu0 0
        %3627 = vmatprep.subr.bf16.mxu0 0
        %3628 = vmatpush1.bf16.msra.mxu0 0
        %3629 = vmatprep.mubr.bf16.mxu0 0
        %3630 = vmatmul.mubr.bf16.gmra.mrb[0].mxu0 %v2898
        %v3631 = vpop.f32.mrb[0].mxu0
        %v3632 = vadd.f32 0.0, %v3631
        %v3633 = vpop.f32.mrb[0].mxu0
        %v3634 = vpop.f32.mrb[0].mxu0
        %v3635 = vadd.f32 0.0, %v3634
        %v3636 = vpop.f32.mrb[0].mxu0
        %3637 = vmatprep.mubr.bf16.mxu0 0
        %3638 = vmatmul.mubr.bf16.gmra.mrb[0].mxu0 %v2901
        %v3639 = vpop.f32.mrb[0].mxu0
        %v3640 = vadd.f32 0.0, %v3639
        %v3641 = vpop.f32.mrb[0].mxu0
        %v3642 = vpop.f32.mrb[0].mxu0
        %v3643 = vpop.f32.mrb[0].mxu0
        %3644 = vdwg.mxu0
        %v3645 = vpack.c.bf16 %v2941, %v2938
        %v3646 = vpack.c.bf16 %v2946, %v2946
        %v3647 = vpack.c.bf16 %v3001, %v2998
        %v3648 = vpack.c.bf16 %v3006, %v3006
        %v3649 = vpack.c.bf16 %v3061, %v3058
        %v3650 = vpack.c.bf16 %v3066, %v3066
        %v3651 = vpack.c.bf16 %v3121, %v3118
        %v3652 = vpack.c.bf16 %v3126, %v3126
        %v3653 = vpack.c.bf16 %v3198, %v3195
        %v3654 = vpack.c.bf16 %v3203, %v3203
        %v3655 = vpack.c.bf16 %v3258, %v3255
        %v3656 = vpack.c.bf16 %v3263, %v3263
        %v3657 = vpack.c.bf16 %v3318, %v3315
        %v3658 = vpack.c.bf16 %v3323, %v3323
        %v3659 = vpack.c.bf16 %v3378, %v3375
        %v3660 = vpack.c.bf16 %v3383, %v3383
        %v3662 = vsel %vm1569, %v3645, 0
        %v3665 = vsel %vm1569, %v3646, 0
        %v3668 = vsel %vm1569, %v3653, 0
        %v3671 = vsel %vm1569, %v3654, 0
        %3673 = vmatprep.subr.bf16.mxu0 0
        %3674 = vmatpush1.bf16.xpose.msra.mxu0 %v3668
        %3675 = vmatprep.subr.bf16.mxu0 0
        %3676 = vmatpush1.bf16.xpose.msra.mxu0 %v3671
        %3677 = vmatprep.subr.bf16.mxu0 0
        %3678 = vmatpush1.bf16.xpose.msra.mxu0 0
        %3679 = vmatprep.subr.bf16.mxu0 0
        %3680 = vmatpush1.bf16.xpose.msra.mxu0 0
        %3681 = vmatprep.subr.bf16.mxu0 0
        %3682 = vmatpush1.bf16.xpose.msra.mxu0 0
        %3683 = vmatprep.subr.bf16.mxu0 0
        %3684 = vmatpush1.bf16.xpose.msra.mxu0 0
        %3685 = vmatprep.subr.bf16.mxu0 0
        %3686 = vmatpush1.bf16.xpose.msra.mxu0 0
        %3687 = vmatprep.subr.bf16.mxu0 0
        %3688 = vmatpush1.bf16.xpose.msra.mxu0 0
        %3689 = vmatprep.subr.bf16.mxu0 0
        %3690 = vmatpush1.bf16.xpose.msra.mxu0 0
        %3691 = vmatprep.subr.bf16.mxu0 0
        %3692 = vmatpush1.bf16.xpose.msra.mxu0 0
        %3693 = vmatprep.subr.bf16.mxu0 0
        %3694 = vmatpush1.bf16.xpose.msra.mxu0 0
        %3695 = vmatprep.subr.bf16.mxu0 0
        %3696 = vmatpush1.bf16.xpose.msra.mxu0 0
        %3697 = vmatprep.subr.bf16.mxu0 0
        %3698 = vmatpush1.bf16.xpose.msra.mxu0 0
        %3699 = vmatprep.subr.bf16.mxu0 0
        %3700 = vmatpush1.bf16.xpose.msra.mxu0 0
        %3701 = vmatprep.subr.bf16.mxu0 0
        %3702 = vmatpush1.bf16.xpose.msra.mxu0 0
        %3703 = vmatprep.subr.bf16.mxu0 0
        %3704 = vmatpush1.bf16.xpose.msra.mxu0 0
        %3705 = vmatprep.mubr.bf16.mxu0 0
        %3706 = vmatmul.mubr.bf16.gmra.mrb[0].mxu0 %v3662
        %v3707 = vpop.f32.mrb[0].mxu0
        %v3708 = vadd.f32 0.0, %v3707
        %v3709 = vpop.f32.mrb[0].mxu0
        %v3710 = vpop.f32.mrb[0].mxu0
        %v3711 = vadd.f32 0.0, %v3710
        %v3712 = vpop.f32.mrb[0].mxu0
        %3713 = vmatprep.mubr.bf16.mxu0 0
        %3714 = vmatmul.mubr.bf16.gmra.mrb[0].mxu0 %v3665
        %v3715 = vpop.f32.mrb[0].mxu0
        %v3716 = vadd.f32 0.0, %v3715
        %v3717 = vpop.f32.mrb[0].mxu0
        %v3718 = vpop.f32.mrb[0].mxu0
        %v3719 = vpop.f32.mrb[0].mxu0
        %3720 = vdwg.mxu0
        %v3722 = vsel %vm1569, %v3647, 0
        %v3725 = vsel %vm1569, %v3648, 0
        %v3728 = vsel %vm1569, %v3655, 0
        %v3731 = vsel %vm1569, %v3656, 0
        %3733 = vmatprep.subr.bf16.mxu0 0
        %3734 = vmatpush1.bf16.xpose.msra.mxu0 %v3728
        %3735 = vmatprep.subr.bf16.mxu0 0
        %3736 = vmatpush1.bf16.xpose.msra.mxu0 %v3731
        %3737 = vmatprep.subr.bf16.mxu0 0
        %3738 = vmatpush1.bf16.xpose.msra.mxu0 0
        %3739 = vmatprep.subr.bf16.mxu0 0
        %3740 = vmatpush1.bf16.xpose.msra.mxu0 0
        %3741 = vmatprep.subr.bf16.mxu0 0
        %3742 = vmatpush1.bf16.xpose.msra.mxu0 0
        %3743 = vmatprep.subr.bf16.mxu0 0
        %3744 = vmatpush1.bf16.xpose.msra.mxu0 0
        %3745 = vmatprep.subr.bf16.mxu0 0
        %3746 = vmatpush1.bf16.xpose.msra.mxu0 0
        %3747 = vmatprep.subr.bf16.mxu0 0
        %3748 = vmatpush1.bf16.xpose.msra.mxu0 0
        %3749 = vmatprep.subr.bf16.mxu0 0
        %3750 = vmatpush1.bf16.xpose.msra.mxu0 0
        %3751 = vmatprep.subr.bf16.mxu0 0
        %3752 = vmatpush1.bf16.xpose.msra.mxu0 0
        %3753 = vmatprep.subr.bf16.mxu0 0
        %3754 = vmatpush1.bf16.xpose.msra.mxu0 0
        %3755 = vmatprep.subr.bf16.mxu0 0
        %3756 = vmatpush1.bf16.xpose.msra.mxu0 0
        %3757 = vmatprep.subr.bf16.mxu0 0
        %3758 = vmatpush1.bf16.xpose.msra.mxu0 0
        %3759 = vmatprep.subr.bf16.mxu0 0
        %3760 = vmatpush1.bf16.xpose.msra.mxu0 0
        %3761 = vmatprep.subr.bf16.mxu0 0
        %3762 = vmatpush1.bf16.xpose.msra.mxu0 0
        %3763 = vmatprep.subr.bf16.mxu0 0
        %3764 = vmatpush1.bf16.xpose.msra.mxu0 0
        %3765 = vmatprep.mubr.bf16.mxu0 0
        %3766 = vmatmul.mubr.bf16.gmra.mrb[0].mxu0 %v3722
        %v3767 = vpop.f32.mrb[0].mxu0
        %v3768 = vadd.f32 0.0, %v3767
        %v3769 = vpop.f32.mrb[0].mxu0
        %v3770 = vpop.f32.mrb[0].mxu0
        %v3771 = vadd.f32 0.0, %v3770
        %v3772 = vpop.f32.mrb[0].mxu0
        %3773 = vmatprep.mubr.bf16.mxu0 0
        %3774 = vmatmul.mubr.bf16.gmra.mrb[0].mxu0 %v3725
        %v3775 = vpop.f32.mrb[0].mxu0
        %v3776 = vadd.f32 0.0, %v3775
        %v3777 = vpop.f32.mrb[0].mxu0
        %v3778 = vpop.f32.mrb[0].mxu0
        %v3779 = vpop.f32.mrb[0].mxu0
        %3780 = vdwg.mxu0
        %v3782 = vsel %vm1569, %v3649, 0
        %v3785 = vsel %vm1569, %v3650, 0
        %v3788 = vsel %vm1569, %v3657, 0
        %v3791 = vsel %vm1569, %v3658, 0
        %3793 = vmatprep.subr.bf16.mxu0 0
        %3794 = vmatpush1.bf16.xpose.msra.mxu0 %v3788
        %3795 = vmatprep.subr.bf16.mxu0 0
        %3796 = vmatpush1.bf16.xpose.msra.mxu0 %v3791
        %3797 = vmatprep.subr.bf16.mxu0 0
        %3798 = vmatpush1.bf16.xpose.msra.mxu0 0
        %3799 = vmatprep.subr.bf16.mxu0 0
        %3800 = vmatpush1.bf16.xpose.msra.mxu0 0
        %3801 = vmatprep.subr.bf16.mxu0 0
        %3802 = vmatpush1.bf16.xpose.msra.mxu0 0
        %3803 = vmatprep.subr.bf16.mxu0 0
        %3804 = vmatpush1.bf16.xpose.msra.mxu0 0
        %3805 = vmatprep.subr.bf16.mxu0 0
        %3806 = vmatpush1.bf16.xpose.msra.mxu0 0
        %3807 = vmatprep.subr.bf16.mxu0 0
        %3808 = vmatpush1.bf16.xpose.msra.mxu0 0
        %3809 = vmatprep.subr.bf16.mxu0 0
        %3810 = vmatpush1.bf16.xpose.msra.mxu0 0
        %3811 = vmatprep.subr.bf16.mxu0 0
        %3812 = vmatpush1.bf16.xpose.msra.mxu0 0
        %3813 = vmatprep.subr.bf16.mxu0 0
        %3814 = vmatpush1.bf16.xpose.msra.mxu0 0
        %3815 = vmatprep.subr.bf16.mxu0 0
        %3816 = vmatpush1.bf16.xpose.msra.mxu0 0
        %3817 = vmatprep.subr.bf16.mxu0 0
        %3818 = vmatpush1.bf16.xpose.msra.mxu0 0
        %3819 = vmatprep.subr.bf16.mxu0 0
        %3820 = vmatpush1.bf16.xpose.msra.mxu0 0
        %3821 = vmatprep.subr.bf16.mxu0 0
        %3822 = vmatpush1.bf16.xpose.msra.mxu0 0
        %3823 = vmatprep.subr.bf16.mxu0 0
        %3824 = vmatpush1.bf16.xpose.msra.mxu0 0
        %3825 = vmatprep.mubr.bf16.mxu0 0
        %3826 = vmatmul.mubr.bf16.gmra.mrb[0].mxu0 %v3782
        %v3827 = vpop.f32.mrb[0].mxu0
        %v3828 = vadd.f32 0.0, %v3827
        %v3829 = vpop.f32.mrb[0].mxu0
        %v3830 = vpop.f32.mrb[0].mxu0
        %v3831 = vadd.f32 0.0, %v3830
        %v3832 = vpop.f32.mrb[0].mxu0
        %3833 = vmatprep.mubr.bf16.mxu0 0
        %3834 = vmatmul.mubr.bf16.gmra.mrb[0].mxu0 %v3785
        %v3835 = vpop.f32.mrb[0].mxu0
        %v3836 = vadd.f32 0.0, %v3835
        %v3837 = vpop.f32.mrb[0].mxu0
        %v3838 = vpop.f32.mrb[0].mxu0
        %v3839 = vpop.f32.mrb[0].mxu0
        %3840 = vdwg.mxu0
        %v3842 = vsel %vm1569, %v3651, 0
        %v3845 = vsel %vm1569, %v3652, 0
        %v3848 = vsel %vm1569, %v3659, 0
        %v3851 = vsel %vm1569, %v3660, 0
        %3853 = vmatprep.subr.bf16.mxu0 0
        %3854 = vmatpush1.bf16.xpose.msra.mxu0 %v3848
        %3855 = vmatprep.subr.bf16.mxu0 0
        %3856 = vmatpush1.bf16.xpose.msra.mxu0 %v3851
        %3857 = vmatprep.subr.bf16.mxu0 0
        %3858 = vmatpush1.bf16.xpose.msra.mxu0 0
        %3859 = vmatprep.subr.bf16.mxu0 0
        %3860 = vmatpush1.bf16.xpose.msra.mxu0 0
        %3861 = vmatprep.subr.bf16.mxu0 0
        %3862 = vmatpush1.bf16.xpose.msra.mxu0 0
        %3863 = vmatprep.subr.bf16.mxu0 0
        %3864 = vmatpush1.bf16.xpose.msra.mxu0 0
        %3865 = vmatprep.subr.bf16.mxu0 0
        %3866 = vmatpush1.bf16.xpose.msra.mxu0 0
        %3867 = vmatprep.subr.bf16.mxu0 0
        %3868 = vmatpush1.bf16.xpose.msra.mxu0 0
        %3869 = vmatprep.subr.bf16.mxu0 0
        %3870 = vmatpush1.bf16.xpose.msra.mxu0 0
        %3871 = vmatprep.subr.bf16.mxu0 0
        %3872 = vmatpush1.bf16.xpose.msra.mxu0 0
        %3873 = vmatprep.subr.bf16.mxu0 0
        %3874 = vmatpush1.bf16.xpose.msra.mxu0 0
        %3875 = vmatprep.subr.bf16.mxu0 0
        %3876 = vmatpush1.bf16.xpose.msra.mxu0 0
        %3877 = vmatprep.subr.bf16.mxu0 0
        %3878 = vmatpush1.bf16.xpose.msra.mxu0 0
        %3879 = vmatprep.subr.bf16.mxu0 0
        %3880 = vmatpush1.bf16.xpose.msra.mxu0 0
        %3881 = vmatprep.subr.bf16.mxu0 0
        %3882 = vmatpush1.bf16.xpose.msra.mxu0 0
        %3883 = vmatprep.subr.bf16.mxu0 0
        %3884 = vmatpush1.bf16.xpose.msra.mxu0 0
        %3885 = vmatprep.mubr.bf16.mxu0 0
        %3886 = vmatmul.mubr.bf16.gmra.mrb[0].mxu0 %v3842
        %v3887 = vpop.f32.mrb[0].mxu0
        %v3888 = vadd.f32 0.0, %v3887
        %v3889 = vpop.f32.mrb[0].mxu0
        %v3890 = vpop.f32.mrb[0].mxu0
        %v3891 = vadd.f32 0.0, %v3890
        %v3892 = vpop.f32.mrb[0].mxu0
        %3893 = vmatprep.mubr.bf16.mxu0 0
        %3894 = vmatmul.mubr.bf16.gmra.mrb[0].mxu0 %v3845
        %v3895 = vpop.f32.mrb[0].mxu0
        %v3896 = vadd.f32 0.0, %v3895
        %v3897 = vpop.f32.mrb[0].mxu0
        %v3898 = vpop.f32.mrb[0].mxu0
        %v3899 = vpop.f32.mrb[0].mxu0
        %3900 = vdwg.mxu0
        %v3901 = vmul.f32 %v3708, 0.35355338
        %v3902 = vmul.f32 %v3711, 0.35355338
        %v3903 = vmul.f32 %v3716, 0.35355338
        %v3904 = vmul.f32 %v3768, 0.35355338
        %v3905 = vmul.f32 %v3771, 0.35355338
        %v3906 = vmul.f32 %v3776, 0.35355338
        %v3907 = vmul.f32 %v3828, 0.35355338
        %v3908 = vmul.f32 %v3831, 0.35355338
        %v3909 = vmul.f32 %v3836, 0.35355338
        %v3910 = vmul.f32 %v3888, 0.35355338
        %v3911 = vmul.f32 %v3891, 0.35355338
        %v3912 = vmul.f32 %v3896, 0.35355338
        %v3913 = vsel %vm1822, %v3901, -inf
        %3914 = vmax.xlane.f32.xlu0 %v3913
        %v3915 = vpop.xlane.xlu0 %3914
        %v3916 = vsel %vm1822, %v3902, -inf
        %3917 = vmax.xlane.f32.xlu0 %v3916
        %v3918 = vpop.xlane.xlu0 %3917
        %v3919 = vsel %vm1829, %v3903, -inf
        %3920 = vmax.xlane.f32.xlu0 %v3919
        %v3921 = vpop.xlane.xlu0 %3920
        %v3922 = vsel %vm1822, %v3904, -inf
        %3923 = vmax.xlane.f32.xlu0 %v3922
        %v3924 = vpop.xlane.xlu0 %3923
        %v3925 = vsel %vm1822, %v3905, -inf
        %3926 = vmax.xlane.f32.xlu0 %v3925
        %v3927 = vpop.xlane.xlu0 %3926
        %v3928 = vsel %vm1829, %v3906, -inf
        %3929 = vmax.xlane.f32.xlu0 %v3928
        %v3930 = vpop.xlane.xlu0 %3929
        %v3931 = vsel %vm1822, %v3907, -inf
        %3932 = vmax.xlane.f32.xlu0 %v3931
        %v3933 = vpop.xlane.xlu0 %3932
        %v3934 = vsel %vm1822, %v3908, -inf
        %3935 = vmax.xlane.f32.xlu0 %v3934
        %v3936 = vpop.xlane.xlu0 %3935
        %v3937 = vsel %vm1829, %v3909, -inf
        %3938 = vmax.xlane.f32.xlu0 %v3937
        %v3939 = vpop.xlane.xlu0 %3938
        %v3940 = vsel %vm1822, %v3910, -inf
        %3941 = vmax.xlane.f32.xlu0 %v3940
        %v3942 = vpop.xlane.xlu0 %3941
        %v3943 = vsel %vm1822, %v3911, -inf
        %3944 = vmax.xlane.f32.xlu0 %v3943
        %v3945 = vpop.xlane.xlu0 %3944
        %v3946 = vsel %vm1829, %v3912, -inf
        %3947 = vmax.xlane.f32.xlu0 %v3946
        %v3948 = vpop.xlane.xlu0 %3947
        %v3949 = vsub.f32 %v3901, %v3915
        %v3950 = vsub.f32 %v3902, %v3918
        %v3951 = vsub.f32 %v3903, %v3921
        %v3952 = vsub.f32 %v3904, %v3924
        %v3953 = vsub.f32 %v3905, %v3927
        %v3954 = vsub.f32 %v3906, %v3930
        %v3955 = vsub.f32 %v3907, %v3933
        %v3956 = vsub.f32 %v3908, %v3936
        %v3957 = vsub.f32 %v3909, %v3939
        %v3958 = vsub.f32 %v3910, %v3942
        %v3959 = vsub.f32 %v3911, %v3945
        %v3960 = vsub.f32 %v3912, %v3948
        %v3961 = vmul.f32 %v3949, 1.442695
        %v3962 = vpow.pop %v3961
        %v3963 = vmul.f32 %v3950, 1.442695
        %v3964 = vpow.pop %v3963
        %v3965 = vmul.f32 %v3951, 1.442695
        %v3966 = vpow.pop %v3965
        %v3967 = vmul.f32 %v3952, 1.442695
        %v3968 = vpow.pop %v3967
        %v3969 = vmul.f32 %v3953, 1.442695
        %v3970 = vpow.pop %v3969
        %v3971 = vmul.f32 %v3954, 1.442695
        %v3972 = vpow.pop %v3971
        %v3973 = vmul.f32 %v3955, 1.442695
        %v3974 = vpow.pop %v3973
        %v3975 = vmul.f32 %v3956, 1.442695
        %v3976 = vpow.pop %v3975
        %v3977 = vmul.f32 %v3957, 1.442695
        %v3978 = vpow.pop %v3977
        %v3979 = vmul.f32 %v3958, 1.442695
        %v3980 = vpow.pop %v3979
        %v3981 = vmul.f32 %v3959, 1.442695
        %v3982 = vpow.pop %v3981
        %v3983 = vmul.f32 %v3960, 1.442695
        %v3984 = vpow.pop %v3983
        %v3985 = vsel %vm1822, %v3962, 0.0
        %3986 = vadd.xlane.f32.xlu0 %v3985
        %v3987 = vpop.xlane.xlu0 %3986
        %v3988 = vsel %vm1822, %v3964, 0.0
        %3989 = vadd.xlane.f32.xlu0 %v3988
        %v3990 = vpop.xlane.xlu0 %3989
        %v3991 = vsel %vm1829, %v3966, 0.0
        %3992 = vadd.xlane.f32.xlu0 %v3991
        %v3993 = vpop.xlane.xlu0 %3992
        %v3994 = vsel %vm1822, %v3968, 0.0
        %3995 = vadd.xlane.f32.xlu0 %v3994
        %v3996 = vpop.xlane.xlu0 %3995
        %v3997 = vsel %vm1822, %v3970, 0.0
        %3998 = vadd.xlane.f32.xlu0 %v3997
        %v3999 = vpop.xlane.xlu0 %3998
        %v4000 = vsel %vm1829, %v3972, 0.0
        %4001 = vadd.xlane.f32.xlu0 %v4000
        %v4002 = vpop.xlane.xlu0 %4001
        %v4003 = vsel %vm1822, %v3974, 0.0
        %4004 = vadd.xlane.f32.xlu0 %v4003
        %v4005 = vpop.xlane.xlu0 %4004
        %v4006 = vsel %vm1822, %v3976, 0.0
        %4007 = vadd.xlane.f32.xlu0 %v4006
        %v4008 = vpop.xlane.xlu0 %4007
        %v4009 = vsel %vm1829, %v3978, 0.0
        %4010 = vadd.xlane.f32.xlu0 %v4009
        %v4011 = vpop.xlane.xlu0 %4010
        %v4012 = vsel %vm1822, %v3980, 0.0
        %4013 = vadd.xlane.f32.xlu0 %v4012
        %v4014 = vpop.xlane.xlu0 %4013
        %v4015 = vsel %vm1822, %v3982, 0.0
        %4016 = vadd.xlane.f32.xlu0 %v4015
        %v4017 = vpop.xlane.xlu0 %4016
        %v4018 = vsel %vm1829, %v3984, 0.0
        %4019 = vadd.xlane.f32.xlu0 %v4018
        %v4020 = vpop.xlane.xlu0 %4019
        %v4021 = vrcp.pop %v3987
        %v4022 = vrcp.pop %v3990
        %v4023 = vrcp.pop %v3993
        %v4024 = vrcp.pop %v3996
        %v4025 = vrcp.pop %v3999
        %v4026 = vrcp.pop %v4002
        %v4027 = vrcp.pop %v4005
        %v4028 = vrcp.pop %v4008
        %v4029 = vrcp.pop %v4011
        %v4030 = vrcp.pop %v4014
        %v4031 = vrcp.pop %v4017
        %v4032 = vrcp.pop %v4020
        %v4033 = vmul.f32 %v3962, %v4021
        %v4034 = vmul.f32 %v3964, %v4022
        %v4035 = vmul.f32 %v3966, %v4023
        %v4036 = vmul.f32 %v3968, %v4024
        %v4037 = vmul.f32 %v3970, %v4025
        %v4038 = vmul.f32 %v3972, %v4026
        %v4039 = vmul.f32 %v3974, %v4027
        %v4040 = vmul.f32 %v3976, %v4028
        %v4041 = vmul.f32 %v3978, %v4029
        %v4042 = vmul.f32 %v3980, %v4030
        %v4043 = vmul.f32 %v3982, %v4031
        %v4044 = vmul.f32 %v3984, %v4032
        %v4045 = vpack.c.bf16 %v4034, %v4033
        %v4046 = vpack.c.bf16 %v4035, %v4035
        %v4047 = vpack.c.bf16 %v4037, %v4036
        %v4048 = vpack.c.bf16 %v4038, %v4038
        %v4049 = vpack.c.bf16 %v4040, %v4039
        %v4050 = vpack.c.bf16 %v4041, %v4041
        %v4051 = vpack.c.bf16 %v4043, %v4042
        %v4052 = vpack.c.bf16 %v4044, %v4044
        %v4053 = vpack.c.bf16 %v3455, %v3452
        %v4054 = vpack.c.bf16 %v3460, %v3460
        %v4055 = vpack.c.bf16 %v3515, %v3512
        %v4056 = vpack.c.bf16 %v3520, %v3520
        %v4057 = vpack.c.bf16 %v3575, %v3572
        %v4058 = vpack.c.bf16 %v3580, %v3580
        %v4059 = vpack.c.bf16 %v3635, %v3632
        %v4060 = vpack.c.bf16 %v3640, %v3640
        %v4062 = vsel %vm1822, %v4045, 0
        %v4065 = vsel %vm1822, %v4046, 0
        %v4068 = vand.u32 %v4054, %v1980
        %4070 = vmatprep.subr.bf16.mxu0 0
        %4071 = vmatpush1.bf16.msra.mxu0 %v4053
        %4072 = vmatprep.subr.bf16.mxu0 0
        %4073 = vmatpush1.bf16.msra.mxu0 %v4068
        %4074 = vmatprep.subr.bf16.mxu0 0
        %4075 = vmatpush1.bf16.msra.mxu0 0
        %4076 = vmatprep.subr.bf16.mxu0 0
        %4077 = vmatpush1.bf16.msra.mxu0 0
        %4078 = vmatprep.subr.bf16.mxu0 0
        %4079 = vmatpush1.bf16.msra.mxu0 0
        %4080 = vmatprep.subr.bf16.mxu0 0
        %4081 = vmatpush1.bf16.msra.mxu0 0
        %4082 = vmatprep.subr.bf16.mxu0 0
        %4083 = vmatpush1.bf16.msra.mxu0 0
        %4084 = vmatprep.subr.bf16.mxu0 0
        %4085 = vmatpush1.bf16.msra.mxu0 0
        %4086 = vmatprep.subr.bf16.mxu0 0
        %4087 = vmatpush1.bf16.msra.mxu0 0
        %4088 = vmatprep.subr.bf16.mxu0 0
        %4089 = vmatpush1.bf16.msra.mxu0 0
        %4090 = vmatprep.subr.bf16.mxu0 0
        %4091 = vmatpush1.bf16.msra.mxu0 0
        %4092 = vmatprep.subr.bf16.mxu0 0
        %4093 = vmatpush1.bf16.msra.mxu0 0
        %4094 = vmatprep.subr.bf16.mxu0 0
        %4095 = vmatpush1.bf16.msra.mxu0 0
        %4096 = vmatprep.subr.bf16.mxu0 0
        %4097 = vmatpush1.bf16.msra.mxu0 0
        %4098 = vmatprep.subr.bf16.mxu0 0
        %4099 = vmatpush1.bf16.msra.mxu0 0
        %4100 = vmatprep.subr.bf16.mxu0 0
        %4101 = vmatpush1.bf16.msra.mxu0 0
        %4102 = vmatprep.mubr.bf16.mxu0 0
        %4103 = vmatmul.mubr.bf16.gmra.mrb[0].mxu0 %v4062
        %v4104 = vpop.f32.mrb[0].mxu0
        %v4105 = vadd.f32 0.0, %v4104
        %v4106 = vpop.f32.mrb[0].mxu0
        %v4107 = vpop.f32.mrb[0].mxu0
        %v4108 = vadd.f32 0.0, %v4107
        %v4109 = vpop.f32.mrb[0].mxu0
        %4110 = vmatprep.mubr.bf16.mxu0 0
        %4111 = vmatmul.mubr.bf16.gmra.mrb[0].mxu0 %v4065
        %v4112 = vpop.f32.mrb[0].mxu0
        %v4113 = vadd.f32 0.0, %v4112
        %v4114 = vpop.f32.mrb[0].mxu0
        %v4115 = vpop.f32.mrb[0].mxu0
        %v4116 = vpop.f32.mrb[0].mxu0
        %4117 = vdwg.mxu0
        %v4119 = vsel %vm1822, %v4047, 0
        %v4122 = vsel %vm1822, %v4048, 0
        %v4125 = vand.u32 %v4056, %v1980
        %4127 = vmatprep.subr.bf16.mxu0 0
        %4128 = vmatpush1.bf16.msra.mxu0 %v4055
        %4129 = vmatprep.subr.bf16.mxu0 0
        %4130 = vmatpush1.bf16.msra.mxu0 %v4125
        %4131 = vmatprep.subr.bf16.mxu0 0
        %4132 = vmatpush1.bf16.msra.mxu0 0
        %4133 = vmatprep.subr.bf16.mxu0 0
        %4134 = vmatpush1.bf16.msra.mxu0 0
        %4135 = vmatprep.subr.bf16.mxu0 0
        %4136 = vmatpush1.bf16.msra.mxu0 0
        %4137 = vmatprep.subr.bf16.mxu0 0
        %4138 = vmatpush1.bf16.msra.mxu0 0
        %4139 = vmatprep.subr.bf16.mxu0 0
        %4140 = vmatpush1.bf16.msra.mxu0 0
        %4141 = vmatprep.subr.bf16.mxu0 0
        %4142 = vmatpush1.bf16.msra.mxu0 0
        %4143 = vmatprep.subr.bf16.mxu0 0
        %4144 = vmatpush1.bf16.msra.mxu0 0
        %4145 = vmatprep.subr.bf16.mxu0 0
        %4146 = vmatpush1.bf16.msra.mxu0 0
        %4147 = vmatprep.subr.bf16.mxu0 0
        %4148 = vmatpush1.bf16.msra.mxu0 0
        %4149 = vmatprep.subr.bf16.mxu0 0
        %4150 = vmatpush1.bf16.msra.mxu0 0
        %4151 = vmatprep.subr.bf16.mxu0 0
        %4152 = vmatpush1.bf16.msra.mxu0 0
        %4153 = vmatprep.subr.bf16.mxu0 0
        %4154 = vmatpush1.bf16.msra.mxu0 0
        %4155 = vmatprep.subr.bf16.mxu0 0
        %4156 = vmatpush1.bf16.msra.mxu0 0
        %4157 = vmatprep.subr.bf16.mxu0 0
        %4158 = vmatpush1.bf16.msra.mxu0 0
        %4159 = vmatprep.mubr.bf16.mxu0 0
        %4160 = vmatmul.mubr.bf16.gmra.mrb[0].mxu0 %v4119
        %v4161 = vpop.f32.mrb[0].mxu0
        %v4162 = vadd.f32 0.0, %v4161
        %v4163 = vpop.f32.mrb[0].mxu0
        %v4164 = vpop.f32.mrb[0].mxu0
        %v4165 = vadd.f32 0.0, %v4164
        %v4166 = vpop.f32.mrb[0].mxu0
        %4167 = vmatprep.mubr.bf16.mxu0 0
        %4168 = vmatmul.mubr.bf16.gmra.mrb[0].mxu0 %v4122
        %v4169 = vpop.f32.mrb[0].mxu0
        %v4170 = vadd.f32 0.0, %v4169
        %v4171 = vpop.f32.mrb[0].mxu0
        %v4172 = vpop.f32.mrb[0].mxu0
        %v4173 = vpop.f32.mrb[0].mxu0
        %4174 = vdwg.mxu0
        %v4176 = vsel %vm1822, %v4049, 0
        %v4179 = vsel %vm1822, %v4050, 0
        %v4182 = vand.u32 %v4058, %v1980
        %4184 = vmatprep.subr.bf16.mxu0 0
        %4185 = vmatpush1.bf16.msra.mxu0 %v4057
        %4186 = vmatprep.subr.bf16.mxu0 0
        %4187 = vmatpush1.bf16.msra.mxu0 %v4182
        %4188 = vmatprep.subr.bf16.mxu0 0
        %4189 = vmatpush1.bf16.msra.mxu0 0
        %4190 = vmatprep.subr.bf16.mxu0 0
        %4191 = vmatpush1.bf16.msra.mxu0 0
        %4192 = vmatprep.subr.bf16.mxu0 0
        %4193 = vmatpush1.bf16.msra.mxu0 0
        %4194 = vmatprep.subr.bf16.mxu0 0
        %4195 = vmatpush1.bf16.msra.mxu0 0
        %4196 = vmatprep.subr.bf16.mxu0 0
        %4197 = vmatpush1.bf16.msra.mxu0 0
        %4198 = vmatprep.subr.bf16.mxu0 0
        %4199 = vmatpush1.bf16.msra.mxu0 0
        %4200 = vmatprep.subr.bf16.mxu0 0
        %4201 = vmatpush1.bf16.msra.mxu0 0
        %4202 = vmatprep.subr.bf16.mxu0 0
        %4203 = vmatpush1.bf16.msra.mxu0 0
        %4204 = vmatprep.subr.bf16.mxu0 0
        %4205 = vmatpush1.bf16.msra.mxu0 0
        %4206 = vmatprep.subr.bf16.mxu0 0
        %4207 = vmatpush1.bf16.msra.mxu0 0
        %4208 = vmatprep.subr.bf16.mxu0 0
        %4209 = vmatpush1.bf16.msra.mxu0 0
        %4210 = vmatprep.subr.bf16.mxu0 0
        %4211 = vmatpush1.bf16.msra.mxu0 0
        %4212 = vmatprep.subr.bf16.mxu0 0
        %4213 = vmatpush1.bf16.msra.mxu0 0
        %4214 = vmatprep.subr.bf16.mxu0 0
        %4215 = vmatpush1.bf16.msra.mxu0 0
        %4216 = vmatprep.mubr.bf16.mxu0 0
        %4217 = vmatmul.mubr.bf16.gmra.mrb[0].mxu0 %v4176
        %v4218 = vpop.f32.mrb[0].mxu0
        %v4219 = vadd.f32 0.0, %v4218
        %v4220 = vpop.f32.mrb[0].mxu0
        %v4221 = vpop.f32.mrb[0].mxu0
        %v4222 = vadd.f32 0.0, %v4221
        %v4223 = vpop.f32.mrb[0].mxu0
        %4224 = vmatprep.mubr.bf16.mxu0 0
        %4225 = vmatmul.mubr.bf16.gmra.mrb[0].mxu0 %v4179
        %v4226 = vpop.f32.mrb[0].mxu0
        %v4227 = vadd.f32 0.0, %v4226
        %v4228 = vpop.f32.mrb[0].mxu0
        %v4229 = vpop.f32.mrb[0].mxu0
        %v4230 = vpop.f32.mrb[0].mxu0
        %4231 = vdwg.mxu0
        %v4233 = vsel %vm1822, %v4051, 0
        %v4236 = vsel %vm1822, %v4052, 0
        %v4239 = vand.u32 %v4060, %v1980
        %4241 = vmatprep.subr.bf16.mxu0 0
        %4242 = vmatpush1.bf16.msra.mxu0 %v4059
        %4243 = vmatprep.subr.bf16.mxu0 0
        %4244 = vmatpush1.bf16.msra.mxu0 %v4239
        %4245 = vmatprep.subr.bf16.mxu0 0
        %4246 = vmatpush1.bf16.msra.mxu0 0
        %4247 = vmatprep.subr.bf16.mxu0 0
        %4248 = vmatpush1.bf16.msra.mxu0 0
        %4249 = vmatprep.subr.bf16.mxu0 0
        %4250 = vmatpush1.bf16.msra.mxu0 0
        %4251 = vmatprep.subr.bf16.mxu0 0
        %4252 = vmatpush1.bf16.msra.mxu0 0
        %4253 = vmatprep.subr.bf16.mxu0 0
        %4254 = vmatpush1.bf16.msra.mxu0 0
        %4255 = vmatprep.subr.bf16.mxu0 0
        %4256 = vmatpush1.bf16.msra.mxu0 0
        %4257 = vmatprep.subr.bf16.mxu0 0
        %4258 = vmatpush1.bf16.msra.mxu0 0
        %4259 = vmatprep.subr.bf16.mxu0 0
        %4260 = vmatpush1.bf16.msra.mxu0 0
        %4261 = vmatprep.subr.bf16.mxu0 0
        %4262 = vmatpush1.bf16.msra.mxu0 0
        %4263 = vmatprep.subr.bf16.mxu0 0
        %4264 = vmatpush1.bf16.msra.mxu0 0
        %4265 = vmatprep.subr.bf16.mxu0 0
        %4266 = vmatpush1.bf16.msra.mxu0 0
        %4267 = vmatprep.subr.bf16.mxu0 0
        %4268 = vmatpush1.bf16.msra.mxu0 0
        %4269 = vmatprep.subr.bf16.mxu0 0
        %4270 = vmatpush1.bf16.msra.mxu0 0
        %4271 = vmatprep.subr.bf16.mxu0 0
        %4272 = vmatpush1.bf16.msra.mxu0 0
        %4273 = vmatprep.mubr.bf16.mxu0 0
        %4274 = vmatmul.mubr.bf16.gmra.mrb[0].mxu0 %v4233
        %v4275 = vpop.f32.mrb[0].mxu0
        %v4276 = vadd.f32 0.0, %v4275
        %v4277 = vpop.f32.mrb[0].mxu0
        %v4278 = vpop.f32.mrb[0].mxu0
        %v4279 = vadd.f32 0.0, %v4278
        %v4280 = vpop.f32.mrb[0].mxu0
        %4281 = vmatprep.mubr.bf16.mxu0 0
        %4282 = vmatmul.mubr.bf16.gmra.mrb[0].mxu0 %v4236
        %v4283 = vpop.f32.mrb[0].mxu0
        %v4284 = vadd.f32 0.0, %v4283
        %v4285 = vpop.f32.mrb[0].mxu0
        %v4286 = vpop.f32.mrb[0].mxu0
        %v4287 = vpop.f32.mrb[0].mxu0
        %4288 = vdwg.mxu0
        %v4289 = vpack.c.bf16 %v4108, %v4105
        %v4290 = vpack.c.bf16 %v4113, %v4113
        %v4291 = vpack.c.bf16 %v4165, %v4162
        %v4292 = vpack.c.bf16 %v4170, %v4170
        %v4293 = vpack.c.bf16 %v4222, %v4219
        %v4294 = vpack.c.bf16 %v4227, %v4227
        %v4295 = vpack.c.bf16 %v4279, %v4276
        %v4296 = vpack.c.bf16 %v4284, %v4284
        %s4297 = scalar_lea.vmem %s8, 16
        %v4298 = vld [vmem:[%s4297] sm:$0xf]
        %v4299 = vld [vmem:[%s4297 + $0x4] sm:$0xf]
        %v4300 = vld [vmem:[%s4297 + $0x8] sm:$0xf]
        %v4301 = vld [vmem:[%s4297 + $0xc] sm:$0xf]
        %v4303 = vsel %vm1569, %v4289, 0
        %v4306 = vsel %vm1569, %v4290, 0
        %v4309 = vsel %vm2221, %v4298, 0
        %4311 = vmatprep.subr.bf16.mxu0 0
        %4312 = vmatpush1.bf16.msra.mxu0 %v4309
        %4313 = vmatprep.subr.bf16.mxu0 0
        %4314 = vmatpush1.bf16.msra.mxu0 0
        %4315 = vmatprep.subr.bf16.mxu0 0
        %4316 = vmatpush1.bf16.msra.mxu0 0
        %4317 = vmatprep.subr.bf16.mxu0 0
        %4318 = vmatpush1.bf16.msra.mxu0 0
        %4319 = vmatprep.subr.bf16.mxu0 0
        %4320 = vmatpush1.bf16.msra.mxu0 0
        %4321 = vmatprep.subr.bf16.mxu0 0
        %4322 = vmatpush1.bf16.msra.mxu0 0
        %4323 = vmatprep.subr.bf16.mxu0 0
        %4324 = vmatpush1.bf16.msra.mxu0 0
        %4325 = vmatprep.subr.bf16.mxu0 0
        %4326 = vmatpush1.bf16.msra.mxu0 0
        %4327 = vmatprep.subr.bf16.mxu0 0
        %4328 = vmatpush1.bf16.msra.mxu0 0
        %4329 = vmatprep.subr.bf16.mxu0 0
        %4330 = vmatpush1.bf16.msra.mxu0 0
        %4331 = vmatprep.subr.bf16.mxu0 0
        %4332 = vmatpush1.bf16.msra.mxu0 0
        %4333 = vmatprep.subr.bf16.mxu0 0
        %4334 = vmatpush1.bf16.msra.mxu0 0
        %4335 = vmatprep.subr.bf16.mxu0 0
        %4336 = vmatpush1.bf16.msra.mxu0 0
        %4337 = vmatprep.subr.bf16.mxu0 0
        %4338 = vmatpush1.bf16.msra.mxu0 0
        %4339 = vmatprep.subr.bf16.mxu0 0
        %4340 = vmatpush1.bf16.msra.mxu0 0
        %4341 = vmatprep.subr.bf16.mxu0 0
        %4342 = vmatpush1.bf16.msra.mxu0 0
        %4343 = vmatprep.mubr.bf16.mxu0 0
        %4344 = vmatmul.mubr.bf16.gmra.mrb[0].mxu0 %v4303
        %v4345 = vpop.f32.mrb[0].mxu0
        %v4346 = vadd.f32 0.0, %v4345
        %v4347 = vpop.f32.mrb[0].mxu0
        %v4348 = vpop.f32.mrb[0].mxu0
        %v4349 = vadd.f32 0.0, %v4348
        %v4350 = vpop.f32.mrb[0].mxu0
        %4351 = vmatprep.mubr.bf16.mxu0 0
        %4352 = vmatmul.mubr.bf16.gmra.mrb[0].mxu0 %v4306
        %v4353 = vpop.f32.mrb[0].mxu0
        %v4354 = vadd.f32 0.0, %v4353
        %v4355 = vpop.f32.mrb[0].mxu0
        %v4356 = vpop.f32.mrb[0].mxu0
        %v4357 = vpop.f32.mrb[0].mxu0
        %4358 = vdwg.mxu0
        %v4360 = vsel %vm1569, %v4291, 0
        %v4363 = vsel %vm1569, %v4292, 0
        %v4366 = vsel %vm2221, %v4299, 0
        %4368 = vmatprep.subr.bf16.mxu0 0
        %4369 = vmatpush1.bf16.msra.mxu0 %v4366
        %4370 = vmatprep.subr.bf16.mxu0 0
        %4371 = vmatpush1.bf16.msra.mxu0 0
        %4372 = vmatprep.subr.bf16.mxu0 0
        %4373 = vmatpush1.bf16.msra.mxu0 0
        %4374 = vmatprep.subr.bf16.mxu0 0
        %4375 = vmatpush1.bf16.msra.mxu0 0
        %4376 = vmatprep.subr.bf16.mxu0 0
        %4377 = vmatpush1.bf16.msra.mxu0 0
        %4378 = vmatprep.subr.bf16.mxu0 0
        %4379 = vmatpush1.bf16.msra.mxu0 0
        %4380 = vmatprep.subr.bf16.mxu0 0
        %4381 = vmatpush1.bf16.msra.mxu0 0
        %4382 = vmatprep.subr.bf16.mxu0 0
        %4383 = vmatpush1.bf16.msra.mxu0 0
        %4384 = vmatprep.subr.bf16.mxu0 0
        %4385 = vmatpush1.bf16.msra.mxu0 0
        %4386 = vmatprep.subr.bf16.mxu0 0
        %4387 = vmatpush1.bf16.msra.mxu0 0
        %4388 = vmatprep.subr.bf16.mxu0 0
        %4389 = vmatpush1.bf16.msra.mxu0 0
        %4390 = vmatprep.subr.bf16.mxu0 0
        %4391 = vmatpush1.bf16.msra.mxu0 0
        %4392 = vmatprep.subr.bf16.mxu0 0
        %4393 = vmatpush1.bf16.msra.mxu0 0
        %4394 = vmatprep.subr.bf16.mxu0 0
        %4395 = vmatpush1.bf16.msra.mxu0 0
        %4396 = vmatprep.subr.bf16.mxu0 0
        %4397 = vmatpush1.bf16.msra.mxu0 0
        %4398 = vmatprep.subr.bf16.mxu0 0
        %4399 = vmatpush1.bf16.msra.mxu0 0
        %4400 = vmatprep.mubr.bf16.mxu0 0
        %4401 = vmatmul.mubr.bf16.gmra.mrb[0].mxu0 %v4360
        %v4402 = vpop.f32.mrb[0].mxu0
        %v4403 = vadd.f32 0.0, %v4402
        %v4404 = vpop.f32.mrb[0].mxu0
        %v4405 = vpop.f32.mrb[0].mxu0
        %v4406 = vadd.f32 0.0, %v4405
        %v4407 = vpop.f32.mrb[0].mxu0
        %4408 = vmatprep.mubr.bf16.mxu0 0
        %4409 = vmatmul.mubr.bf16.gmra.mrb[0].mxu0 %v4363
        %v4410 = vpop.f32.mrb[0].mxu0
        %v4411 = vadd.f32 0.0, %v4410
        %v4412 = vpop.f32.mrb[0].mxu0
        %v4413 = vpop.f32.mrb[0].mxu0
        %v4414 = vpop.f32.mrb[0].mxu0
        %4415 = vdwg.mxu0
        %v4417 = vsel %vm1569, %v4293, 0
        %v4420 = vsel %vm1569, %v4294, 0
        %v4423 = vsel %vm2221, %v4300, 0
        %4425 = vmatprep.subr.bf16.mxu0 0
        %4426 = vmatpush1.bf16.msra.mxu0 %v4423
        %4427 = vmatprep.subr.bf16.mxu0 0
        %4428 = vmatpush1.bf16.msra.mxu0 0
        %4429 = vmatprep.subr.bf16.mxu0 0
        %4430 = vmatpush1.bf16.msra.mxu0 0
        %4431 = vmatprep.subr.bf16.mxu0 0
        %4432 = vmatpush1.bf16.msra.mxu0 0
        %4433 = vmatprep.subr.bf16.mxu0 0
        %4434 = vmatpush1.bf16.msra.mxu0 0
        %4435 = vmatprep.subr.bf16.mxu0 0
        %4436 = vmatpush1.bf16.msra.mxu0 0
        %4437 = vmatprep.subr.bf16.mxu0 0
        %4438 = vmatpush1.bf16.msra.mxu0 0
        %4439 = vmatprep.subr.bf16.mxu0 0
        %4440 = vmatpush1.bf16.msra.mxu0 0
        %4441 = vmatprep.subr.bf16.mxu0 0
        %4442 = vmatpush1.bf16.msra.mxu0 0
        %4443 = vmatprep.subr.bf16.mxu0 0
        %4444 = vmatpush1.bf16.msra.mxu0 0
        %4445 = vmatprep.subr.bf16.mxu0 0
        %4446 = vmatpush1.bf16.msra.mxu0 0
        %4447 = vmatprep.subr.bf16.mxu0 0
        %4448 = vmatpush1.bf16.msra.mxu0 0
        %4449 = vmatprep.subr.bf16.mxu0 0
        %4450 = vmatpush1.bf16.msra.mxu0 0
        %4451 = vmatprep.subr.bf16.mxu0 0
        %4452 = vmatpush1.bf16.msra.mxu0 0
        %4453 = vmatprep.subr.bf16.mxu0 0
        %4454 = vmatpush1.bf16.msra.mxu0 0
        %4455 = vmatprep.subr.bf16.mxu0 0
        %4456 = vmatpush1.bf16.msra.mxu0 0
        %4457 = vmatprep.mubr.bf16.mxu0 0
        %4458 = vmatmul.mubr.bf16.gmra.mrb[0].mxu0 %v4417
        %v4459 = vpop.f32.mrb[0].mxu0
        %v4460 = vadd.f32 0.0, %v4459
        %v4461 = vpop.f32.mrb[0].mxu0
        %v4462 = vpop.f32.mrb[0].mxu0
        %v4463 = vadd.f32 0.0, %v4462
        %v4464 = vpop.f32.mrb[0].mxu0
        %4465 = vmatprep.mubr.bf16.mxu0 0
        %4466 = vmatmul.mubr.bf16.gmra.mrb[0].mxu0 %v4420
        %v4467 = vpop.f32.mrb[0].mxu0
        %v4468 = vadd.f32 0.0, %v4467
        %v4469 = vpop.f32.mrb[0].mxu0
        %v4470 = vpop.f32.mrb[0].mxu0
        %v4471 = vpop.f32.mrb[0].mxu0
        %4472 = vdwg.mxu0
        %v4474 = vsel %vm1569, %v4295, 0
        %v4477 = vsel %vm1569, %v4296, 0
        %v4480 = vsel %vm2221, %v4301, 0
        %4482 = vmatprep.subr.bf16.mxu0 0
        %4483 = vmatpush1.bf16.msra.mxu0 %v4480
        %4484 = vmatprep.subr.bf16.mxu0 0
        %4485 = vmatpush1.bf16.msra.mxu0 0
        %4486 = vmatprep.subr.bf16.mxu0 0
        %4487 = vmatpush1.bf16.msra.mxu0 0
        %4488 = vmatprep.subr.bf16.mxu0 0
        %4489 = vmatpush1.bf16.msra.mxu0 0
        %4490 = vmatprep.subr.bf16.mxu0 0
        %4491 = vmatpush1.bf16.msra.mxu0 0
        %4492 = vmatprep.subr.bf16.mxu0 0
        %4493 = vmatpush1.bf16.msra.mxu0 0
        %4494 = vmatprep.subr.bf16.mxu0 0
        %4495 = vmatpush1.bf16.msra.mxu0 0
        %4496 = vmatprep.subr.bf16.mxu0 0
        %4497 = vmatpush1.bf16.msra.mxu0 0
        %4498 = vmatprep.subr.bf16.mxu0 0
        %4499 = vmatpush1.bf16.msra.mxu0 0
        %4500 = vmatprep.subr.bf16.mxu0 0
        %4501 = vmatpush1.bf16.msra.mxu0 0
        %4502 = vmatprep.subr.bf16.mxu0 0
        %4503 = vmatpush1.bf16.msra.mxu0 0
        %4504 = vmatprep.subr.bf16.mxu0 0
        %4505 = vmatpush1.bf16.msra.mxu0 0
        %4506 = vmatprep.subr.bf16.mxu0 0
        %4507 = vmatpush1.bf16.msra.mxu0 0
        %4508 = vmatprep.subr.bf16.mxu0 0
        %4509 = vmatpush1.bf16.msra.mxu0 0
        %4510 = vmatprep.subr.bf16.mxu0 0
        %4511 = vmatpush1.bf16.msra.mxu0 0
        %4512 = vmatprep.subr.bf16.mxu0 0
        %4513 = vmatpush1.bf16.msra.mxu0 0
        %4514 = vmatprep.mubr.bf16.mxu0 0
        %4515 = vmatmul.mubr.bf16.gmra.mrb[0].mxu0 %v4474
        %v4516 = vpop.f32.mrb[0].mxu0
        %v4517 = vadd.f32 0.0, %v4516
        %v4518 = vpop.f32.mrb[0].mxu0
        %v4519 = vpop.f32.mrb[0].mxu0
        %v4520 = vadd.f32 0.0, %v4519
        %v4521 = vpop.f32.mrb[0].mxu0
        %4522 = vmatprep.mubr.bf16.mxu0 0
        %4523 = vmatmul.mubr.bf16.gmra.mrb[0].mxu0 %v4477
        %v4524 = vpop.f32.mrb[0].mxu0
        %v4525 = vadd.f32 0.0, %v4524
        %v4526 = vpop.f32.mrb[0].mxu0
        %v4527 = vpop.f32.mrb[0].mxu0
        %v4528 = vpop.f32.mrb[0].mxu0
        %4529 = vdwg.mxu0
        %v4530 = vsel %vm717, %v4346, 0.0
        %v4531 = vsel %vm717, %v4403, 0.0
        %v4532 = vadd.f32 %v4530, %v4531
        %v4533 = vsel %vm717, %v4460, 0.0
        %v4534 = vadd.f32 %v4532, %v4533
        %v4535 = vsel %vm717, %v4517, 0.0
        %v4536 = vadd.f32 %v4534, %v4535
        %v4537 = vsel %vm717, %v4349, 0.0
        %v4538 = vsel %vm717, %v4406, 0.0
        %v4539 = vadd.f32 %v4537, %v4538
        %v4540 = vsel %vm717, %v4463, 0.0
        %v4541 = vadd.f32 %v4539, %v4540
        %v4542 = vsel %vm717, %v4520, 0.0
        %v4543 = vadd.f32 %v4541, %v4542
        %v4544 = vsel %vm724, %v4354, 0.0
        %v4545 = vsel %vm724, %v4411, 0.0
        %v4546 = vadd.f32 %v4544, %v4545
        %v4547 = vsel %vm724, %v4468, 0.0
        %v4548 = vadd.f32 %v4546, %v4547
        %v4549 = vsel %vm724, %v4525, 0.0
        %v4550 = vadd.f32 %v4548, %v4549
        %v4551 = vadd.f32 %v2802, %v4536
        %v4552 = vadd.f32 %v2803, %v4543
        %v4553 = vadd.f32 %v2804, %v4550
        %s4554 = scalar_lea.vmem %s9, 1
        %v4555 = vld [vmem:[%s4554] sm:$0x1]
        %v4557 = vlaneseq
        %v4558 = vshrl.u32 %v4557, 7
        %v4559 = vsub.s32 0, %v4558
        %v4560 = vrot.slane %v4555, %v4559
        %v4562 = vadd.f32 %v4551, %v4560
        %v4563 = vadd.f32 %v4552, %v4560
        %v4564 = vadd.f32 %v4553, %v4560
        %s4565 = scalar_lea.vmem %s10, 1
        %v4566 = vld [vmem:[%s4565] sm:$0x1]
        %s4567 = scalar_lea.vmem %s11, 1
        %v4568 = vld [vmem:[%s4567] sm:$0x1]
        %v4569 = vsel %vm717, %v4562, 0.0
        %4570 = vadd.xlane.f32.xlu0 %v4569
        %v4571 = vpop.xlane.xlu0 %4570
        %v4572 = vsel %vm717, %v4563, 0.0
        %4573 = vadd.xlane.f32.xlu0 %v4572
        %v4574 = vpop.xlane.xlu0 %4573
        %v4575 = vsel %vm724, %v4564, 0.0
        %4576 = vadd.xlane.f32.xlu0 %v4575
        %v4577 = vpop.xlane.xlu0 %4576
        %v4578 = vmul.f32 %v4571, %v728
        %v4579 = vmul.f32 %v4574, %v728
        %v4580 = vmul.f32 %v4577, %v728
        %v4581 = vsub.f32 %v4562, %v4578
        %v4582 = vsub.f32 %v4563, %v4579
        %v4583 = vsub.f32 %v4564, %v4580
        %v4584 = vmul.f32 %v4581, %v4581
        %v4585 = vmul.f32 %v4582, %v4582
        %v4586 = vmul.f32 %v4583, %v4583
        %v4587 = vsel %vm717, %v4584, 0.0
        %4588 = vadd.xlane.f32.xlu0 %v4587
        %v4589 = vpop.xlane.xlu0 %4588
        %v4590 = vsel %vm717, %v4585, 0.0
        %4591 = vadd.xlane.f32.xlu0 %v4590
        %v4592 = vpop.xlane.xlu0 %4591
        %v4593 = vsel %vm724, %v4586, 0.0
        %4594 = vadd.xlane.f32.xlu0 %v4593
        %v4595 = vpop.xlane.xlu0 %4594
        %v4596 = vmul.f32 %v4589, %v728
        %v4597 = vmul.f32 %v4592, %v728
        %v4598 = vmul.f32 %v4595, %v728
        %v4599 = vadd.f32 %v4596, 1e-05
        %v4600 = vadd.f32 %v4597, 1e-05
        %v4601 = vadd.f32 %v4598, 1e-05
        %v4602 = vrsqrt.pop %v4599
        %v4603 = vrsqrt.pop %v4600
        %v4604 = vrsqrt.pop %v4601
        %v4605 = vmul.f32 %v4581, %v4602
        %v4606 = vmul.f32 %v4582, %v4603
        %v4607 = vmul.f32 %v4583, %v4604
        %v4609 = vlaneseq
        %v4610 = vshrl.u32 %v4609, 7
        %v4611 = vsub.s32 0, %v4610
        %v4612 = vrot.slane %v4566, %v4611
        %v4614 = vmul.f32 %v4605, %v4612
        %v4615 = vmul.f32 %v4606, %v4612
        %v4616 = vmul.f32 %v4607, %v4612
        %v4618 = vlaneseq
        %v4619 = vshrl.u32 %v4618, 7
        %v4620 = vsub.s32 0, %v4619
        %v4621 = vrot.slane %v4568, %v4620
        %v4623 = vadd.f32 %v4614, %v4621
        %v4624 = vadd.f32 %v4615, %v4621
        %v4625 = vadd.f32 %v4616, %v4621
        %v4626 = vpack.c.bf16 %v4624, %v4623
        %v4627 = vpack.c.bf16 %v4625, %v4625
        %s4628 = scalar_lea.vmem %s12, 16
        %v4629 = vld [vmem:[%s4628] sm:$0xf]
        %v4630 = vld [vmem:[%s4628 + $0x4] sm:$0xf]
        %v4631 = vld [vmem:[%s4628 + $0x8] sm:$0xf]
        %v4632 = vld [vmem:[%s4628 + $0xc] sm:$0xf]
        %s4633 = scalar_lea.vmem %s13, 1
        %v4634 = vld [vmem:[%s4633] sm:$0x1]
        %v4636 = vlaneseq
        %v4637 = vshrl.u32 %v4636, 7
        %v4638 = vsub.s32 0, %v4637
        %v4639 = vrot.slane %v4634, %v4638
        %v4645 = vunpack.c.l.b16 %v4629
        %v4646 = vunpack.c.l.b16 %v4630
        %v4647 = vunpack.c.l.b16 %v4631
        %v4648 = vunpack.c.l.b16 %v4632
        %v4649 = vpack.c.b16 %v4646, %v4645
        %v4650 = vpack.c.b16 %v4648, %v4647
        %v4654 = vsel %vm717, %v4626, 0
        %v4657 = vsel %vm717, %v4627, 0
        %4659 = vmatprep.subr.bf16.mxu0 0
        %4660 = vmatpush1.bf16.msra.mxu0 %v4649
        %4661 = vmatprep.subr.bf16.mxu0 0
        %4662 = vmatpush1.bf16.msra.mxu0 %v4650
        %4663 = vmatprep.subr.bf16.mxu0 0
        %4664 = vmatpush1.bf16.msra.mxu0 0
        %4665 = vmatprep.subr.bf16.mxu0 0
        %4666 = vmatpush1.bf16.msra.mxu0 0
        %4667 = vmatprep.subr.bf16.mxu0 0
        %4668 = vmatpush1.bf16.msra.mxu0 0
        %4669 = vmatprep.subr.bf16.mxu0 0
        %4670 = vmatpush1.bf16.msra.mxu0 0
        %4671 = vmatprep.subr.bf16.mxu0 0
        %4672 = vmatpush1.bf16.msra.mxu0 0
        %4673 = vmatprep.subr.bf16.mxu0 0
        %4674 = vmatpush1.bf16.msra.mxu0 0
        %4675 = vmatprep.subr.bf16.mxu0 0
        %4676 = vmatpush1.bf16.msra.mxu0 0
        %4677 = vmatprep.subr.bf16.mxu0 0
        %4678 = vmatpush1.bf16.msra.mxu0 0
        %4679 = vmatprep.subr.bf16.mxu0 0
        %4680 = vmatpush1.bf16.msra.mxu0 0
        %4681 = vmatprep.subr.bf16.mxu0 0
        %4682 = vmatpush1.bf16.msra.mxu0 0
        %4683 = vmatprep.subr.bf16.mxu0 0
        %4684 = vmatpush1.bf16.msra.mxu0 0
        %4685 = vmatprep.subr.bf16.mxu0 0
        %4686 = vmatpush1.bf16.msra.mxu0 0
        %4687 = vmatprep.subr.bf16.mxu0 0
        %4688 = vmatpush1.bf16.msra.mxu0 0
        %4689 = vmatprep.subr.bf16.mxu0 0
        %4690 = vmatpush1.bf16.msra.mxu0 0
        %4691 = vmatprep.mubr.bf16.mxu0 0
        %4692 = vmatmul.mubr.bf16.gmra.mrb[0].mxu0 %v4654
        %v4693 = vpop.f32.mrb[0].mxu0
        %v4694 = vadd.f32 %v4639, %v4693
        %v4695 = vpop.f32.mrb[0].mxu0
        %v4696 = vpop.f32.mrb[0].mxu0
        %v4697 = vadd.f32 %v4639, %v4696
        %v4698 = vpop.f32.mrb[0].mxu0
        %4699 = vmatprep.mubr.bf16.mxu0 0
        %4700 = vmatmul.mubr.bf16.gmra.mrb[0].mxu0 %v4657
        %v4701 = vpop.f32.mrb[0].mxu0
        %v4702 = vadd.f32 %v4639, %v4701
        %v4703 = vpop.f32.mrb[0].mxu0
        %v4704 = vpop.f32.mrb[0].mxu0
        %v4705 = vpop.f32.mrb[0].mxu0
        %4706 = vdwg.mxu0
        %v4707 = vmul.f32 %v4694, 0.5
        %v4708 = vmul.f32 %v4697, 0.5
        %v4709 = vmul.f32 %v4702, 0.5
        %v4710 = vmul.f32 %v4694, 0.70710677
        %v4711 = vmul.f32 %v4697, 0.70710677
        %v4712 = vmul.f32 %v4702, 0.70710677
        %v4713 = vmax.f32 %v4710, -4.0
        %v4714 = vmax.f32 %v4711, -4.0
        %v4715 = vmax.f32 %v4712, -4.0
        %v4716 = vmin.f32 %v4713, 4.0
        %v4717 = vmin.f32 %v4714, 4.0
        %v4718 = vmin.f32 %v4715, 4.0
        %v4719 = vmul.f32 %v4716, %v4716
        %v4720 = vmul.f32 %v4717, %v4717
        %v4721 = vmul.f32 %v4718, %v4718
        %v4722 = vmul.f32 %v4719, 0.00022905065
        %v4723 = vmul.f32 %v4720, 0.00022905065
        %v4724 = vmul.f32 %v4721, 0.00022905065
        %v4725 = vadd.f32 %v4722, 0.003408291
        %v4726 = vadd.f32 %v4723, 0.003408291
        %v4727 = vadd.f32 %v4724, 0.003408291
        %v4728 = vmul.f32 %v4725, %v4719
        %v4729 = vmul.f32 %v4726, %v4720
        %v4730 = vmul.f32 %v4727, %v4721
        %v4731 = vadd.f32 %v4728, 0.050955694
        %v4732 = vadd.f32 %v4729, 0.050955694
        %v4733 = vadd.f32 %v4730, 0.050955694
        %v4734 = vmul.f32 %v4731, %v4719
        %v4735 = vmul.f32 %v4732, %v4720
        %v4736 = vmul.f32 %v4733, %v4721
        %v4737 = vadd.f32 %v4734, 0.18520832
        %v4738 = vadd.f32 %v4735, 0.18520832
        %v4739 = vadd.f32 %v4736, 0.18520832
        %v4740 = vmul.f32 %v4737, %v4719
        %v4741 = vmul.f32 %v4738, %v4720
        %v4742 = vmul.f32 %v4739, %v4721
        %v4743 = vadd.f32 %v4740, 1.1283791
        %v4744 = vadd.f32 %v4741, 1.1283791
        %v4745 = vadd.f32 %v4742, 1.1283791
        %v4746 = vmul.f32 %v4719, -1.1791603e-07
        %v4747 = vmul.f32 %v4720, -1.1791603e-07
        %v4748 = vmul.f32 %v4721, -1.1791603e-07
        %v4749 = vadd.f32 %v4746, 2.3547966e-05
        %v4750 = vadd.f32 %v4747, 2.3547966e-05
        %v4751 = vadd.f32 %v4748, 2.3547966e-05
        %v4752 = vmul.f32 %v4749, %v4719
        %v4753 = vmul.f32 %v4750, %v4720
        %v4754 = vmul.f32 %v4751, %v4721
        %v4755 = vadd.f32 %v4752, 0.0010179626
        %v4756 = vadd.f32 %v4753, 0.0010179626
        %v4757 = vadd.f32 %v4754, 0.0010179626
        %v4758 = vmul.f32 %v4755, %v4719
        %v4759 = vmul.f32 %v4756, %v4720
        %v4760 = vmul.f32 %v4757, %v4721
        %v4761 = vadd.f32 %v4758, 0.01407047
        %v4762 = vadd.f32 %v4759, 0.01407047
        %v4763 = vadd.f32 %v4760, 0.01407047
        %v4764 = vmul.f32 %v4761, %v4719
        %v4765 = vmul.f32 %v4762, %v4720
        %v4766 = vmul.f32 %v4763, %v4721
        %v4767 = vadd.f32 %v4764, 0.11098505
        %v4768 = vadd.f32 %v4765, 0.11098505
        %v4769 = vadd.f32 %v4766, 0.11098505
        %v4770 = vmul.f32 %v4767, %v4719
        %v4771 = vmul.f32 %v4768, %v4720
        %v4772 = vmul.f32 %v4769, %v4721
        %v4773 = vadd.f32 %v4770, 0.49746925
        %v4774 = vadd.f32 %v4771, 0.49746925
        %v4775 = vadd.f32 %v4772, 0.49746925
        %v4776 = vmul.f32 %v4773, %v4719
        %v4777 = vmul.f32 %v4774, %v4720
        %v4778 = vmul.f32 %v4775, %v4721
        %v4779 = vadd.f32 %v4776, 1.0
        %v4780 = vadd.f32 %v4777, 1.0
        %v4781 = vadd.f32 %v4778, 1.0
        %v4782 = vmul.f32 %v4716, %v4743
        %v4783 = vmul.f32 %v4717, %v4744
        %v4784 = vmul.f32 %v4718, %v4745
        %v4785 = vrcp.pop %v4779
        %v4786 = vrcp.pop %v4780
        %v4787 = vrcp.pop %v4781
        %v4788 = vmul.f32 %v4782, %v4785
        %v4789 = vmul.f32 %v4783, %v4786
        %v4790 = vmul.f32 %v4784, %v4787
        %v4791 = vadd.f32 %v4788, 1.0
        %v4792 = vadd.f32 %v4789, 1.0
        %v4793 = vadd.f32 %v4790, 1.0
        %v4794 = vmul.f32 %v4707, %v4791
        %v4795 = vmul.f32 %v4708, %v4792
        %v4796 = vmul.f32 %v4709, %v4793
        %v4797 = vpack.c.bf16 %v4795, %v4794
        %v4798 = vpack.c.bf16 %v4796, %v4796
        %s4799 = scalar_lea.vmem %s14, 32
        %v4800 = vld [vmem:[%s4799] sm:$0xf]
        %v4801 = vld [vmem:[%s4799 + $0x4] sm:$0xf]
        %v4802 = vld [vmem:[%s4799 + $0x8] sm:$0xf]
        %v4803 = vld [vmem:[%s4799 + $0xc] sm:$0xf]
        %v4804 = vld [vmem:[%s4799 + $0x10] sm:$0xf]
        %v4805 = vld [vmem:[%s4799 + $0x14] sm:$0xf]
        %v4806 = vld [vmem:[%s4799 + $0x18] sm:$0xf]
        %v4807 = vld [vmem:[%s4799 + $0x1c] sm:$0xf]
        %s4808 = scalar_lea.vmem %s15, 1
        %v4809 = vld [vmem:[%s4808] sm:$0x1]
        %v4811 = vlaneseq
        %v4812 = vshrl.u32 %v4811, 7
        %v4813 = vsub.s32 0, %v4812
        %v4814 = vrot.slane %v4809, %v4813
        %v4824 = vunpack.c.l.b16 %v4800
        %v4825 = vunpack.c.l.b16 %v4801
        %v4826 = vunpack.c.l.b16 %v4802
        %v4827 = vunpack.c.l.b16 %v4803
        %v4828 = vunpack.c.l.b16 %v4804
        %v4829 = vunpack.c.l.b16 %v4805
        %v4830 = vunpack.c.l.b16 %v4806
        %v4831 = vunpack.c.l.b16 %v4807
        %v4832 = vpack.c.b16 %v4825, %v4824
        %v4833 = vpack.c.b16 %v4827, %v4826
        %v4834 = vpack.c.b16 %v4829, %v4828
        %v4835 = vpack.c.b16 %v4831, %v4830
        %v4841 = vsel %vm2747, %v4797, 0
        %v4844 = vsel %vm2747, %v4798, 0
        %4846 = vmatprep.subr.bf16.mxu0 0
        %4847 = vmatpush1.bf16.msra.mxu0 %v4832
        %4848 = vmatprep.subr.bf16.mxu0 0
        %4849 = vmatpush1.bf16.msra.mxu0 %v4833
        %4850 = vmatprep.subr.bf16.mxu0 0
        %4851 = vmatpush1.bf16.msra.mxu0 %v4834
        %4852 = vmatprep.subr.bf16.mxu0 0
        %4853 = vmatpush1.bf16.msra.mxu0 %v4835
        %4854 = vmatprep.subr.bf16.mxu0 0
        %4855 = vmatpush1.bf16.msra.mxu0 0
        %4856 = vmatprep.subr.bf16.mxu0 0
        %4857 = vmatpush1.bf16.msra.mxu0 0
        %4858 = vmatprep.subr.bf16.mxu0 0
        %4859 = vmatpush1.bf16.msra.mxu0 0
        %4860 = vmatprep.subr.bf16.mxu0 0
        %4861 = vmatpush1.bf16.msra.mxu0 0
        %4862 = vmatprep.subr.bf16.mxu0 0
        %4863 = vmatpush1.bf16.msra.mxu0 0
        %4864 = vmatprep.subr.bf16.mxu0 0
        %4865 = vmatpush1.bf16.msra.mxu0 0
        %4866 = vmatprep.subr.bf16.mxu0 0
        %4867 = vmatpush1.bf16.msra.mxu0 0
        %4868 = vmatprep.subr.bf16.mxu0 0
        %4869 = vmatpush1.bf16.msra.mxu0 0
        %4870 = vmatprep.subr.bf16.mxu0 0
        %4871 = vmatpush1.bf16.msra.mxu0 0
        %4872 = vmatprep.subr.bf16.mxu0 0
        %4873 = vmatpush1.bf16.msra.mxu0 0
        %4874 = vmatprep.subr.bf16.mxu0 0
        %4875 = vmatpush1.bf16.msra.mxu0 0
        %4876 = vmatprep.subr.bf16.mxu0 0
        %4877 = vmatpush1.bf16.msra.mxu0 0
        %4878 = vmatprep.mubr.bf16.mxu0 0
        %4879 = vmatmul.mubr.bf16.gmra.mrb[0].mxu0 %v4841
        %v4880 = vpop.f32.mrb[0].mxu0
        %v4881 = vadd.f32 %v4814, %v4880
        %v4882 = vpop.f32.mrb[0].mxu0
        %v4883 = vpop.f32.mrb[0].mxu0
        %v4884 = vpop.f32.mrb[0].mxu0
        %4885 = vmatprep.mubr.bf16.mxu0 0
        %4886 = vmatmul.mubr.bf16.gmra.mrb[0].mxu0 %v4844
        %v4887 = vpop.f32.mrb[0].mxu0
        %v4888 = vpop.f32.mrb[0].mxu0
        %v4889 = vpop.f32.mrb[0].mxu0
        %v4890 = vpop.f32.mrb[0].mxu0
        %4891 = vdwg.mxu0
        %v4892 = vadd.f32 %v4562, %v4881
        %v4893 = vld [vmem:[%s16] sm:$0x1]
        %v4894 = vld [vmem:[%s17] sm:$0x1]
        %v4895 = vsel %vm724, %v4892, 0.0
        %4896 = vadd.xlane.f32.xlu0 %v4895
        %v4897 = vpop.xlane.xlu0 %4896
        %v4898 = vmul.f32 %v4897, %v728
        %v4899 = vsub.f32 %v4892, %v4898
        %v4900 = vmul.f32 %v4899, %v4899
        %v4901 = vsel %vm724, %v4900, 0.0
        %4902 = vadd.xlane.f32.xlu0 %v4901
        %v4903 = vpop.xlane.xlu0 %4902
        %v4904 = vmul.f32 %v4903, %v728
        %v4905 = vadd.f32 %v4904, 1e-05
        %v4906 = vrsqrt.pop %v4905
        %v4907 = vmul.f32 %v4899, %v4906
        %v4908 = vmul.f32 %v4907, %v4893
        %v4909 = vadd.f32 %v4908, %v4894
        %v4910 = vpack.c.bf16 %v4909, %v4909
        %v4911 = vld [vmem:[%s18] sm:$0xf]
        %v4912 = vld [vmem:[%s18 + $0x4] sm:$0xf]
        %v4913 = vld [vmem:[%s18 + $0x8] sm:$0xf]
        %v4914 = vld [vmem:[%s18 + $0xc] sm:$0xf]
        %v4915 = vld [vmem:[%s19] sm:$0x1]
        %v4920 = vunpack.c.l.b16 %v4911
        %v4921 = vunpack.c.l.b16 %v4912
        %v4922 = vunpack.c.l.b16 %v4913
        %v4923 = vunpack.c.l.b16 %v4914
        %v4924 = vpack.c.b16 %v4921, %v4920
        %v4925 = vpack.c.b16 %v4923, %v4922
        %v4929 = vsel %vm717, %v4910, 0
        %4931 = vmatprep.subr.bf16.mxu0 0
        %4932 = vmatpush1.bf16.msra.mxu0 %v4924
        %4933 = vmatprep.subr.bf16.mxu0 0
        %4934 = vmatpush1.bf16.msra.mxu0 %v4925
        %4935 = vmatprep.subr.bf16.mxu0 0
        %4936 = vmatpush1.bf16.msra.mxu0 0
        %4937 = vmatprep.subr.bf16.mxu0 0
        %4938 = vmatpush1.bf16.msra.mxu0 0
        %4939 = vmatprep.subr.bf16.mxu0 0
        %4940 = vmatpush1.bf16.msra.mxu0 0
        %4941 = vmatprep.subr.bf16.mxu0 0
        %4942 = vmatpush1.bf16.msra.mxu0 0
        %4943 = vmatprep.subr.bf16.mxu0 0
        %4944 = vmatpush1.bf16.msra.mxu0 0
        %4945 = vmatprep.subr.bf16.mxu0 0
        %4946 = vmatpush1.bf16.msra.mxu0 0
        %4947 = vmatprep.subr.bf16.mxu0 0
        %4948 = vmatpush1.bf16.msra.mxu0 0
        %4949 = vmatprep.subr.bf16.mxu0 0
        %4950 = vmatpush1.bf16.msra.mxu0 0
        %4951 = vmatprep.subr.bf16.mxu0 0
        %4952 = vmatpush1.bf16.msra.mxu0 0
        %4953 = vmatprep.subr.bf16.mxu0 0
        %4954 = vmatpush1.bf16.msra.mxu0 0
        %4955 = vmatprep.subr.bf16.mxu0 0
        %4956 = vmatpush1.bf16.msra.mxu0 0
        %4957 = vmatprep.subr.bf16.mxu0 0
        %4958 = vmatpush1.bf16.msra.mxu0 0
        %4959 = vmatprep.subr.bf16.mxu0 0
        %4960 = vmatpush1.bf16.msra.mxu0 0
        %4961 = vmatprep.subr.bf16.mxu0 0
        %4962 = vmatpush1.bf16.msra.mxu0 0
        %4963 = vmatprep.mubr.bf16.mxu0 0
        %4964 = vmatmul.mubr.bf16.gmra.mrb[0].mxu0 %v4929
        %v4965 = vpop.f32.mrb[0].mxu0
        %v4966 = vadd.f32 %v4915, %v4965
        %v4967 = vpop.f32.mrb[0].mxu0
        %v4968 = vpop.f32.mrb[0].mxu0
        %v4969 = vpop.f32.mrb[0].mxu0
        %4970 = vdwg.mxu0
        %vm4971 = vcmask 49152
        %4972 = vst.msk [vmem:[%s621] sm:$0x1] %vm4971, %v4966
        %s4973 = sand.u32 %s467, 1
        %s4974 = scalar_lea.sflag [#allocation3], %s4973
        %s4975 = sand.u32 %s467, 1
        %s4976 = scalar_lea.vmem [#allocation2], %s4975
        // Predicated region
        $region101: #{vit_forward.1} parent=99 // pred_check
          %p4977 = pneg %p477
        $region102: #{vit_forward.1} parent=99 // pred_check_branch
          %4979 = sbr.rel (%p4977) target = $region104
        $region103: #{vit_forward.1} parent=99 // pred_region
          %s4981 = ssub.s32 16, 16
          %4982 = vsyncadd %s4974, %s4981
          %s4983 = smul.addr %s34, 16
          %s4984 = scalar_lea.hbm %s20, %s4983
          %s4986 = sshll.u32 %s4976, 4
          %s4987 = int_to_ptr.vmem [resolvable:$true] %s4986
          %4989 = dma.vmem_to_hbm [thread:$0]  %s4987, 16, %s4984, %s4974
        $region104: #{vit_forward.1} parent=99 // pred_fallthru
          _
      $region100: #{vit_forward.1} parent=5 // pred_fallthru
        _
      %p4990 = scmp.le.s32.totalorder 2, %s29
      // Predicated region
      $region105: #{vit_forward.1} parent=5 // pred_check
        %p4991 = pneg %p4990
      $region106: #{vit_forward.1} parent=5 // pred_check_branch
        %4993 = sbr.rel (%p4991) target = $region108
      $region107: #{vit_forward.1} parent=5 // pred_region
        %s4994 = ssub.s32 %s29, 2
        // Predicated region
        $region109: #{vit_forward.1} parent=107 // pred_check
          %p4995 = pneg %p483
        $region110: #{vit_forward.1} parent=107 // pred_check_branch
          %4997 = sbr.rel (%p4995) target = $region112
        $region111: #{vit_forward.1} parent=107 // pred_region
          %s4998 = sand.u32 %s468, 1
          %s4999 = scalar_lea.sflag [#allocation3], %s4998
          %s5000 = sand.u32 %s468, 1
          %s5001 = scalar_lea.vmem [#allocation2], %s5000
          %5002 = dma.done %s4999, 16
        $region112: #{vit_forward.1} parent=107 // pred_fallthru
          _
      $region108: #{vit_forward.1} parent=5 // pred_fallthru
        _
    $region6: #{vit_forward.1} parent=1 // loop_footer
      %s33 = sadd.s32 1, %s29
    $region7: #{vit_forward.1} parent=1 // loop_footer_branch
      %28 = sbr.rel target = $region3
    $region8: #{vit_forward.1} parent=1 // loop_exit
      _
    %5003 = vsyncpa [#allocation3], 1
    %s5004 = scalar_lea.sflag [#allocation3], 1
    %5005 = vsyncpa %s5004, 1

</llo_original>
